<compile_context>
chip_gen: v7x
topology: tpu7x:2x2x1
jax: 0.10.0
libtpu: 0.0.40
codegen_flags: <defaults>
</compile_context>

<pallas_src>
import functools
import math

import jax
import jax.numpy as jnp
from jax import lax
from jax.experimental import pallas as pl
from jax.experimental.pallas import tpu as pltpu

# ---- small, self-consistent hyperparameters -------------------------------
BATCH = 2
SEQ = 8
VOCAB = 50
EMBED = 32                        # embedding_matrix.shape[1]
HIDDEN = 32                       # hidden_size
INPUT_SIZE = 32                   # self.input output dim (module default 150, scaled down)
D_ENC = 2 * HIDDEN + INPUT_SIZE   # 96 = feature dim of final_encoding
ATT1 = 150                        # W_s1 out (hard-coded in the module)
ATT2 = 65                         # W_s2 out (number of attention "heads")
W2_OUT = 100                      # W2 out (hard-coded)
OUT_DIM = 1 + 7                   # cat([label(output_size=1), linear_aux_out(7)])
BIAS_W = 8 * HIDDEN               # widest bias row (fused LSTM bias) -> slab width


def neuralnet_kernel(
    Bs,
    x_ref, h0_ref, c0_ref,
    w_l_ih_ref, w_l_hh_ref, w_g_ih_ref, w_g_hh_ref,
    bias_ref,
    w_in_ref, w_s1_ref, w_s2_ref, w2_ref, w_out_ref,
    out_ref,
):
    S, H = SEQ, HIDDEN
    f32 = jnp.float32
    bf16 = jnp.bfloat16
    sig = jax.nn.sigmoid

    x = x_ref[...]                                   # (S*Bs, E) f32, time-major
    x_bf = x.astype(bf16)

    # ---- packed small params (one slab = one DMA), static row/width slices ----
    b_l    = bias_ref[0:1, 0:8 * H]                  # fused LSTM bias (both dirs)
    b_g_x  = bias_ref[1:2, 0:6 * H]                  # GRU b_ih(+b_hh for r,z slots)
    b_g_hn = bias_ref[2:3, 0:2 * H]                  # GRU hidden n-gate bias
    b_in   = bias_ref[3:4, 0:INPUT_SIZE]
    b_s1   = bias_ref[4:5, 0:ATT1]
    b_s2   = bias_ref[5:6, 0:ATT2]
    ln_g   = bias_ref[6:7, 0:D_ENC]
    ln_b   = bias_ref[7:8, 0:D_ENC]
    b2     = bias_ref[8:9, 0:W2_OUT]
    ln2_g  = bias_ref[9:10, 0:W2_OUT]
    ln2_b  = bias_ref[10:11, 0:W2_OUT]
    b_out  = bias_ref[11:12, 0:OUT_DIM]

    # ================= bidirectional LSTM (both directions fused) =================
    # Hoisted input projection for all timesteps / both directions (bf16 MXU operands).
    gi = jnp.dot(x_bf, w_l_ih_ref[...], preferred_element_type=f32)       # (S*Bs, 16H)
    gi_f = gi[:, 0:8 * H] + b_l
    gi_b = gi[:, 8 * H:16 * H]
    # Pre-summed per-step gate inputs: fwd@t + bwd@(S-1-t)  (hoisted off the chain).
    gsum = gi_f + jnp.concatenate(
        [gi_b[(S - 1 - t) * Bs:(S - t) * Bs, :] for t in range(S)], axis=0)  # (S*Bs, 8H)

    w_l_hh = w_l_hh_ref[...]                         # (2H, 8H) bf16, block-diag interleaved
    h = h0_ref[...]                                  # (Bs, 2H) f32: [h_fwd | h_bwd]
    c = c0_ref[...]
    lstm_h = []
    for t in range(S):                               # static unroll (S = 8)
        g = (jnp.dot(h.astype(bf16), w_l_hh, preferred_element_type=f32)
             + gsum[t * Bs:(t + 1) * Bs, :])                               # (Bs, 8H)
        sg = sig(g[:, 0:6 * H])                      # contiguous sigmoid gates [i|f|o]
        i_g = sg[:, 0:2 * H]
        f_g = sg[:, 2 * H:4 * H]
        o_g = sg[:, 4 * H:6 * H]
        c = f_g * c + i_g * jnp.tanh(g[:, 6 * H:8 * H])
        h = o_g * jnp.tanh(c)
        lstm_h.append(h)                             # fwd hidden @ t  |  bwd hidden @ S-1-t
    # h == [h_n fwd | h_n bwd] == GRU initial hidden state.

    # Register-resident time-major LSTM output: row(t) = [fwd(t) | bwd(t)].
    lstm_tm = jnp.concatenate(
        [jnp.concatenate([lstm_h[t][:, 0:H], lstm_h[S - 1 - t][:, H:2 * H]], axis=1)
         for t in range(S)], axis=0)                                       # (S*Bs, 2H)

    # ================= bidirectional GRU (both directions fused) ==================
    gig = jnp.dot(lstm_tm.astype(bf16), w_g_ih_ref[...],
                  preferred_element_type=f32)                              # (S*Bs, 12H)
    gx_f = gig[:, 0:6 * H] + b_g_x
    gx_b = gig[:, 6 * H:12 * H]
    gxsum = gx_f + jnp.concatenate(
        [gx_b[(S - 1 - t) * Bs:(S - t) * Bs, :] for t in range(S)], axis=0)  # (S*Bs, 6H)

    w_g_hh = w_g_hh_ref[...]                         # (2H, 6H) bf16
    gru_h = []
    for t in range(S):
        gh = jnp.dot(h.astype(bf16), w_g_hh, preferred_element_type=f32)   # (Bs, 6H)
        gx = gxsum[t * Bs:(t + 1) * Bs, :]
        rz = sig(gx[:, 0:4 * H] + gh[:, 0:4 * H])
        r = rz[:, 0:2 * H]
        z = rz[:, 2 * H:4 * H]
        n = jnp.tanh(gx[:, 4 * H:6 * H] + r * (gh[:, 4 * H:6 * H] + b_g_hn))
        h = (1.0 - z) * n + z * h
        gru_h.append(h)                              # fwd hidden @ t | bwd hidden @ S-1-t

    # ============ attention + MLP head (batched over the shard's batch rows) =======
    inp = jnp.tanh(jnp.dot(x, w_in_ref[...], preferred_element_type=f32) + b_in)  # (S*Bs, IN)

    # Batch-major encodings assembled in registers: enc_b[t] = [gru_fwd(t)|gru_bwd(t)|inp(t)]
    enc_list = []
    for b in range(Bs):
        rows = [jnp.concatenate([gru_h[t][b:b + 1, 0:H],
                                 gru_h[S - 1 - t][b:b + 1, H:2 * H],
                                 inp[t * Bs + b:t * Bs + b + 1, :]], axis=1)
                for t in range(S)]
        enc_list.append(jnp.concatenate(rows, axis=0))                     # (S, D_ENC)
    enc2 = jnp.concatenate(enc_list, axis=0)                               # (Bs*S, D_ENC)

    # W_s1 / W_s2 run once over all Bs*S rows.
    s1 = jnp.tanh(jnp.dot(enc2, w_s1_ref[...], preferred_element_type=f32) + b_s1)  # (Bs*S, 150)
    s2 = jnp.dot(s1, w_s2_ref[...], preferred_element_type=f32) + b_s2               # (Bs*S, 65)

    # Per-batch softmax over the sequence axis + attention contraction (tiny, Bs <= 2).
    ctx_list = []
    for b in range(Bs):
        s2_b = s2[b * S:(b + 1) * S, :]              # (S, 65) aligned block
        m = jnp.max(s2_b, axis=0, keepdims=True)
        e = jnp.exp(s2_b - m)
        attn = e * pl.reciprocal(jnp.sum(e, axis=0, keepdims=True), approx=True)
        # ctx[a, d] = sum_s attn[s, a] * enc_b[s, d]
        ctx_list.append(lax.dot_general(attn, enc_list[b], (((0,), (0,)), ((), ())),
                                        preferred_element_type=f32))        # (65, D)
    ctx = jnp.stack(ctx_list, axis=0)                # (Bs, 65, D)

    # LayerNorm + Swish, batched over Bs.
    mu = jnp.mean(ctx, axis=-1, keepdims=True)
    var = jnp.mean((ctx - mu) ** 2, axis=-1, keepdims=True)
    lnx = (ctx - mu) * lax.rsqrt(var + 1e-5) * ln_g + ln_b
    sw = lnx * sig(lnx)                              # (Bs, 65, D)

    w2 = w2_ref[...]
    pooled = []
    for b in range(Bs):
        y_b = jnp.dot(sw[b], w2, preferred_element_type=f32) + b2          # (65, 100)
        pooled.append(jnp.max(y_b, axis=0, keepdims=True))                 # AdaptiveMaxPool1d(1)
    ymax = jnp.concatenate(pooled, axis=0)                                  # (Bs, 100)

    mu2 = jnp.mean(ymax, axis=-1, keepdims=True)
    var2 = jnp.mean((ymax - mu2) ** 2, axis=-1, keepdims=True)
    y2 = (ymax - mu2) * lax.rsqrt(var2 + 1e-5) * ln2_g + ln2_b             # (Bs, 100)

    # Fused [label | aux] head, batched: (Bs,100)@(100,8).
    out_ref[...] = jnp.dot(y2, w_out_ref[...], preferred_element_type=f32) + b_out


# ----------------------------- parameter construction -----------------------------
def make_params(key):
    ks = list(jax.random.split(key, 32))
    it = iter(ks)

    def unif(shape, bound):
        return jax.random.uniform(next(it), shape, jnp.float32, -bound, bound)

    inv_h = 1.0 / math.sqrt(HIDDEN)
    p = {}
    p["embedding"] = 0.1 * jax.random.normal(next(it), (VOCAB, EMBED), jnp.float32)

    # initial LSTM states: xavier_uniform(gain=5/3) on a (2, B, H) tensor
    fan_in, fan_out = BATCH * HIDDEN, 2 * HIDDEN
    a = (5.0 / 3.0) * math.sqrt(6.0 / (fan_in + fan_out))
    p["h0"] = unif((2, BATCH, HIDDEN), a)
    p["c0"] = unif((2, BATCH, HIDDEN), a)

    # LSTM weights (pre-transposed to (in, 4H), torch gate order [i,f,g,o]); b_ih+b_hh fused
    for d in ("f", "b"):
        p[f"l_wih_{d}"] = unif((EMBED, 4 * HIDDEN), inv_h)
        p[f"l_whh_{d}"] = unif((HIDDEN, 4 * HIDDEN), inv_h)
        p[f"l_b_{d}"] = unif((1, 4 * HIDDEN), inv_h)
    # GRU weights (input = 2H, gate order [r,z,n]); b_ih / b_hh kept separate (r gates b_hn)
    for d in ("f", "b"):
        p[f"g_wih_{d}"] = unif((2 * HIDDEN, 3 * HIDDEN), inv_h)
        p[f"g_whh_{d}"] = unif((HIDDEN, 3 * HIDDEN), inv_h)
        p[f"g_bih_{d}"] = unif((1, 3 * HIDDEN), inv_h)
        p[f"g_bhh_{d}"] = unif((1, 3 * HIDDEN), inv_h)

    p["w_in"] = unif((EMBED, INPUT_SIZE), 1.0 / math.sqrt(EMBED))
    p["b_in"] = unif((1, INPUT_SIZE), 1.0 / math.sqrt(EMBED))
    p["w_s1"] = unif((D_ENC, ATT1), 1.0 / math.sqrt(D_ENC))
    p["b_s1"] = unif((1, ATT1), 1.0 / math.sqrt(D_ENC))
    p["w_s2"] = unif((ATT1, ATT2), 1.0 / math.sqrt(ATT1))
    p["b_s2"] = unif((1, ATT2), 1.0 / math.sqrt(ATT1))
    p["ln_g"] = jnp.ones((1, D_ENC), jnp.float32)
    p["ln_b"] = jnp.zeros((1, D_ENC), jnp.float32)
    p["w2"] = unif((D_ENC, W2_OUT), 1.0 / math.sqrt(D_ENC))
    p["b2"] = unif((1, W2_OUT), 1.0 / math.sqrt(D_ENC))
    p["ln2_g"] = jnp.ones((1, W2_OUT), jnp.float32)
    p["ln2_b"] = jnp.zeros((1, W2_OUT), jnp.float32)
    # label (100->1) and linear_aux_out (100->7) fused into one (100, 8) head
    p["w_out"] = unif((W2_OUT, OUT_DIM), 1.0 / math.sqrt(W2_OUT))
    p["b_out"] = unif((1, OUT_DIM), 1.0 / math.sqrt(W2_OUT))
    return p


def _gate_interleave(w, n_gates, slot, order=None):
    """Place per-gate H-wide column blocks of `w` (taken in `order`) at the even
    (slot=0) or odd (slot=1) H-wide slots of a 2x-wider matrix; other slots zero."""
    H = HIDDEN
    order = tuple(range(n_gates)) if order is None else order
    z = jnp.zeros_like(w[..., 0:H])
    parts = []
    for k in order:
        blk = w[..., k * H:(k + 1) * H]
        parts.extend([blk, z] if slot == 0 else [z, blk])
    return jnp.concatenate(parts, axis=-1)


def _pack_params(p):
    """Fused (block-diagonal, gate-interleaved) weights so each RNN step is a single
    bf16 MXU matmul with contiguous gate slices covering both directions.
    LSTM gates are reordered [i,f,g,o] -> [i,f,o,g] so the sigmoid gates are contiguous."""
    gi = _gate_interleave
    bf16 = jnp.bfloat16
    H2, H4 = 2 * HIDDEN, 4 * HIDDEN
    lstm_order = (0, 1, 3, 2)
    pk = {}
    pk["w_l_ih"] = jnp.concatenate([gi(p["l_wih_f"], 4, 0, lstm_order),
                                    gi(p["l_wih_b"], 4, 1, lstm_order)], axis=-1).astype(bf16)
    pk["w_l_hh"] = jnp.concatenate([gi(p["l_whh_f"], 4, 0, lstm_order),
                                    gi(p["l_whh_b"], 4, 1, lstm_order)], axis=0).astype(bf16)
    pk["b_l"] = gi(p["l_b_f"], 4, 0, lstm_order) + gi(p["l_b_b"], 4, 1, lstm_order)   # (1, 8H)

    pk["w_g_ih"] = jnp.concatenate([gi(p["g_wih_f"], 3, 0),
                                    gi(p["g_wih_b"], 3, 1)], axis=-1).astype(bf16)
    pk["w_g_hh"] = jnp.concatenate([gi(p["g_whh_f"], 3, 0),
                                    gi(p["g_whh_b"], 3, 1)], axis=0).astype(bf16)
    b_gih = gi(p["g_bih_f"], 3, 0) + gi(p["g_bih_b"], 3, 1)     # (1, 6H)
    b_ghh = gi(p["g_bhh_f"], 3, 0) + gi(p["g_bhh_b"], 3, 1)     # (1, 6H)
    # fold the r/z part of b_hh into the pre-summed gate input; keep the n part separate
    pk["b_g_x"] = b_gih + jnp.concatenate([b_ghh[:, 0:H4], jnp.zeros((1, H2), jnp.float32)], -1)
    pk["b_g_hn"] = b_ghh[:, H4:6 * HIDDEN]

    pk["h0c"] = jnp.concatenate([p["h0"][0], p["h0"][1]], axis=-1)   # (B, 2H) [fwd|bwd]
    pk["c0c"] = jnp.concatenate([p["c0"][0], p["c0"][1]], axis=-1)
    return pk


def _bias_slab(p, pk):
    """All tiny (1,N) bias / LayerNorm params packed into one (12, 256) slab -> 1 DMA."""
    def row(v):
        v = jnp.asarray(v, jnp.float32).reshape(1, -1)
        return jnp.pad(v, ((0, 0), (0, BIAS_W - v.shape[1])))
    rows = [pk["b_l"], pk["b_g_x"], pk["b_g_hn"], p["b_in"], p["b_s1"], p["b_s2"],
            p["ln_g"], p["ln_b"], p["b2"], p["ln2_g"], p["ln2_b"], p["b_out"]]
    return jnp.concatenate([row(v) for v in rows], axis=0)


def _num_shards():
    """2 shards (one batch row per TensorCore) only on 2-TC chips (v7x); otherwise 1,
    since a grid on a single-TC chip would just serialize the two RNN chains."""
    try:
        kind = jax.devices()[0].device_kind.lower()
    except Exception:
        return 1
    if BATCH % 2 == 0 and ("v7" in kind or "7x" in kind):
        return 2
    return 1


def neuralnet_forward(tokens, p):
    ns = _num_shards()
    bs = BATCH // ns
    pk = _pack_params(p)
    bias_slab = _bias_slab(p, pk)

    # Glue: embedding lookup + eval-mode identities (GaussianNoise / LockedDropout /
    # Dropout are no-ops in eval).  x is passed once, time-major per shard.
    emb = jnp.take(p["embedding"], tokens, axis=0).astype(jnp.float32)      # (B, S, E)
    x_sh = (emb.reshape(ns, bs, SEQ, EMBED)
               .transpose(0, 2, 1, 3)
               .reshape(ns, SEQ * bs, EMBED))                               # rows = t*bs + b
    h0_sh = pk["h0c"].reshape(ns, bs, 2 * HIDDEN)
    c0_sh = pk["c0c"].reshape(ns, bs, 2 * HIDDEN)

    shard_args = [x_sh, h0_sh, c0_sh]
    rep_args = [pk["w_l_ih"], pk["w_l_hh"], pk["w_g_ih"], pk["w_g_hh"], bias_slab,
                p["w_in"], p["w_s1"], p["w_s2"], p["w2"], p["w_out"]]

    def shard_spec(a):
        return pl.BlockSpec((None,) + a.shape[1:],
                            lambda s: (s,) + (0,) * (a.ndim - 1))

    def rep_spec(a):
        return pl.BlockSpec(a.shape, lambda s: (0,) * a.ndim)

    out = pl.pallas_call(
        functools.partial(neuralnet_kernel, bs),
        grid=(ns,),
        out_shape=jax.ShapeDtypeStruct((ns, bs, OUT_DIM), jnp.float32),
        in_specs=[shard_spec(a) for a in shard_args] + [rep_spec(a) for a in rep_args],
        out_specs=pl.BlockSpec((None, bs, OUT_DIM), lambda s: (s, 0, 0)),
        compiler_params=pltpu.CompilerParams(dimension_semantics=("parallel",)),
    )(*shard_args, *rep_args)
    return out.reshape(BATCH, OUT_DIM)


if __name__ == "__main__":
    key = jax.random.PRNGKey(0)
    kp, kt = jax.random.split(key)
    params = make_params(kp)
    tokens = jax.random.randint(kt, (BATCH, SEQ), 0, VOCAB, dtype=jnp.int32)

    out = neuralnet_forward(tokens, params)
    out = jax.block_until_ready(out)
    assert out.shape == (BATCH, OUT_DIM)
    assert bool(jnp.all(jnp.isfinite(out)))
    print("KERNEL_OK")
</pallas_src>

<mosaic_0001>
module attributes {stable_mosaic.version = 11 : i64} {
  func.func @neuralnet_kernel(%arg0: i32, %arg1: memref<1x16x32xf32, #tpu.memory_space<vmem>>, %arg2: memref<1x2x64xf32, #tpu.memory_space<vmem>>, %arg3: memref<1x2x64xf32, #tpu.memory_space<vmem>>, %arg4: memref<32x512xbf16, #tpu.memory_space<vmem>>, %arg5: memref<64x256xbf16, #tpu.memory_space<vmem>>, %arg6: memref<64x384xbf16, #tpu.memory_space<vmem>>, %arg7: memref<64x192xbf16, #tpu.memory_space<vmem>>, %arg8: memref<12x256xf32, #tpu.memory_space<vmem>>, %arg9: memref<32x32xf32, #tpu.memory_space<vmem>>, %arg10: memref<96x150xf32, #tpu.memory_space<vmem>>, %arg11: memref<150x65xf32, #tpu.memory_space<vmem>>, %arg12: memref<96x100xf32, #tpu.memory_space<vmem>>, %arg13: memref<100x8xf32, #tpu.memory_space<vmem>>, %arg14: memref<1x2x8xf32, #tpu.memory_space<vmem>>) attributes {dimension_semantics = [#tpu.dimension_semantics<parallel>], iteration_bounds = array<i64: 1>, scalar_prefetch = 0 : i64, scratch_operands = 0 : i64, tpu.core_type = #tpu.core_type<tc>, window_params = [{transform_indices = @transform_0, window_bounds = array<i64: 1, 16, 32>}, {transform_indices = @transform_1, window_bounds = array<i64: 1, 2, 64>}, {transform_indices = @transform_2, window_bounds = array<i64: 1, 2, 64>}, {pipeline_mode = #tpu.pipeline_mode<synchronous>, transform_indices = @transform_3, window_bounds = array<i64: 32, 512>}, {pipeline_mode = #tpu.pipeline_mode<synchronous>, transform_indices = @transform_4, window_bounds = array<i64: 64, 256>}, {pipeline_mode = #tpu.pipeline_mode<synchronous>, transform_indices = @transform_5, window_bounds = array<i64: 64, 384>}, {pipeline_mode = #tpu.pipeline_mode<synchronous>, transform_indices = @transform_6, window_bounds = array<i64: 64, 192>}, {pipeline_mode = #tpu.pipeline_mode<synchronous>, transform_indices = @transform_7, window_bounds = array<i64: 12, 256>}, {pipeline_mode = #tpu.pipeline_mode<synchronous>, transform_indices = @transform_8, window_bounds = array<i64: 32, 32>}, {pipeline_mode = #tpu.pipeline_mode<synchronous>, transform_indices = @transform_9, window_bounds = array<i64: 96, 150>}, {pipeline_mode = #tpu.pipeline_mode<synchronous>, transform_indices = @transform_10, window_bounds = array<i64: 150, 65>}, {pipeline_mode = #tpu.pipeline_mode<synchronous>, transform_indices = @transform_11, window_bounds = array<i64: 96, 100>}, {pipeline_mode = #tpu.pipeline_mode<synchronous>, transform_indices = @transform_12, window_bounds = array<i64: 100, 8>}, {transform_indices = @transform_13, window_bounds = array<i64: 1, 2, 8>}]} {
    %c0 = arith.constant 0 : index
    %c0_0 = arith.constant 0 : index
    %c0_1 = arith.constant 0 : index
    %0 = vector.load %arg1[%c0, %c0_0, %c0_1] : memref<1x16x32xf32, #tpu.memory_space<vmem>>, vector<1x16x32xf32>
    %1 = vector.shape_cast %0 : vector<1x16x32xf32> to vector<16x32xf32>
    %2 = arith.truncf %1 : vector<16x32xf32> to vector<16x32xbf16>
    %c0_2 = arith.constant 0 : index
    %c0_3 = arith.constant 0 : index
    %3 = vector.load %arg8[%c0_2, %c0_3] : memref<12x256xf32, #tpu.memory_space<vmem>>, vector<1x256xf32>
    %c1 = arith.constant 1 : index
    %c0_4 = arith.constant 0 : index
    %4 = vector.load %arg8[%c1, %c0_4] : memref<12x256xf32, #tpu.memory_space<vmem>>, vector<1x192xf32>
    %c2 = arith.constant 2 : index
    %c0_5 = arith.constant 0 : index
    %5 = vector.load %arg8[%c2, %c0_5] : memref<12x256xf32, #tpu.memory_space<vmem>>, vector<1x64xf32>
    %c3 = arith.constant 3 : index
    %c0_6 = arith.constant 0 : index
    %6 = vector.load %arg8[%c3, %c0_6] : memref<12x256xf32, #tpu.memory_space<vmem>>, vector<1x32xf32>
    %c4 = arith.constant 4 : index
    %c0_7 = arith.constant 0 : index
    %7 = vector.load %arg8[%c4, %c0_7] : memref<12x256xf32, #tpu.memory_space<vmem>>, vector<1x150xf32>
    %c5 = arith.constant 5 : index
    %c0_8 = arith.constant 0 : index
    %8 = vector.load %arg8[%c5, %c0_8] : memref<12x256xf32, #tpu.memory_space<vmem>>, vector<1x65xf32>
    %c6 = arith.constant 6 : index
    %c0_9 = arith.constant 0 : index
    %9 = vector.load %arg8[%c6, %c0_9] : memref<12x256xf32, #tpu.memory_space<vmem>>, vector<1x96xf32>
    %c7 = arith.constant 7 : index
    %c0_10 = arith.constant 0 : index
    %10 = vector.load %arg8[%c7, %c0_10] : memref<12x256xf32, #tpu.memory_space<vmem>>, vector<1x96xf32>
    %c8 = arith.constant 8 : index
    %c0_11 = arith.constant 0 : index
    %11 = vector.load %arg8[%c8, %c0_11] : memref<12x256xf32, #tpu.memory_space<vmem>>, vector<1x100xf32>
    %c9 = arith.constant 9 : index
    %c0_12 = arith.constant 0 : index
    %12 = vector.load %arg8[%c9, %c0_12] : memref<12x256xf32, #tpu.memory_space<vmem>>, vector<1x100xf32>
    %c10 = arith.constant 10 : index
    %c0_13 = arith.constant 0 : index
    %13 = vector.load %arg8[%c10, %c0_13] : memref<12x256xf32, #tpu.memory_space<vmem>>, vector<1x100xf32>
    %c11 = arith.constant 11 : index
    %c0_14 = arith.constant 0 : index
    %14 = vector.load %arg8[%c11, %c0_14] : memref<12x256xf32, #tpu.memory_space<vmem>>, vector<1x8xf32>
    %c0_15 = arith.constant 0 : index
    %c0_16 = arith.constant 0 : index
    %15 = vector.load %arg4[%c0_15, %c0_16] : memref<32x512xbf16, #tpu.memory_space<vmem>>, vector<32x512xbf16>
    %cst = arith.constant dense<0.000000e+00> : vector<16x512xf32>
    %16 = tpu.matmul %2, %15, %cst {dimension_numbers = #tpu.dot_dimension_numbers<[1], [0], [0], [1], [0, 0, 1, 1], [], []>} : vector<16x32xbf16>, vector<32x512xbf16>, vector<16x512xf32> -> vector<16x512xf32>
    %17 = vector.extract_strided_slice %16 {offsets = [0, 0], sizes = [16, 256], strides = [1, 1]} : vector<16x512xf32> to vector<16x256xf32>
    %18 = vector.broadcast %3 : vector<1x256xf32> to vector<16x256xf32>
    %19 = arith.addf %17, %18 : vector<16x256xf32>
    %20 = vector.extract_strided_slice %16 {offsets = [0, 256], sizes = [16, 256], strides = [1, 1]} : vector<16x512xf32> to vector<16x256xf32>
    %21 = vector.extract_strided_slice %20 {offsets = [14, 0], sizes = [2, 256], strides = [1, 1]} : vector<16x256xf32> to vector<2x256xf32>
    %22 = vector.extract_strided_slice %20 {offsets = [12, 0], sizes = [2, 256], strides = [1, 1]} : vector<16x256xf32> to vector<2x256xf32>
    %23 = vector.extract_strided_slice %20 {offsets = [10, 0], sizes = [2, 256], strides = [1, 1]} : vector<16x256xf32> to vector<2x256xf32>
    %24 = vector.extract_strided_slice %20 {offsets = [8, 0], sizes = [2, 256], strides = [1, 1]} : vector<16x256xf32> to vector<2x256xf32>
    %25 = vector.extract_strided_slice %20 {offsets = [6, 0], sizes = [2, 256], strides = [1, 1]} : vector<16x256xf32> to vector<2x256xf32>
    %26 = vector.extract_strided_slice %20 {offsets = [4, 0], sizes = [2, 256], strides = [1, 1]} : vector<16x256xf32> to vector<2x256xf32>
    %27 = vector.extract_strided_slice %20 {offsets = [2, 0], sizes = [2, 256], strides = [1, 1]} : vector<16x256xf32> to vector<2x256xf32>
    %28 = vector.extract_strided_slice %20 {offsets = [0, 0], sizes = [2, 256], strides = [1, 1]} : vector<16x256xf32> to vector<2x256xf32>
    %29 = tpu.concatenate %21, %22, %23, %24, %25, %26, %27, %28 in 0 : vector<2x256xf32>, vector<2x256xf32>, vector<2x256xf32>, vector<2x256xf32>, vector<2x256xf32>, vector<2x256xf32>, vector<2x256xf32>, vector<2x256xf32> -> vector<16x256xf32>
    %30 = arith.addf %19, %29 : vector<16x256xf32>
    %c0_17 = arith.constant 0 : index
    %c0_18 = arith.constant 0 : index
    %31 = vector.load %arg5[%c0_17, %c0_18] : memref<64x256xbf16, #tpu.memory_space<vmem>>, vector<64x256xbf16>
    %c0_19 = arith.constant 0 : index
    %c0_20 = arith.constant 0 : index
    %c0_21 = arith.constant 0 : index
    %32 = vector.load %arg2[%c0_19, %c0_20, %c0_21] : memref<1x2x64xf32, #tpu.memory_space<vmem>>, vector<1x2x64xf32>
    %33 = vector.shape_cast %32 : vector<1x2x64xf32> to vector<2x64xf32>
    %c0_22 = arith.constant 0 : index
    %c0_23 = arith.constant 0 : index
    %c0_24 = arith.constant 0 : index
    %34 = vector.load %arg3[%c0_22, %c0_23, %c0_24] : memref<1x2x64xf32, #tpu.memory_space<vmem>>, vector<1x2x64xf32>
    %35 = vector.shape_cast %34 : vector<1x2x64xf32> to vector<2x64xf32>
    %36 = arith.truncf %33 : vector<2x64xf32> to vector<2x64xbf16>
    %cst_25 = arith.constant dense<0.000000e+00> : vector<2x256xf32>
    %37 = tpu.matmul %36, %31, %cst_25 {dimension_numbers = #tpu.dot_dimension_numbers<[1], [0], [0], [1], [0, 0, 1, 1], [], []>} : vector<2x64xbf16>, vector<64x256xbf16>, vector<2x256xf32> -> vector<2x256xf32>
    %38 = vector.extract_strided_slice %30 {offsets = [0, 0], sizes = [2, 256], strides = [1, 1]} : vector<16x256xf32> to vector<2x256xf32>
    %39 = arith.addf %37, %38 : vector<2x256xf32>
    %40 = vector.extract_strided_slice %39 {offsets = [0, 0], sizes = [2, 192], strides = [1, 1]} : vector<2x256xf32> to vector<2x192xf32>
    %41 = arith.negf %40 : vector<2x192xf32>
    %42 = math.exp %41 : vector<2x192xf32>
    %cst_26 = arith.constant 1.000000e+00 : f32
    %43 = vector.broadcast %cst_26 : f32 to vector<2x192xf32>
    %44 = arith.addf %43, %42 : vector<2x192xf32>
    %45 = arith.divf %43, %44 : vector<2x192xf32>
    %46 = vector.extract_strided_slice %45 {offsets = [0, 0], sizes = [2, 64], strides = [1, 1]} : vector<2x192xf32> to vector<2x64xf32>
    %47 = vector.extract_strided_slice %45 {offsets = [0, 64], sizes = [2, 64], strides = [1, 1]} : vector<2x192xf32> to vector<2x64xf32>
    %48 = vector.extract_strided_slice %45 {offsets = [0, 128], sizes = [2, 64], strides = [1, 1]} : vector<2x192xf32> to vector<2x64xf32>
    %49 = arith.mulf %47, %35 : vector<2x64xf32>
    %50 = vector.extract_strided_slice %39 {offsets = [0, 192], sizes = [2, 64], strides = [1, 1]} : vector<2x256xf32> to vector<2x64xf32>
    %51 = math.tanh %50 : vector<2x64xf32>
    %52 = arith.mulf %46, %51 : vector<2x64xf32>
    %53 = arith.addf %49, %52 : vector<2x64xf32>
    %54 = math.tanh %53 : vector<2x64xf32>
    %55 = arith.mulf %48, %54 : vector<2x64xf32>
    %56 = arith.truncf %55 : vector<2x64xf32> to vector<2x64xbf16>
    %cst_27 = arith.constant dense<0.000000e+00> : vector<2x256xf32>
    %57 = tpu.matmul %56, %31, %cst_27 {dimension_numbers = #tpu.dot_dimension_numbers<[1], [0], [0], [1], [0, 0, 1, 1], [], []>} : vector<2x64xbf16>, vector<64x256xbf16>, vector<2x256xf32> -> vector<2x256xf32>
    %58 = vector.extract_strided_slice %30 {offsets = [2, 0], sizes = [2, 256], strides = [1, 1]} : vector<16x256xf32> to vector<2x256xf32>
    %59 = arith.addf %57, %58 : vector<2x256xf32>
    %60 = vector.extract_strided_slice %59 {offsets = [0, 0], sizes = [2, 192], strides = [1, 1]} : vector<2x256xf32> to vector<2x192xf32>
    %61 = arith.negf %60 : vector<2x192xf32>
    %62 = math.exp %61 : vector<2x192xf32>
    %cst_28 = arith.constant 1.000000e+00 : f32
    %63 = vector.broadcast %cst_28 : f32 to vector<2x192xf32>
    %64 = arith.addf %63, %62 : vector<2x192xf32>
    %65 = arith.divf %63, %64 : vector<2x192xf32>
    %66 = vector.extract_strided_slice %65 {offsets = [0, 0], sizes = [2, 64], strides = [1, 1]} : vector<2x192xf32> to vector<2x64xf32>
    %67 = vector.extract_strided_slice %65 {offsets = [0, 64], sizes = [2, 64], strides = [1, 1]} : vector<2x192xf32> to vector<2x64xf32>
    %68 = vector.extract_strided_slice %65 {offsets = [0, 128], sizes = [2, 64], strides = [1, 1]} : vector<2x192xf32> to vector<2x64xf32>
    %69 = arith.mulf %67, %53 : vector<2x64xf32>
    %70 = vector.extract_strided_slice %59 {offsets = [0, 192], sizes = [2, 64], strides = [1, 1]} : vector<2x256xf32> to vector<2x64xf32>
    %71 = math.tanh %70 : vector<2x64xf32>
    %72 = arith.mulf %66, %71 : vector<2x64xf32>
    %73 = arith.addf %69, %72 : vector<2x64xf32>
    %74 = math.tanh %73 : vector<2x64xf32>
    %75 = arith.mulf %68, %74 : vector<2x64xf32>
    %76 = arith.truncf %75 : vector<2x64xf32> to vector<2x64xbf16>
    %cst_29 = arith.constant dense<0.000000e+00> : vector<2x256xf32>
    %77 = tpu.matmul %76, %31, %cst_29 {dimension_numbers = #tpu.dot_dimension_numbers<[1], [0], [0], [1], [0, 0, 1, 1], [], []>} : vector<2x64xbf16>, vector<64x256xbf16>, vector<2x256xf32> -> vector<2x256xf32>
    %78 = vector.extract_strided_slice %30 {offsets = [4, 0], sizes = [2, 256], strides = [1, 1]} : vector<16x256xf32> to vector<2x256xf32>
    %79 = arith.addf %77, %78 : vector<2x256xf32>
    %80 = vector.extract_strided_slice %79 {offsets = [0, 0], sizes = [2, 192], strides = [1, 1]} : vector<2x256xf32> to vector<2x192xf32>
    %81 = arith.negf %80 : vector<2x192xf32>
    %82 = math.exp %81 : vector<2x192xf32>
    %cst_30 = arith.constant 1.000000e+00 : f32
    %83 = vector.broadcast %cst_30 : f32 to vector<2x192xf32>
    %84 = arith.addf %83, %82 : vector<2x192xf32>
    %85 = arith.divf %83, %84 : vector<2x192xf32>
    %86 = vector.extract_strided_slice %85 {offsets = [0, 0], sizes = [2, 64], strides = [1, 1]} : vector<2x192xf32> to vector<2x64xf32>
    %87 = vector.extract_strided_slice %85 {offsets = [0, 64], sizes = [2, 64], strides = [1, 1]} : vector<2x192xf32> to vector<2x64xf32>
    %88 = vector.extract_strided_slice %85 {offsets = [0, 128], sizes = [2, 64], strides = [1, 1]} : vector<2x192xf32> to vector<2x64xf32>
    %89 = arith.mulf %87, %73 : vector<2x64xf32>
    %90 = vector.extract_strided_slice %79 {offsets = [0, 192], sizes = [2, 64], strides = [1, 1]} : vector<2x256xf32> to vector<2x64xf32>
    %91 = math.tanh %90 : vector<2x64xf32>
    %92 = arith.mulf %86, %91 : vector<2x64xf32>
    %93 = arith.addf %89, %92 : vector<2x64xf32>
    %94 = math.tanh %93 : vector<2x64xf32>
    %95 = arith.mulf %88, %94 : vector<2x64xf32>
    %96 = arith.truncf %95 : vector<2x64xf32> to vector<2x64xbf16>
    %cst_31 = arith.constant dense<0.000000e+00> : vector<2x256xf32>
    %97 = tpu.matmul %96, %31, %cst_31 {dimension_numbers = #tpu.dot_dimension_numbers<[1], [0], [0], [1], [0, 0, 1, 1], [], []>} : vector<2x64xbf16>, vector<64x256xbf16>, vector<2x256xf32> -> vector<2x256xf32>
    %98 = vector.extract_strided_slice %30 {offsets = [6, 0], sizes = [2, 256], strides = [1, 1]} : vector<16x256xf32> to vector<2x256xf32>
    %99 = arith.addf %97, %98 : vector<2x256xf32>
    %100 = vector.extract_strided_slice %99 {offsets = [0, 0], sizes = [2, 192], strides = [1, 1]} : vector<2x256xf32> to vector<2x192xf32>
    %101 = arith.negf %100 : vector<2x192xf32>
    %102 = math.exp %101 : vector<2x192xf32>
    %cst_32 = arith.constant 1.000000e+00 : f32
    %103 = vector.broadcast %cst_32 : f32 to vector<2x192xf32>
    %104 = arith.addf %103, %102 : vector<2x192xf32>
    %105 = arith.divf %103, %104 : vector<2x192xf32>
    %106 = vector.extract_strided_slice %105 {offsets = [0, 0], sizes = [2, 64], strides = [1, 1]} : vector<2x192xf32> to vector<2x64xf32>
    %107 = vector.extract_strided_slice %105 {offsets = [0, 64], sizes = [2, 64], strides = [1, 1]} : vector<2x192xf32> to vector<2x64xf32>
    %108 = vector.extract_strided_slice %105 {offsets = [0, 128], sizes = [2, 64], strides = [1, 1]} : vector<2x192xf32> to vector<2x64xf32>
    %109 = arith.mulf %107, %93 : vector<2x64xf32>
    %110 = vector.extract_strided_slice %99 {offsets = [0, 192], sizes = [2, 64], strides = [1, 1]} : vector<2x256xf32> to vector<2x64xf32>
    %111 = math.tanh %110 : vector<2x64xf32>
    %112 = arith.mulf %106, %111 : vector<2x64xf32>
    %113 = arith.addf %109, %112 : vector<2x64xf32>
    %114 = math.tanh %113 : vector<2x64xf32>
    %115 = arith.mulf %108, %114 : vector<2x64xf32>
    %116 = arith.truncf %115 : vector<2x64xf32> to vector<2x64xbf16>
    %cst_33 = arith.constant dense<0.000000e+00> : vector<2x256xf32>
    %117 = tpu.matmul %116, %31, %cst_33 {dimension_numbers = #tpu.dot_dimension_numbers<[1], [0], [0], [1], [0, 0, 1, 1], [], []>} : vector<2x64xbf16>, vector<64x256xbf16>, vector<2x256xf32> -> vector<2x256xf32>
    %118 = vector.extract_strided_slice %30 {offsets = [8, 0], sizes = [2, 256], strides = [1, 1]} : vector<16x256xf32> to vector<2x256xf32>
    %119 = arith.addf %117, %118 : vector<2x256xf32>
    %120 = vector.extract_strided_slice %119 {offsets = [0, 0], sizes = [2, 192], strides = [1, 1]} : vector<2x256xf32> to vector<2x192xf32>
    %121 = arith.negf %120 : vector<2x192xf32>
    %122 = math.exp %121 : vector<2x192xf32>
    %cst_34 = arith.constant 1.000000e+00 : f32
    %123 = vector.broadcast %cst_34 : f32 to vector<2x192xf32>
    %124 = arith.addf %123, %122 : vector<2x192xf32>
    %125 = arith.divf %123, %124 : vector<2x192xf32>
    %126 = vector.extract_strided_slice %125 {offsets = [0, 0], sizes = [2, 64], strides = [1, 1]} : vector<2x192xf32> to vector<2x64xf32>
    %127 = vector.extract_strided_slice %125 {offsets = [0, 64], sizes = [2, 64], strides = [1, 1]} : vector<2x192xf32> to vector<2x64xf32>
    %128 = vector.extract_strided_slice %125 {offsets = [0, 128], sizes = [2, 64], strides = [1, 1]} : vector<2x192xf32> to vector<2x64xf32>
    %129 = arith.mulf %127, %113 : vector<2x64xf32>
    %130 = vector.extract_strided_slice %119 {offsets = [0, 192], sizes = [2, 64], strides = [1, 1]} : vector<2x256xf32> to vector<2x64xf32>
    %131 = math.tanh %130 : vector<2x64xf32>
    %132 = arith.mulf %126, %131 : vector<2x64xf32>
    %133 = arith.addf %129, %132 : vector<2x64xf32>
    %134 = math.tanh %133 : vector<2x64xf32>
    %135 = arith.mulf %128, %134 : vector<2x64xf32>
    %136 = arith.truncf %135 : vector<2x64xf32> to vector<2x64xbf16>
    %cst_35 = arith.constant dense<0.000000e+00> : vector<2x256xf32>
    %137 = tpu.matmul %136, %31, %cst_35 {dimension_numbers = #tpu.dot_dimension_numbers<[1], [0], [0], [1], [0, 0, 1, 1], [], []>} : vector<2x64xbf16>, vector<64x256xbf16>, vector<2x256xf32> -> vector<2x256xf32>
    %138 = vector.extract_strided_slice %30 {offsets = [10, 0], sizes = [2, 256], strides = [1, 1]} : vector<16x256xf32> to vector<2x256xf32>
    %139 = arith.addf %137, %138 : vector<2x256xf32>
    %140 = vector.extract_strided_slice %139 {offsets = [0, 0], sizes = [2, 192], strides = [1, 1]} : vector<2x256xf32> to vector<2x192xf32>
    %141 = arith.negf %140 : vector<2x192xf32>
    %142 = math.exp %141 : vector<2x192xf32>
    %cst_36 = arith.constant 1.000000e+00 : f32
    %143 = vector.broadcast %cst_36 : f32 to vector<2x192xf32>
    %144 = arith.addf %143, %142 : vector<2x192xf32>
    %145 = arith.divf %143, %144 : vector<2x192xf32>
    %146 = vector.extract_strided_slice %145 {offsets = [0, 0], sizes = [2, 64], strides = [1, 1]} : vector<2x192xf32> to vector<2x64xf32>
    %147 = vector.extract_strided_slice %145 {offsets = [0, 64], sizes = [2, 64], strides = [1, 1]} : vector<2x192xf32> to vector<2x64xf32>
    %148 = vector.extract_strided_slice %145 {offsets = [0, 128], sizes = [2, 64], strides = [1, 1]} : vector<2x192xf32> to vector<2x64xf32>
    %149 = arith.mulf %147, %133 : vector<2x64xf32>
    %150 = vector.extract_strided_slice %139 {offsets = [0, 192], sizes = [2, 64], strides = [1, 1]} : vector<2x256xf32> to vector<2x64xf32>
    %151 = math.tanh %150 : vector<2x64xf32>
    %152 = arith.mulf %146, %151 : vector<2x64xf32>
    %153 = arith.addf %149, %152 : vector<2x64xf32>
    %154 = math.tanh %153 : vector<2x64xf32>
    %155 = arith.mulf %148, %154 : vector<2x64xf32>
    %156 = arith.truncf %155 : vector<2x64xf32> to vector<2x64xbf16>
    %cst_37 = arith.constant dense<0.000000e+00> : vector<2x256xf32>
    %157 = tpu.matmul %156, %31, %cst_37 {dimension_numbers = #tpu.dot_dimension_numbers<[1], [0], [0], [1], [0, 0, 1, 1], [], []>} : vector<2x64xbf16>, vector<64x256xbf16>, vector<2x256xf32> -> vector<2x256xf32>
    %158 = vector.extract_strided_slice %30 {offsets = [12, 0], sizes = [2, 256], strides = [1, 1]} : vector<16x256xf32> to vector<2x256xf32>
    %159 = arith.addf %157, %158 : vector<2x256xf32>
    %160 = vector.extract_strided_slice %159 {offsets = [0, 0], sizes = [2, 192], strides = [1, 1]} : vector<2x256xf32> to vector<2x192xf32>
    %161 = arith.negf %160 : vector<2x192xf32>
    %162 = math.exp %161 : vector<2x192xf32>
    %cst_38 = arith.constant 1.000000e+00 : f32
    %163 = vector.broadcast %cst_38 : f32 to vector<2x192xf32>
    %164 = arith.addf %163, %162 : vector<2x192xf32>
    %165 = arith.divf %163, %164 : vector<2x192xf32>
    %166 = vector.extract_strided_slice %165 {offsets = [0, 0], sizes = [2, 64], strides = [1, 1]} : vector<2x192xf32> to vector<2x64xf32>
    %167 = vector.extract_strided_slice %165 {offsets = [0, 64], sizes = [2, 64], strides = [1, 1]} : vector<2x192xf32> to vector<2x64xf32>
    %168 = vector.extract_strided_slice %165 {offsets = [0, 128], sizes = [2, 64], strides = [1, 1]} : vector<2x192xf32> to vector<2x64xf32>
    %169 = arith.mulf %167, %153 : vector<2x64xf32>
    %170 = vector.extract_strided_slice %159 {offsets = [0, 192], sizes = [2, 64], strides = [1, 1]} : vector<2x256xf32> to vector<2x64xf32>
    %171 = math.tanh %170 : vector<2x64xf32>
    %172 = arith.mulf %166, %171 : vector<2x64xf32>
    %173 = arith.addf %169, %172 : vector<2x64xf32>
    %174 = math.tanh %173 : vector<2x64xf32>
    %175 = arith.mulf %168, %174 : vector<2x64xf32>
    %176 = arith.truncf %175 : vector<2x64xf32> to vector<2x64xbf16>
    %cst_39 = arith.constant dense<0.000000e+00> : vector<2x256xf32>
    %177 = tpu.matmul %176, %31, %cst_39 {dimension_numbers = #tpu.dot_dimension_numbers<[1], [0], [0], [1], [0, 0, 1, 1], [], []>} : vector<2x64xbf16>, vector<64x256xbf16>, vector<2x256xf32> -> vector<2x256xf32>
    %178 = vector.extract_strided_slice %30 {offsets = [14, 0], sizes = [2, 256], strides = [1, 1]} : vector<16x256xf32> to vector<2x256xf32>
    %179 = arith.addf %177, %178 : vector<2x256xf32>
    %180 = vector.extract_strided_slice %179 {offsets = [0, 0], sizes = [2, 192], strides = [1, 1]} : vector<2x256xf32> to vector<2x192xf32>
    %181 = arith.negf %180 : vector<2x192xf32>
    %182 = math.exp %181 : vector<2x192xf32>
    %cst_40 = arith.constant 1.000000e+00 : f32
    %183 = vector.broadcast %cst_40 : f32 to vector<2x192xf32>
    %184 = arith.addf %183, %182 : vector<2x192xf32>
    %185 = arith.divf %183, %184 : vector<2x192xf32>
    %186 = vector.extract_strided_slice %185 {offsets = [0, 0], sizes = [2, 64], strides = [1, 1]} : vector<2x192xf32> to vector<2x64xf32>
    %187 = vector.extract_strided_slice %185 {offsets = [0, 64], sizes = [2, 64], strides = [1, 1]} : vector<2x192xf32> to vector<2x64xf32>
    %188 = vector.extract_strided_slice %185 {offsets = [0, 128], sizes = [2, 64], strides = [1, 1]} : vector<2x192xf32> to vector<2x64xf32>
    %189 = arith.mulf %187, %173 : vector<2x64xf32>
    %190 = vector.extract_strided_slice %179 {offsets = [0, 192], sizes = [2, 64], strides = [1, 1]} : vector<2x256xf32> to vector<2x64xf32>
    %191 = math.tanh %190 : vector<2x64xf32>
    %192 = arith.mulf %186, %191 : vector<2x64xf32>
    %193 = arith.addf %189, %192 : vector<2x64xf32>
    %194 = math.tanh %193 : vector<2x64xf32>
    %195 = arith.mulf %188, %194 : vector<2x64xf32>
    %196 = vector.extract_strided_slice %55 {offsets = [0, 0], sizes = [2, 32], strides = [1, 1]} : vector<2x64xf32> to vector<2x32xf32>
    %197 = vector.extract_strided_slice %195 {offsets = [0, 32], sizes = [2, 32], strides = [1, 1]} : vector<2x64xf32> to vector<2x32xf32>
    %198 = tpu.concatenate %196, %197 in 1 : vector<2x32xf32>, vector<2x32xf32> -> vector<2x64xf32>
    %199 = vector.extract_strided_slice %75 {offsets = [0, 0], sizes = [2, 32], strides = [1, 1]} : vector<2x64xf32> to vector<2x32xf32>
    %200 = vector.extract_strided_slice %175 {offsets = [0, 32], sizes = [2, 32], strides = [1, 1]} : vector<2x64xf32> to vector<2x32xf32>
    %201 = tpu.concatenate %199, %200 in 1 : vector<2x32xf32>, vector<2x32xf32> -> vector<2x64xf32>
    %202 = vector.extract_strided_slice %95 {offsets = [0, 0], sizes = [2, 32], strides = [1, 1]} : vector<2x64xf32> to vector<2x32xf32>
    %203 = vector.extract_strided_slice %155 {offsets = [0, 32], sizes = [2, 32], strides = [1, 1]} : vector<2x64xf32> to vector<2x32xf32>
    %204 = tpu.concatenate %202, %203 in 1 : vector<2x32xf32>, vector<2x32xf32> -> vector<2x64xf32>
    %205 = vector.extract_strided_slice %115 {offsets = [0, 0], sizes = [2, 32], strides = [1, 1]} : vector<2x64xf32> to vector<2x32xf32>
    %206 = vector.extract_strided_slice %135 {offsets = [0, 32], sizes = [2, 32], strides = [1, 1]} : vector<2x64xf32> to vector<2x32xf32>
    %207 = tpu.concatenate %205, %206 in 1 : vector<2x32xf32>, vector<2x32xf32> -> vector<2x64xf32>
    %208 = vector.extract_strided_slice %135 {offsets = [0, 0], sizes = [2, 32], strides = [1, 1]} : vector<2x64xf32> to vector<2x32xf32>
    %209 = vector.extract_strided_slice %115 {offsets = [0, 32], sizes = [2, 32], strides = [1, 1]} : vector<2x64xf32> to vector<2x32xf32>
    %210 = tpu.concatenate %208, %209 in 1 : vector<2x32xf32>, vector<2x32xf32> -> vector<2x64xf32>
    %211 = vector.extract_strided_slice %155 {offsets = [0, 0], sizes = [2, 32], strides = [1, 1]} : vector<2x64xf32> to vector<2x32xf32>
    %212 = vector.extract_strided_slice %95 {offsets = [0, 32], sizes = [2, 32], strides = [1, 1]} : vector<2x64xf32> to vector<2x32xf32>
    %213 = tpu.concatenate %211, %212 in 1 : vector<2x32xf32>, vector<2x32xf32> -> vector<2x64xf32>
    %214 = vector.extract_strided_slice %175 {offsets = [0, 0], sizes = [2, 32], strides = [1, 1]} : vector<2x64xf32> to vector<2x32xf32>
    %215 = vector.extract_strided_slice %75 {offsets = [0, 32], sizes = [2, 32], strides = [1, 1]} : vector<2x64xf32> to vector<2x32xf32>
    %216 = tpu.concatenate %214, %215 in 1 : vector<2x32xf32>, vector<2x32xf32> -> vector<2x64xf32>
    %217 = vector.extract_strided_slice %195 {offsets = [0, 0], sizes = [2, 32], strides = [1, 1]} : vector<2x64xf32> to vector<2x32xf32>
    %218 = vector.extract_strided_slice %55 {offsets = [0, 32], sizes = [2, 32], strides = [1, 1]} : vector<2x64xf32> to vector<2x32xf32>
    %219 = tpu.concatenate %217, %218 in 1 : vector<2x32xf32>, vector<2x32xf32> -> vector<2x64xf32>
    %220 = tpu.concatenate %198, %201, %204, %207, %210, %213, %216, %219 in 0 : vector<2x64xf32>, vector<2x64xf32>, vector<2x64xf32>, vector<2x64xf32>, vector<2x64xf32>, vector<2x64xf32>, vector<2x64xf32>, vector<2x64xf32> -> vector<16x64xf32>
    %221 = arith.truncf %220 : vector<16x64xf32> to vector<16x64xbf16>
    %c0_41 = arith.constant 0 : index
    %c0_42 = arith.constant 0 : index
    %222 = vector.load %arg6[%c0_41, %c0_42] : memref<64x384xbf16, #tpu.memory_space<vmem>>, vector<64x384xbf16>
    %cst_43 = arith.constant dense<0.000000e+00> : vector<16x384xf32>
    %223 = tpu.matmul %221, %222, %cst_43 {dimension_numbers = #tpu.dot_dimension_numbers<[1], [0], [0], [1], [0, 0, 1, 1], [], []>} : vector<16x64xbf16>, vector<64x384xbf16>, vector<16x384xf32> -> vector<16x384xf32>
    %224 = vector.extract_strided_slice %223 {offsets = [0, 0], sizes = [16, 192], strides = [1, 1]} : vector<16x384xf32> to vector<16x192xf32>
    %225 = vector.broadcast %4 : vector<1x192xf32> to vector<16x192xf32>
    %226 = arith.addf %224, %225 : vector<16x192xf32>
    %227 = vector.extract_strided_slice %223 {offsets = [0, 192], sizes = [16, 192], strides = [1, 1]} : vector<16x384xf32> to vector<16x192xf32>
    %228 = vector.extract_strided_slice %227 {offsets = [14, 0], sizes = [2, 192], strides = [1, 1]} : vector<16x192xf32> to vector<2x192xf32>
    %229 = vector.extract_strided_slice %227 {offsets = [12, 0], sizes = [2, 192], strides = [1, 1]} : vector<16x192xf32> to vector<2x192xf32>
    %230 = vector.extract_strided_slice %227 {offsets = [10, 0], sizes = [2, 192], strides = [1, 1]} : vector<16x192xf32> to vector<2x192xf32>
    %231 = vector.extract_strided_slice %227 {offsets = [8, 0], sizes = [2, 192], strides = [1, 1]} : vector<16x192xf32> to vector<2x192xf32>
    %232 = vector.extract_strided_slice %227 {offsets = [6, 0], sizes = [2, 192], strides = [1, 1]} : vector<16x192xf32> to vector<2x192xf32>
    %233 = vector.extract_strided_slice %227 {offsets = [4, 0], sizes = [2, 192], strides = [1, 1]} : vector<16x192xf32> to vector<2x192xf32>
    %234 = vector.extract_strided_slice %227 {offsets = [2, 0], sizes = [2, 192], strides = [1, 1]} : vector<16x192xf32> to vector<2x192xf32>
    %235 = vector.extract_strided_slice %227 {offsets = [0, 0], sizes = [2, 192], strides = [1, 1]} : vector<16x192xf32> to vector<2x192xf32>
    %236 = tpu.concatenate %228, %229, %230, %231, %232, %233, %234, %235 in 0 : vector<2x192xf32>, vector<2x192xf32>, vector<2x192xf32>, vector<2x192xf32>, vector<2x192xf32>, vector<2x192xf32>, vector<2x192xf32>, vector<2x192xf32> -> vector<16x192xf32>
    %237 = arith.addf %226, %236 : vector<16x192xf32>
    %c0_44 = arith.constant 0 : index
    %c0_45 = arith.constant 0 : index
    %238 = vector.load %arg7[%c0_44, %c0_45] : memref<64x192xbf16, #tpu.memory_space<vmem>>, vector<64x192xbf16>
    %239 = arith.truncf %195 : vector<2x64xf32> to vector<2x64xbf16>
    %cst_46 = arith.constant dense<0.000000e+00> : vector<2x192xf32>
    %240 = tpu.matmul %239, %238, %cst_46 {dimension_numbers = #tpu.dot_dimension_numbers<[1], [0], [0], [1], [0, 0, 1, 1], [], []>} : vector<2x64xbf16>, vector<64x192xbf16>, vector<2x192xf32> -> vector<2x192xf32>
    %241 = vector.extract_strided_slice %237 {offsets = [0, 0], sizes = [2, 192], strides = [1, 1]} : vector<16x192xf32> to vector<2x192xf32>
    %242 = vector.extract_strided_slice %241 {offsets = [0, 0], sizes = [2, 128], strides = [1, 1]} : vector<2x192xf32> to vector<2x128xf32>
    %243 = vector.extract_strided_slice %240 {offsets = [0, 0], sizes = [2, 128], strides = [1, 1]} : vector<2x192xf32> to vector<2x128xf32>
    %244 = arith.addf %242, %243 : vector<2x128xf32>
    %245 = arith.negf %244 : vector<2x128xf32>
    %246 = math.exp %245 : vector<2x128xf32>
    %cst_47 = arith.constant 1.000000e+00 : f32
    %247 = vector.broadcast %cst_47 : f32 to vector<2x128xf32>
    %248 = arith.addf %247, %246 : vector<2x128xf32>
    %249 = arith.divf %247, %248 : vector<2x128xf32>
    %250 = vector.extract_strided_slice %249 {offsets = [0, 0], sizes = [2, 64], strides = [1, 1]} : vector<2x128xf32> to vector<2x64xf32>
    %251 = vector.extract_strided_slice %249 {offsets = [0, 64], sizes = [2, 64], strides = [1, 1]} : vector<2x128xf32> to vector<2x64xf32>
    %252 = vector.extract_strided_slice %241 {offsets = [0, 128], sizes = [2, 64], strides = [1, 1]} : vector<2x192xf32> to vector<2x64xf32>
    %253 = vector.extract_strided_slice %240 {offsets = [0, 128], sizes = [2, 64], strides = [1, 1]} : vector<2x192xf32> to vector<2x64xf32>
    %254 = vector.broadcast %5 : vector<1x64xf32> to vector<2x64xf32>
    %255 = arith.addf %253, %254 : vector<2x64xf32>
    %256 = arith.mulf %250, %255 : vector<2x64xf32>
    %257 = arith.addf %252, %256 : vector<2x64xf32>
    %258 = math.tanh %257 : vector<2x64xf32>
    %cst_48 = arith.constant 1.000000e+00 : f32
    %259 = vector.broadcast %cst_48 : f32 to vector<2x64xf32>
    %260 = arith.subf %259, %251 : vector<2x64xf32>
    %261 = arith.mulf %260, %258 : vector<2x64xf32>
    %262 = arith.mulf %251, %195 : vector<2x64xf32>
    %263 = arith.addf %261, %262 : vector<2x64xf32>
    %264 = arith.truncf %263 : vector<2x64xf32> to vector<2x64xbf16>
    %cst_49 = arith.constant dense<0.000000e+00> : vector<2x192xf32>
    %265 = tpu.matmul %264, %238, %cst_49 {dimension_numbers = #tpu.dot_dimension_numbers<[1], [0], [0], [1], [0, 0, 1, 1], [], []>} : vector<2x64xbf16>, vector<64x192xbf16>, vector<2x192xf32> -> vector<2x192xf32>
    %266 = vector.extract_strided_slice %237 {offsets = [2, 0], sizes = [2, 192], strides = [1, 1]} : vector<16x192xf32> to vector<2x192xf32>
    %267 = vector.extract_strided_slice %266 {offsets = [0, 0], sizes = [2, 128], strides = [1, 1]} : vector<2x192xf32> to vector<2x128xf32>
    %268 = vector.extract_strided_slice %265 {offsets = [0, 0], sizes = [2, 128], strides = [1, 1]} : vector<2x192xf32> to vector<2x128xf32>
    %269 = arith.addf %267, %268 : vector<2x128xf32>
    %270 = arith.negf %269 : vector<2x128xf32>
    %271 = math.exp %270 : vector<2x128xf32>
    %cst_50 = arith.constant 1.000000e+00 : f32
    %272 = vector.broadcast %cst_50 : f32 to vector<2x128xf32>
    %273 = arith.addf %272, %271 : vector<2x128xf32>
    %274 = arith.divf %272, %273 : vector<2x128xf32>
    %275 = vector.extract_strided_slice %274 {offsets = [0, 0], sizes = [2, 64], strides = [1, 1]} : vector<2x128xf32> to vector<2x64xf32>
    %276 = vector.extract_strided_slice %274 {offsets = [0, 64], sizes = [2, 64], strides = [1, 1]} : vector<2x128xf32> to vector<2x64xf32>
    %277 = vector.extract_strided_slice %266 {offsets = [0, 128], sizes = [2, 64], strides = [1, 1]} : vector<2x192xf32> to vector<2x64xf32>
    %278 = vector.extract_strided_slice %265 {offsets = [0, 128], sizes = [2, 64], strides = [1, 1]} : vector<2x192xf32> to vector<2x64xf32>
    %279 = vector.broadcast %5 : vector<1x64xf32> to vector<2x64xf32>
    %280 = arith.addf %278, %279 : vector<2x64xf32>
    %281 = arith.mulf %275, %280 : vector<2x64xf32>
    %282 = arith.addf %277, %281 : vector<2x64xf32>
    %283 = math.tanh %282 : vector<2x64xf32>
    %cst_51 = arith.constant 1.000000e+00 : f32
    %284 = vector.broadcast %cst_51 : f32 to vector<2x64xf32>
    %285 = arith.subf %284, %276 : vector<2x64xf32>
    %286 = arith.mulf %285, %283 : vector<2x64xf32>
    %287 = arith.mulf %276, %263 : vector<2x64xf32>
    %288 = arith.addf %286, %287 : vector<2x64xf32>
    %289 = arith.truncf %288 : vector<2x64xf32> to vector<2x64xbf16>
    %cst_52 = arith.constant dense<0.000000e+00> : vector<2x192xf32>
    %290 = tpu.matmul %289, %238, %cst_52 {dimension_numbers = #tpu.dot_dimension_numbers<[1], [0], [0], [1], [0, 0, 1, 1], [], []>} : vector<2x64xbf16>, vector<64x192xbf16>, vector<2x192xf32> -> vector<2x192xf32>
    %291 = vector.extract_strided_slice %237 {offsets = [4, 0], sizes = [2, 192], strides = [1, 1]} : vector<16x192xf32> to vector<2x192xf32>
    %292 = vector.extract_strided_slice %291 {offsets = [0, 0], sizes = [2, 128], strides = [1, 1]} : vector<2x192xf32> to vector<2x128xf32>
    %293 = vector.extract_strided_slice %290 {offsets = [0, 0], sizes = [2, 128], strides = [1, 1]} : vector<2x192xf32> to vector<2x128xf32>
    %294 = arith.addf %292, %293 : vector<2x128xf32>
    %295 = arith.negf %294 : vector<2x128xf32>
    %296 = math.exp %295 : vector<2x128xf32>
    %cst_53 = arith.constant 1.000000e+00 : f32
    %297 = vector.broadcast %cst_53 : f32 to vector<2x128xf32>
    %298 = arith.addf %297, %296 : vector<2x128xf32>
    %299 = arith.divf %297, %298 : vector<2x128xf32>
    %300 = vector.extract_strided_slice %299 {offsets = [0, 0], sizes = [2, 64], strides = [1, 1]} : vector<2x128xf32> to vector<2x64xf32>
    %301 = vector.extract_strided_slice %299 {offsets = [0, 64], sizes = [2, 64], strides = [1, 1]} : vector<2x128xf32> to vector<2x64xf32>
    %302 = vector.extract_strided_slice %291 {offsets = [0, 128], sizes = [2, 64], strides = [1, 1]} : vector<2x192xf32> to vector<2x64xf32>
    %303 = vector.extract_strided_slice %290 {offsets = [0, 128], sizes = [2, 64], strides = [1, 1]} : vector<2x192xf32> to vector<2x64xf32>
    %304 = vector.broadcast %5 : vector<1x64xf32> to vector<2x64xf32>
    %305 = arith.addf %303, %304 : vector<2x64xf32>
    %306 = arith.mulf %300, %305 : vector<2x64xf32>
    %307 = arith.addf %302, %306 : vector<2x64xf32>
    %308 = math.tanh %307 : vector<2x64xf32>
    %cst_54 = arith.constant 1.000000e+00 : f32
    %309 = vector.broadcast %cst_54 : f32 to vector<2x64xf32>
    %310 = arith.subf %309, %301 : vector<2x64xf32>
    %311 = arith.mulf %310, %308 : vector<2x64xf32>
    %312 = arith.mulf %301, %288 : vector<2x64xf32>
    %313 = arith.addf %311, %312 : vector<2x64xf32>
    %314 = arith.truncf %313 : vector<2x64xf32> to vector<2x64xbf16>
    %cst_55 = arith.constant dense<0.000000e+00> : vector<2x192xf32>
    %315 = tpu.matmul %314, %238, %cst_55 {dimension_numbers = #tpu.dot_dimension_numbers<[1], [0], [0], [1], [0, 0, 1, 1], [], []>} : vector<2x64xbf16>, vector<64x192xbf16>, vector<2x192xf32> -> vector<2x192xf32>
    %316 = vector.extract_strided_slice %237 {offsets = [6, 0], sizes = [2, 192], strides = [1, 1]} : vector<16x192xf32> to vector<2x192xf32>
    %317 = vector.extract_strided_slice %316 {offsets = [0, 0], sizes = [2, 128], strides = [1, 1]} : vector<2x192xf32> to vector<2x128xf32>
    %318 = vector.extract_strided_slice %315 {offsets = [0, 0], sizes = [2, 128], strides = [1, 1]} : vector<2x192xf32> to vector<2x128xf32>
    %319 = arith.addf %317, %318 : vector<2x128xf32>
    %320 = arith.negf %319 : vector<2x128xf32>
    %321 = math.exp %320 : vector<2x128xf32>
    %cst_56 = arith.constant 1.000000e+00 : f32
    %322 = vector.broadcast %cst_56 : f32 to vector<2x128xf32>
    %323 = arith.addf %322, %321 : vector<2x128xf32>
    %324 = arith.divf %322, %323 : vector<2x128xf32>
    %325 = vector.extract_strided_slice %324 {offsets = [0, 0], sizes = [2, 64], strides = [1, 1]} : vector<2x128xf32> to vector<2x64xf32>
    %326 = vector.extract_strided_slice %324 {offsets = [0, 64], sizes = [2, 64], strides = [1, 1]} : vector<2x128xf32> to vector<2x64xf32>
    %327 = vector.extract_strided_slice %316 {offsets = [0, 128], sizes = [2, 64], strides = [1, 1]} : vector<2x192xf32> to vector<2x64xf32>
    %328 = vector.extract_strided_slice %315 {offsets = [0, 128], sizes = [2, 64], strides = [1, 1]} : vector<2x192xf32> to vector<2x64xf32>
    %329 = vector.broadcast %5 : vector<1x64xf32> to vector<2x64xf32>
    %330 = arith.addf %328, %329 : vector<2x64xf32>
    %331 = arith.mulf %325, %330 : vector<2x64xf32>
    %332 = arith.addf %327, %331 : vector<2x64xf32>
    %333 = math.tanh %332 : vector<2x64xf32>
    %cst_57 = arith.constant 1.000000e+00 : f32
    %334 = vector.broadcast %cst_57 : f32 to vector<2x64xf32>
    %335 = arith.subf %334, %326 : vector<2x64xf32>
    %336 = arith.mulf %335, %333 : vector<2x64xf32>
    %337 = arith.mulf %326, %313 : vector<2x64xf32>
    %338 = arith.addf %336, %337 : vector<2x64xf32>
    %339 = arith.truncf %338 : vector<2x64xf32> to vector<2x64xbf16>
    %cst_58 = arith.constant dense<0.000000e+00> : vector<2x192xf32>
    %340 = tpu.matmul %339, %238, %cst_58 {dimension_numbers = #tpu.dot_dimension_numbers<[1], [0], [0], [1], [0, 0, 1, 1], [], []>} : vector<2x64xbf16>, vector<64x192xbf16>, vector<2x192xf32> -> vector<2x192xf32>
    %341 = vector.extract_strided_slice %237 {offsets = [8, 0], sizes = [2, 192], strides = [1, 1]} : vector<16x192xf32> to vector<2x192xf32>
    %342 = vector.extract_strided_slice %341 {offsets = [0, 0], sizes = [2, 128], strides = [1, 1]} : vector<2x192xf32> to vector<2x128xf32>
    %343 = vector.extract_strided_slice %340 {offsets = [0, 0], sizes = [2, 128], strides = [1, 1]} : vector<2x192xf32> to vector<2x128xf32>
    %344 = arith.addf %342, %343 : vector<2x128xf32>
    %345 = arith.negf %344 : vector<2x128xf32>
    %346 = math.exp %345 : vector<2x128xf32>
    %cst_59 = arith.constant 1.000000e+00 : f32
    %347 = vector.broadcast %cst_59 : f32 to vector<2x128xf32>
    %348 = arith.addf %347, %346 : vector<2x128xf32>
    %349 = arith.divf %347, %348 : vector<2x128xf32>
    %350 = vector.extract_strided_slice %349 {offsets = [0, 0], sizes = [2, 64], strides = [1, 1]} : vector<2x128xf32> to vector<2x64xf32>
    %351 = vector.extract_strided_slice %349 {offsets = [0, 64], sizes = [2, 64], strides = [1, 1]} : vector<2x128xf32> to vector<2x64xf32>
    %352 = vector.extract_strided_slice %341 {offsets = [0, 128], sizes = [2, 64], strides = [1, 1]} : vector<2x192xf32> to vector<2x64xf32>
    %353 = vector.extract_strided_slice %340 {offsets = [0, 128], sizes = [2, 64], strides = [1, 1]} : vector<2x192xf32> to vector<2x64xf32>
    %354 = vector.broadcast %5 : vector<1x64xf32> to vector<2x64xf32>
    %355 = arith.addf %353, %354 : vector<2x64xf32>
    %356 = arith.mulf %350, %355 : vector<2x64xf32>
    %357 = arith.addf %352, %356 : vector<2x64xf32>
    %358 = math.tanh %357 : vector<2x64xf32>
    %cst_60 = arith.constant 1.000000e+00 : f32
    %359 = vector.broadcast %cst_60 : f32 to vector<2x64xf32>
    %360 = arith.subf %359, %351 : vector<2x64xf32>
    %361 = arith.mulf %360, %358 : vector<2x64xf32>
    %362 = arith.mulf %351, %338 : vector<2x64xf32>
    %363 = arith.addf %361, %362 : vector<2x64xf32>
    %364 = arith.truncf %363 : vector<2x64xf32> to vector<2x64xbf16>
    %cst_61 = arith.constant dense<0.000000e+00> : vector<2x192xf32>
    %365 = tpu.matmul %364, %238, %cst_61 {dimension_numbers = #tpu.dot_dimension_numbers<[1], [0], [0], [1], [0, 0, 1, 1], [], []>} : vector<2x64xbf16>, vector<64x192xbf16>, vector<2x192xf32> -> vector<2x192xf32>
    %366 = vector.extract_strided_slice %237 {offsets = [10, 0], sizes = [2, 192], strides = [1, 1]} : vector<16x192xf32> to vector<2x192xf32>
    %367 = vector.extract_strided_slice %366 {offsets = [0, 0], sizes = [2, 128], strides = [1, 1]} : vector<2x192xf32> to vector<2x128xf32>
    %368 = vector.extract_strided_slice %365 {offsets = [0, 0], sizes = [2, 128], strides = [1, 1]} : vector<2x192xf32> to vector<2x128xf32>
    %369 = arith.addf %367, %368 : vector<2x128xf32>
    %370 = arith.negf %369 : vector<2x128xf32>
    %371 = math.exp %370 : vector<2x128xf32>
    %cst_62 = arith.constant 1.000000e+00 : f32
    %372 = vector.broadcast %cst_62 : f32 to vector<2x128xf32>
    %373 = arith.addf %372, %371 : vector<2x128xf32>
    %374 = arith.divf %372, %373 : vector<2x128xf32>
    %375 = vector.extract_strided_slice %374 {offsets = [0, 0], sizes = [2, 64], strides = [1, 1]} : vector<2x128xf32> to vector<2x64xf32>
    %376 = vector.extract_strided_slice %374 {offsets = [0, 64], sizes = [2, 64], strides = [1, 1]} : vector<2x128xf32> to vector<2x64xf32>
    %377 = vector.extract_strided_slice %366 {offsets = [0, 128], sizes = [2, 64], strides = [1, 1]} : vector<2x192xf32> to vector<2x64xf32>
    %378 = vector.extract_strided_slice %365 {offsets = [0, 128], sizes = [2, 64], strides = [1, 1]} : vector<2x192xf32> to vector<2x64xf32>
    %379 = vector.broadcast %5 : vector<1x64xf32> to vector<2x64xf32>
    %380 = arith.addf %378, %379 : vector<2x64xf32>
    %381 = arith.mulf %375, %380 : vector<2x64xf32>
    %382 = arith.addf %377, %381 : vector<2x64xf32>
    %383 = math.tanh %382 : vector<2x64xf32>
    %cst_63 = arith.constant 1.000000e+00 : f32
    %384 = vector.broadcast %cst_63 : f32 to vector<2x64xf32>
    %385 = arith.subf %384, %376 : vector<2x64xf32>
    %386 = arith.mulf %385, %383 : vector<2x64xf32>
    %387 = arith.mulf %376, %363 : vector<2x64xf32>
    %388 = arith.addf %386, %387 : vector<2x64xf32>
    %389 = arith.truncf %388 : vector<2x64xf32> to vector<2x64xbf16>
    %cst_64 = arith.constant dense<0.000000e+00> : vector<2x192xf32>
    %390 = tpu.matmul %389, %238, %cst_64 {dimension_numbers = #tpu.dot_dimension_numbers<[1], [0], [0], [1], [0, 0, 1, 1], [], []>} : vector<2x64xbf16>, vector<64x192xbf16>, vector<2x192xf32> -> vector<2x192xf32>
    %391 = vector.extract_strided_slice %237 {offsets = [12, 0], sizes = [2, 192], strides = [1, 1]} : vector<16x192xf32> to vector<2x192xf32>
    %392 = vector.extract_strided_slice %391 {offsets = [0, 0], sizes = [2, 128], strides = [1, 1]} : vector<2x192xf32> to vector<2x128xf32>
    %393 = vector.extract_strided_slice %390 {offsets = [0, 0], sizes = [2, 128], strides = [1, 1]} : vector<2x192xf32> to vector<2x128xf32>
    %394 = arith.addf %392, %393 : vector<2x128xf32>
    %395 = arith.negf %394 : vector<2x128xf32>
    %396 = math.exp %395 : vector<2x128xf32>
    %cst_65 = arith.constant 1.000000e+00 : f32
    %397 = vector.broadcast %cst_65 : f32 to vector<2x128xf32>
    %398 = arith.addf %397, %396 : vector<2x128xf32>
    %399 = arith.divf %397, %398 : vector<2x128xf32>
    %400 = vector.extract_strided_slice %399 {offsets = [0, 0], sizes = [2, 64], strides = [1, 1]} : vector<2x128xf32> to vector<2x64xf32>
    %401 = vector.extract_strided_slice %399 {offsets = [0, 64], sizes = [2, 64], strides = [1, 1]} : vector<2x128xf32> to vector<2x64xf32>
    %402 = vector.extract_strided_slice %391 {offsets = [0, 128], sizes = [2, 64], strides = [1, 1]} : vector<2x192xf32> to vector<2x64xf32>
    %403 = vector.extract_strided_slice %390 {offsets = [0, 128], sizes = [2, 64], strides = [1, 1]} : vector<2x192xf32> to vector<2x64xf32>
    %404 = vector.broadcast %5 : vector<1x64xf32> to vector<2x64xf32>
    %405 = arith.addf %403, %404 : vector<2x64xf32>
    %406 = arith.mulf %400, %405 : vector<2x64xf32>
    %407 = arith.addf %402, %406 : vector<2x64xf32>
    %408 = math.tanh %407 : vector<2x64xf32>
    %cst_66 = arith.constant 1.000000e+00 : f32
    %409 = vector.broadcast %cst_66 : f32 to vector<2x64xf32>
    %410 = arith.subf %409, %401 : vector<2x64xf32>
    %411 = arith.mulf %410, %408 : vector<2x64xf32>
    %412 = arith.mulf %401, %388 : vector<2x64xf32>
    %413 = arith.addf %411, %412 : vector<2x64xf32>
    %414 = arith.truncf %413 : vector<2x64xf32> to vector<2x64xbf16>
    %cst_67 = arith.constant dense<0.000000e+00> : vector<2x192xf32>
    %415 = tpu.matmul %414, %238, %cst_67 {dimension_numbers = #tpu.dot_dimension_numbers<[1], [0], [0], [1], [0, 0, 1, 1], [], []>} : vector<2x64xbf16>, vector<64x192xbf16>, vector<2x192xf32> -> vector<2x192xf32>
    %416 = vector.extract_strided_slice %237 {offsets = [14, 0], sizes = [2, 192], strides = [1, 1]} : vector<16x192xf32> to vector<2x192xf32>
    %417 = vector.extract_strided_slice %416 {offsets = [0, 0], sizes = [2, 128], strides = [1, 1]} : vector<2x192xf32> to vector<2x128xf32>
    %418 = vector.extract_strided_slice %415 {offsets = [0, 0], sizes = [2, 128], strides = [1, 1]} : vector<2x192xf32> to vector<2x128xf32>
    %419 = arith.addf %417, %418 : vector<2x128xf32>
    %420 = arith.negf %419 : vector<2x128xf32>
    %421 = math.exp %420 : vector<2x128xf32>
    %cst_68 = arith.constant 1.000000e+00 : f32
    %422 = vector.broadcast %cst_68 : f32 to vector<2x128xf32>
    %423 = arith.addf %422, %421 : vector<2x128xf32>
    %424 = arith.divf %422, %423 : vector<2x128xf32>
    %425 = vector.extract_strided_slice %424 {offsets = [0, 0], sizes = [2, 64], strides = [1, 1]} : vector<2x128xf32> to vector<2x64xf32>
    %426 = vector.extract_strided_slice %424 {offsets = [0, 64], sizes = [2, 64], strides = [1, 1]} : vector<2x128xf32> to vector<2x64xf32>
    %427 = vector.extract_strided_slice %416 {offsets = [0, 128], sizes = [2, 64], strides = [1, 1]} : vector<2x192xf32> to vector<2x64xf32>
    %428 = vector.extract_strided_slice %415 {offsets = [0, 128], sizes = [2, 64], strides = [1, 1]} : vector<2x192xf32> to vector<2x64xf32>
    %429 = vector.broadcast %5 : vector<1x64xf32> to vector<2x64xf32>
    %430 = arith.addf %428, %429 : vector<2x64xf32>
    %431 = arith.mulf %425, %430 : vector<2x64xf32>
    %432 = arith.addf %427, %431 : vector<2x64xf32>
    %433 = math.tanh %432 : vector<2x64xf32>
    %cst_69 = arith.constant 1.000000e+00 : f32
    %434 = vector.broadcast %cst_69 : f32 to vector<2x64xf32>
    %435 = arith.subf %434, %426 : vector<2x64xf32>
    %436 = arith.mulf %435, %433 : vector<2x64xf32>
    %437 = arith.mulf %426, %413 : vector<2x64xf32>
    %438 = arith.addf %436, %437 : vector<2x64xf32>
    %c0_70 = arith.constant 0 : index
    %c0_71 = arith.constant 0 : index
    %439 = vector.load %arg9[%c0_70, %c0_71] : memref<32x32xf32, #tpu.memory_space<vmem>>, vector<32x32xf32>
    %cst_72 = arith.constant dense<0.000000e+00> : vector<16x32xf32>
    %440 = tpu.matmul %1, %439, %cst_72 {dimension_numbers = #tpu.dot_dimension_numbers<[1], [0], [0], [1], [0, 0, 1, 1], [], []>} : vector<16x32xf32>, vector<32x32xf32>, vector<16x32xf32> -> vector<16x32xf32>
    %441 = vector.broadcast %6 : vector<1x32xf32> to vector<16x32xf32>
    %442 = arith.addf %440, %441 : vector<16x32xf32>
    %443 = math.tanh %442 : vector<16x32xf32>
    %444 = vector.extract_strided_slice %263 {offsets = [0, 0], sizes = [1, 32], strides = [1, 1]} : vector<2x64xf32> to vector<1x32xf32>
    %445 = vector.extract_strided_slice %438 {offsets = [0, 32], sizes = [1, 32], strides = [1, 1]} : vector<2x64xf32> to vector<1x32xf32>
    %446 = vector.extract_strided_slice %443 {offsets = [0, 0], sizes = [1, 32], strides = [1, 1]} : vector<16x32xf32> to vector<1x32xf32>
    %447 = tpu.concatenate %444, %445, %446 in 1 : vector<1x32xf32>, vector<1x32xf32>, vector<1x32xf32> -> vector<1x96xf32>
    %448 = vector.extract_strided_slice %288 {offsets = [0, 0], sizes = [1, 32], strides = [1, 1]} : vector<2x64xf32> to vector<1x32xf32>
    %449 = vector.extract_strided_slice %413 {offsets = [0, 32], sizes = [1, 32], strides = [1, 1]} : vector<2x64xf32> to vector<1x32xf32>
    %450 = vector.extract_strided_slice %443 {offsets = [2, 0], sizes = [1, 32], strides = [1, 1]} : vector<16x32xf32> to vector<1x32xf32>
    %451 = tpu.concatenate %448, %449, %450 in 1 : vector<1x32xf32>, vector<1x32xf32>, vector<1x32xf32> -> vector<1x96xf32>
    %452 = vector.extract_strided_slice %313 {offsets = [0, 0], sizes = [1, 32], strides = [1, 1]} : vector<2x64xf32> to vector<1x32xf32>
    %453 = vector.extract_strided_slice %388 {offsets = [0, 32], sizes = [1, 32], strides = [1, 1]} : vector<2x64xf32> to vector<1x32xf32>
    %454 = vector.extract_strided_slice %443 {offsets = [4, 0], sizes = [1, 32], strides = [1, 1]} : vector<16x32xf32> to vector<1x32xf32>
    %455 = tpu.concatenate %452, %453, %454 in 1 : vector<1x32xf32>, vector<1x32xf32>, vector<1x32xf32> -> vector<1x96xf32>
    %456 = vector.extract_strided_slice %338 {offsets = [0, 0], sizes = [1, 32], strides = [1, 1]} : vector<2x64xf32> to vector<1x32xf32>
    %457 = vector.extract_strided_slice %363 {offsets = [0, 32], sizes = [1, 32], strides = [1, 1]} : vector<2x64xf32> to vector<1x32xf32>
    %458 = vector.extract_strided_slice %443 {offsets = [6, 0], sizes = [1, 32], strides = [1, 1]} : vector<16x32xf32> to vector<1x32xf32>
    %459 = tpu.concatenate %456, %457, %458 in 1 : vector<1x32xf32>, vector<1x32xf32>, vector<1x32xf32> -> vector<1x96xf32>
    %460 = vector.extract_strided_slice %363 {offsets = [0, 0], sizes = [1, 32], strides = [1, 1]} : vector<2x64xf32> to vector<1x32xf32>
    %461 = vector.extract_strided_slice %338 {offsets = [0, 32], sizes = [1, 32], strides = [1, 1]} : vector<2x64xf32> to vector<1x32xf32>
    %462 = vector.extract_strided_slice %443 {offsets = [8, 0], sizes = [1, 32], strides = [1, 1]} : vector<16x32xf32> to vector<1x32xf32>
    %463 = tpu.concatenate %460, %461, %462 in 1 : vector<1x32xf32>, vector<1x32xf32>, vector<1x32xf32> -> vector<1x96xf32>
    %464 = vector.extract_strided_slice %388 {offsets = [0, 0], sizes = [1, 32], strides = [1, 1]} : vector<2x64xf32> to vector<1x32xf32>
    %465 = vector.extract_strided_slice %313 {offsets = [0, 32], sizes = [1, 32], strides = [1, 1]} : vector<2x64xf32> to vector<1x32xf32>
    %466 = vector.extract_strided_slice %443 {offsets = [10, 0], sizes = [1, 32], strides = [1, 1]} : vector<16x32xf32> to vector<1x32xf32>
    %467 = tpu.concatenate %464, %465, %466 in 1 : vector<1x32xf32>, vector<1x32xf32>, vector<1x32xf32> -> vector<1x96xf32>
    %468 = vector.extract_strided_slice %413 {offsets = [0, 0], sizes = [1, 32], strides = [1, 1]} : vector<2x64xf32> to vector<1x32xf32>
    %469 = vector.extract_strided_slice %288 {offsets = [0, 32], sizes = [1, 32], strides = [1, 1]} : vector<2x64xf32> to vector<1x32xf32>
    %470 = vector.extract_strided_slice %443 {offsets = [12, 0], sizes = [1, 32], strides = [1, 1]} : vector<16x32xf32> to vector<1x32xf32>
    %471 = tpu.concatenate %468, %469, %470 in 1 : vector<1x32xf32>, vector<1x32xf32>, vector<1x32xf32> -> vector<1x96xf32>
    %472 = vector.extract_strided_slice %438 {offsets = [0, 0], sizes = [1, 32], strides = [1, 1]} : vector<2x64xf32> to vector<1x32xf32>
    %473 = vector.extract_strided_slice %263 {offsets = [0, 32], sizes = [1, 32], strides = [1, 1]} : vector<2x64xf32> to vector<1x32xf32>
    %474 = vector.extract_strided_slice %443 {offsets = [14, 0], sizes = [1, 32], strides = [1, 1]} : vector<16x32xf32> to vector<1x32xf32>
    %475 = tpu.concatenate %472, %473, %474 in 1 : vector<1x32xf32>, vector<1x32xf32>, vector<1x32xf32> -> vector<1x96xf32>
    %476 = tpu.concatenate %447, %451, %455, %459, %463, %467, %471, %475 in 0 : vector<1x96xf32>, vector<1x96xf32>, vector<1x96xf32>, vector<1x96xf32>, vector<1x96xf32>, vector<1x96xf32>, vector<1x96xf32>, vector<1x96xf32> -> vector<8x96xf32>
    %477 = vector.extract_strided_slice %263 {offsets = [1, 0], sizes = [1, 32], strides = [1, 1]} : vector<2x64xf32> to vector<1x32xf32>
    %478 = vector.extract_strided_slice %438 {offsets = [1, 32], sizes = [1, 32], strides = [1, 1]} : vector<2x64xf32> to vector<1x32xf32>
    %479 = vector.extract_strided_slice %443 {offsets = [1, 0], sizes = [1, 32], strides = [1, 1]} : vector<16x32xf32> to vector<1x32xf32>
    %480 = tpu.concatenate %477, %478, %479 in 1 : vector<1x32xf32>, vector<1x32xf32>, vector<1x32xf32> -> vector<1x96xf32>
    %481 = vector.extract_strided_slice %288 {offsets = [1, 0], sizes = [1, 32], strides = [1, 1]} : vector<2x64xf32> to vector<1x32xf32>
    %482 = vector.extract_strided_slice %413 {offsets = [1, 32], sizes = [1, 32], strides = [1, 1]} : vector<2x64xf32> to vector<1x32xf32>
    %483 = vector.extract_strided_slice %443 {offsets = [3, 0], sizes = [1, 32], strides = [1, 1]} : vector<16x32xf32> to vector<1x32xf32>
    %484 = tpu.concatenate %481, %482, %483 in 1 : vector<1x32xf32>, vector<1x32xf32>, vector<1x32xf32> -> vector<1x96xf32>
    %485 = vector.extract_strided_slice %313 {offsets = [1, 0], sizes = [1, 32], strides = [1, 1]} : vector<2x64xf32> to vector<1x32xf32>
    %486 = vector.extract_strided_slice %388 {offsets = [1, 32], sizes = [1, 32], strides = [1, 1]} : vector<2x64xf32> to vector<1x32xf32>
    %487 = vector.extract_strided_slice %443 {offsets = [5, 0], sizes = [1, 32], strides = [1, 1]} : vector<16x32xf32> to vector<1x32xf32>
    %488 = tpu.concatenate %485, %486, %487 in 1 : vector<1x32xf32>, vector<1x32xf32>, vector<1x32xf32> -> vector<1x96xf32>
    %489 = vector.extract_strided_slice %338 {offsets = [1, 0], sizes = [1, 32], strides = [1, 1]} : vector<2x64xf32> to vector<1x32xf32>
    %490 = vector.extract_strided_slice %363 {offsets = [1, 32], sizes = [1, 32], strides = [1, 1]} : vector<2x64xf32> to vector<1x32xf32>
    %491 = vector.extract_strided_slice %443 {offsets = [7, 0], sizes = [1, 32], strides = [1, 1]} : vector<16x32xf32> to vector<1x32xf32>
    %492 = tpu.concatenate %489, %490, %491 in 1 : vector<1x32xf32>, vector<1x32xf32>, vector<1x32xf32> -> vector<1x96xf32>
    %493 = vector.extract_strided_slice %363 {offsets = [1, 0], sizes = [1, 32], strides = [1, 1]} : vector<2x64xf32> to vector<1x32xf32>
    %494 = vector.extract_strided_slice %338 {offsets = [1, 32], sizes = [1, 32], strides = [1, 1]} : vector<2x64xf32> to vector<1x32xf32>
    %495 = vector.extract_strided_slice %443 {offsets = [9, 0], sizes = [1, 32], strides = [1, 1]} : vector<16x32xf32> to vector<1x32xf32>
    %496 = tpu.concatenate %493, %494, %495 in 1 : vector<1x32xf32>, vector<1x32xf32>, vector<1x32xf32> -> vector<1x96xf32>
    %497 = vector.extract_strided_slice %388 {offsets = [1, 0], sizes = [1, 32], strides = [1, 1]} : vector<2x64xf32> to vector<1x32xf32>
    %498 = vector.extract_strided_slice %313 {offsets = [1, 32], sizes = [1, 32], strides = [1, 1]} : vector<2x64xf32> to vector<1x32xf32>
    %499 = vector.extract_strided_slice %443 {offsets = [11, 0], sizes = [1, 32], strides = [1, 1]} : vector<16x32xf32> to vector<1x32xf32>
    %500 = tpu.concatenate %497, %498, %499 in 1 : vector<1x32xf32>, vector<1x32xf32>, vector<1x32xf32> -> vector<1x96xf32>
    %501 = vector.extract_strided_slice %413 {offsets = [1, 0], sizes = [1, 32], strides = [1, 1]} : vector<2x64xf32> to vector<1x32xf32>
    %502 = vector.extract_strided_slice %288 {offsets = [1, 32], sizes = [1, 32], strides = [1, 1]} : vector<2x64xf32> to vector<1x32xf32>
    %503 = vector.extract_strided_slice %443 {offsets = [13, 0], sizes = [1, 32], strides = [1, 1]} : vector<16x32xf32> to vector<1x32xf32>
    %504 = tpu.concatenate %501, %502, %503 in 1 : vector<1x32xf32>, vector<1x32xf32>, vector<1x32xf32> -> vector<1x96xf32>
    %505 = vector.extract_strided_slice %438 {offsets = [1, 0], sizes = [1, 32], strides = [1, 1]} : vector<2x64xf32> to vector<1x32xf32>
    %506 = vector.extract_strided_slice %263 {offsets = [1, 32], sizes = [1, 32], strides = [1, 1]} : vector<2x64xf32> to vector<1x32xf32>
    %507 = vector.extract_strided_slice %443 {offsets = [15, 0], sizes = [1, 32], strides = [1, 1]} : vector<16x32xf32> to vector<1x32xf32>
    %508 = tpu.concatenate %505, %506, %507 in 1 : vector<1x32xf32>, vector<1x32xf32>, vector<1x32xf32> -> vector<1x96xf32>
    %509 = tpu.concatenate %480, %484, %488, %492, %496, %500, %504, %508 in 0 : vector<1x96xf32>, vector<1x96xf32>, vector<1x96xf32>, vector<1x96xf32>, vector<1x96xf32>, vector<1x96xf32>, vector<1x96xf32>, vector<1x96xf32> -> vector<8x96xf32>
    %510 = tpu.concatenate %476, %509 in 0 : vector<8x96xf32>, vector<8x96xf32> -> vector<16x96xf32>
    %c0_73 = arith.constant 0 : index
    %c0_74 = arith.constant 0 : index
    %511 = vector.load %arg10[%c0_73, %c0_74] : memref<96x150xf32, #tpu.memory_space<vmem>>, vector<96x150xf32>
    %cst_75 = arith.constant dense<0.000000e+00> : vector<16x150xf32>
    %512 = tpu.matmul %510, %511, %cst_75 {dimension_numbers = #tpu.dot_dimension_numbers<[1], [0], [0], [1], [0, 0, 1, 1], [], []>} : vector<16x96xf32>, vector<96x150xf32>, vector<16x150xf32> -> vector<16x150xf32>
    %513 = vector.broadcast %7 : vector<1x150xf32> to vector<16x150xf32>
    %514 = arith.addf %512, %513 : vector<16x150xf32>
    %515 = math.tanh %514 : vector<16x150xf32>
    %c0_76 = arith.constant 0 : index
    %c0_77 = arith.constant 0 : index
    %516 = vector.load %arg11[%c0_76, %c0_77] : memref<150x65xf32, #tpu.memory_space<vmem>>, vector<150x65xf32>
    %cst_78 = arith.constant dense<0.000000e+00> : vector<16x65xf32>
    %517 = tpu.matmul %515, %516, %cst_78 {dimension_numbers = #tpu.dot_dimension_numbers<[1], [0], [0], [1], [0, 0, 1, 1], [], []>} : vector<16x150xf32>, vector<150x65xf32>, vector<16x65xf32> -> vector<16x65xf32>
    %518 = vector.broadcast %8 : vector<1x65xf32> to vector<16x65xf32>
    %519 = arith.addf %517, %518 : vector<16x65xf32>
    %520 = vector.extract_strided_slice %519 {offsets = [0, 0], sizes = [8, 65], strides = [1, 1]} : vector<16x65xf32> to vector<8x65xf32>
    %cst_79 = arith.constant dense<0xFF800000> : vector<65xf32>
    %521 = vector.multi_reduction <maximumf>, %520, %cst_79 [0] : vector<8x65xf32> to vector<65xf32>
    %522 = vector.shape_cast %521 : vector<65xf32> to vector<1x65xf32>
    %523 = vector.broadcast %522 : vector<1x65xf32> to vector<8x65xf32>
    %524 = arith.subf %520, %523 : vector<8x65xf32>
    %525 = math.exp %524 : vector<8x65xf32>
    %cst_80 = arith.constant dense<0.000000e+00> : vector<65xf32>
    %526 = vector.multi_reduction <add>, %525, %cst_80 [0] : vector<8x65xf32> to vector<65xf32>
    %527 = vector.shape_cast %526 : vector<65xf32> to vector<1x65xf32>
    %528 = tpu.reciprocal %527 {approx = true} : vector<1x65xf32> -> vector<1x65xf32>
    %529 = vector.broadcast %528 : vector<1x65xf32> to vector<8x65xf32>
    %530 = arith.mulf %525, %529 : vector<8x65xf32>
    %cst_81 = arith.constant dense<0.000000e+00> : vector<65x96xf32>
    %531 = tpu.matmul %530, %476, %cst_81 {dimension_numbers = #tpu.dot_dimension_numbers<[0], [0], [1], [1], [0, 1, 1, 1], [], []>} : vector<8x65xf32>, vector<8x96xf32>, vector<65x96xf32> -> vector<65x96xf32>
    %532 = vector.extract_strided_slice %519 {offsets = [8, 0], sizes = [8, 65], strides = [1, 1]} : vector<16x65xf32> to vector<8x65xf32>
    %cst_82 = arith.constant dense<0xFF800000> : vector<65xf32>
    %533 = vector.multi_reduction <maximumf>, %532, %cst_82 [0] : vector<8x65xf32> to vector<65xf32>
    %534 = vector.shape_cast %533 : vector<65xf32> to vector<1x65xf32>
    %535 = vector.broadcast %534 : vector<1x65xf32> to vector<8x65xf32>
    %536 = arith.subf %532, %535 : vector<8x65xf32>
    %537 = math.exp %536 : vector<8x65xf32>
    %cst_83 = arith.constant dense<0.000000e+00> : vector<65xf32>
    %538 = vector.multi_reduction <add>, %537, %cst_83 [0] : vector<8x65xf32> to vector<65xf32>
    %539 = vector.shape_cast %538 : vector<65xf32> to vector<1x65xf32>
    %540 = tpu.reciprocal %539 {approx = true} : vector<1x65xf32> -> vector<1x65xf32>
    %541 = vector.broadcast %540 : vector<1x65xf32> to vector<8x65xf32>
    %542 = arith.mulf %537, %541 : vector<8x65xf32>
    %cst_84 = arith.constant dense<0.000000e+00> : vector<65x96xf32>
    %543 = tpu.matmul %542, %509, %cst_84 {dimension_numbers = #tpu.dot_dimension_numbers<[0], [0], [1], [1], [0, 1, 1, 1], [], []>} : vector<8x65xf32>, vector<8x96xf32>, vector<65x96xf32> -> vector<65x96xf32>
    %544 = vector.shape_cast %531 : vector<65x96xf32> to vector<1x65x96xf32>
    %545 = vector.shape_cast %543 : vector<65x96xf32> to vector<1x65x96xf32>
    %546 = tpu.concatenate %544, %545 in 0 : vector<1x65x96xf32>, vector<1x65x96xf32> -> vector<2x65x96xf32>
    %cst_85 = arith.constant dense<0.000000e+00> : vector<2x65xf32>
    %547 = vector.multi_reduction <add>, %546, %cst_85 [2] : vector<2x65x96xf32> to vector<2x65xf32>
    %548 = vector.shape_cast %547 : vector<2x65xf32> to vector<2x65x1xf32>
    %cst_86 = arith.constant 9.600000e+01 : f32
    %549 = vector.broadcast %cst_86 : f32 to vector<2x65x1xf32>
    %550 = arith.divf %548, %549 : vector<2x65x1xf32>
    %551 = vector.broadcast %550 : vector<2x65x1xf32> to vector<2x65x96xf32>
    %552 = arith.subf %546, %551 : vector<2x65x96xf32>
    %553 = arith.mulf %552, %552 : vector<2x65x96xf32>
    %cst_87 = arith.constant dense<0.000000e+00> : vector<2x65xf32>
    %554 = vector.multi_reduction <add>, %553, %cst_87 [2] : vector<2x65x96xf32> to vector<2x65xf32>
    %555 = vector.shape_cast %554 : vector<2x65xf32> to vector<2x65x1xf32>
    %cst_88 = arith.constant 9.600000e+01 : f32
    %556 = vector.broadcast %cst_88 : f32 to vector<2x65x1xf32>
    %557 = arith.divf %555, %556 : vector<2x65x1xf32>
    %558 = vector.broadcast %550 : vector<2x65x1xf32> to vector<2x65x96xf32>
    %559 = arith.subf %546, %558 : vector<2x65x96xf32>
    %cst_89 = arith.constant 9.99999974E-6 : f32
    %560 = vector.broadcast %cst_89 : f32 to vector<2x65x1xf32>
    %561 = arith.addf %557, %560 : vector<2x65x1xf32>
    %562 = math.rsqrt %561 : vector<2x65x1xf32>
    %563 = vector.broadcast %562 : vector<2x65x1xf32> to vector<2x65x96xf32>
    %564 = arith.mulf %559, %563 : vector<2x65x96xf32>
    %565 = vector.shape_cast %9 : vector<1x96xf32> to vector<1x1x96xf32>
    %566 = vector.broadcast %565 : vector<1x1x96xf32> to vector<2x65x96xf32>
    %567 = arith.mulf %564, %566 : vector<2x65x96xf32>
    %568 = vector.shape_cast %10 : vector<1x96xf32> to vector<1x1x96xf32>
    %569 = vector.broadcast %568 : vector<1x1x96xf32> to vector<2x65x96xf32>
    %570 = arith.addf %567, %569 : vector<2x65x96xf32>
    %571 = arith.negf %570 : vector<2x65x96xf32>
    %572 = math.exp %571 : vector<2x65x96xf32>
    %cst_90 = arith.constant 1.000000e+00 : f32
    %573 = vector.broadcast %cst_90 : f32 to vector<2x65x96xf32>
    %574 = arith.addf %573, %572 : vector<2x65x96xf32>
    %575 = arith.divf %573, %574 : vector<2x65x96xf32>
    %576 = arith.mulf %570, %575 : vector<2x65x96xf32>
    %c0_91 = arith.constant 0 : index
    %c0_92 = arith.constant 0 : index
    %577 = vector.load %arg12[%c0_91, %c0_92] : memref<96x100xf32, #tpu.memory_space<vmem>>, vector<96x100xf32>
    %578 = vector.extract_strided_slice %576 {offsets = [0, 0, 0], sizes = [1, 65, 96], strides = [1, 1, 1]} : vector<2x65x96xf32> to vector<1x65x96xf32>
    %579 = vector.shape_cast %578 : vector<1x65x96xf32> to vector<65x96xf32>
    %cst_93 = arith.constant dense<0.000000e+00> : vector<65x100xf32>
    %580 = tpu.matmul %579, %577, %cst_93 {dimension_numbers = #tpu.dot_dimension_numbers<[1], [0], [0], [1], [0, 0, 1, 1], [], []>} : vector<65x96xf32>, vector<96x100xf32>, vector<65x100xf32> -> vector<65x100xf32>
    %581 = vector.broadcast %11 : vector<1x100xf32> to vector<65x100xf32>
    %582 = arith.addf %580, %581 : vector<65x100xf32>
    %cst_94 = arith.constant dense<0xFF800000> : vector<100xf32>
    %583 = vector.multi_reduction <maximumf>, %582, %cst_94 [0] : vector<65x100xf32> to vector<100xf32>
    %584 = vector.shape_cast %583 : vector<100xf32> to vector<1x100xf32>
    %585 = vector.extract_strided_slice %576 {offsets = [1, 0, 0], sizes = [1, 65, 96], strides = [1, 1, 1]} : vector<2x65x96xf32> to vector<1x65x96xf32>
    %586 = vector.shape_cast %585 : vector<1x65x96xf32> to vector<65x96xf32>
    %cst_95 = arith.constant dense<0.000000e+00> : vector<65x100xf32>
    %587 = tpu.matmul %586, %577, %cst_95 {dimension_numbers = #tpu.dot_dimension_numbers<[1], [0], [0], [1], [0, 0, 1, 1], [], []>} : vector<65x96xf32>, vector<96x100xf32>, vector<65x100xf32> -> vector<65x100xf32>
    %588 = vector.broadcast %11 : vector<1x100xf32> to vector<65x100xf32>
    %589 = arith.addf %587, %588 : vector<65x100xf32>
    %cst_96 = arith.constant dense<0xFF800000> : vector<100xf32>
    %590 = vector.multi_reduction <maximumf>, %589, %cst_96 [0] : vector<65x100xf32> to vector<100xf32>
    %591 = vector.shape_cast %590 : vector<100xf32> to vector<1x100xf32>
    %592 = tpu.concatenate %584, %591 in 0 : vector<1x100xf32>, vector<1x100xf32> -> vector<2x100xf32>
    %cst_97 = arith.constant dense<0.000000e+00> : vector<2xf32>
    %593 = vector.multi_reduction <add>, %592, %cst_97 [1] : vector<2x100xf32> to vector<2xf32>
    %594 = vector.shape_cast %593 : vector<2xf32> to vector<2x1xf32>
    %cst_98 = arith.constant 1.000000e+02 : f32
    %595 = vector.broadcast %cst_98 : f32 to vector<2x1xf32>
    %596 = arith.divf %594, %595 : vector<2x1xf32>
    %597 = vector.broadcast %596 : vector<2x1xf32> to vector<2x100xf32>
    %598 = arith.subf %592, %597 : vector<2x100xf32>
    %599 = arith.mulf %598, %598 : vector<2x100xf32>
    %cst_99 = arith.constant dense<0.000000e+00> : vector<2xf32>
    %600 = vector.multi_reduction <add>, %599, %cst_99 [1] : vector<2x100xf32> to vector<2xf32>
    %601 = vector.shape_cast %600 : vector<2xf32> to vector<2x1xf32>
    %cst_100 = arith.constant 1.000000e+02 : f32
    %602 = vector.broadcast %cst_100 : f32 to vector<2x1xf32>
    %603 = arith.divf %601, %602 : vector<2x1xf32>
    %604 = vector.broadcast %596 : vector<2x1xf32> to vector<2x100xf32>
    %605 = arith.subf %592, %604 : vector<2x100xf32>
    %cst_101 = arith.constant 9.99999974E-6 : f32
    %606 = vector.broadcast %cst_101 : f32 to vector<2x1xf32>
    %607 = arith.addf %603, %606 : vector<2x1xf32>
    %608 = math.rsqrt %607 : vector<2x1xf32>
    %609 = vector.broadcast %608 : vector<2x1xf32> to vector<2x100xf32>
    %610 = arith.mulf %605, %609 : vector<2x100xf32>
    %611 = vector.broadcast %12 : vector<1x100xf32> to vector<2x100xf32>
    %612 = arith.mulf %610, %611 : vector<2x100xf32>
    %613 = vector.broadcast %13 : vector<1x100xf32> to vector<2x100xf32>
    %614 = arith.addf %612, %613 : vector<2x100xf32>
    %c0_102 = arith.constant 0 : index
    %c0_103 = arith.constant 0 : index
    %615 = vector.load %arg13[%c0_102, %c0_103] : memref<100x8xf32, #tpu.memory_space<vmem>>, vector<100x8xf32>
    %cst_104 = arith.constant dense<0.000000e+00> : vector<2x8xf32>
    %616 = tpu.matmul %614, %615, %cst_104 {dimension_numbers = #tpu.dot_dimension_numbers<[1], [0], [0], [1], [0, 0, 1, 1], [], []>} : vector<2x100xf32>, vector<100x8xf32>, vector<2x8xf32> -> vector<2x8xf32>
    %617 = vector.broadcast %14 : vector<1x8xf32> to vector<2x8xf32>
    %618 = arith.addf %616, %617 : vector<2x8xf32>
    %c0_105 = arith.constant 0 : index
    %c0_106 = arith.constant 0 : index
    %c0_107 = arith.constant 0 : index
    %619 = vector.load %arg14[%c0_105, %c0_106, %c0_107] : memref<1x2x8xf32, #tpu.memory_space<vmem>>, vector<1x2x8xf32>
    %620 = vector.shape_cast %619 : vector<1x2x8xf32> to vector<2x8xf32>
    %621 = vector.shape_cast %618 : vector<2x8xf32> to vector<1x2x8xf32>
    tpu.vector_store %arg14[%c0_105, %c0_106, %c0_107], %621 {strides = array<i32>} : memref<1x2x8xf32, #tpu.memory_space<vmem>>, vector<1x2x8xf32>,
    return
  }
  func.func @transform_0(%arg0: i32) -> (i32, i32, i32) {
    %c0_i32 = arith.constant 0 : i32
    %c0_i32_0 = arith.constant 0 : i32
    %c0_i32_1 = arith.constant 0 : i32
    return %arg0, %c0_i32, %c0_i32_0 : i32, i32, i32
  }
  func.func @transform_1(%arg0: i32) -> (i32, i32, i32) {
    %c0_i32 = arith.constant 0 : i32
    %c0_i32_0 = arith.constant 0 : i32
    %c0_i32_1 = arith.constant 0 : i32
    return %arg0, %c0_i32, %c0_i32_0 : i32, i32, i32
  }
  func.func @transform_2(%arg0: i32) -> (i32, i32, i32) {
    %c0_i32 = arith.constant 0 : i32
    %c0_i32_0 = arith.constant 0 : i32
    %c0_i32_1 = arith.constant 0 : i32
    return %arg0, %c0_i32, %c0_i32_0 : i32, i32, i32
  }
  func.func @transform_3(%arg0: i32) -> (i32, i32) {
    %c0_i32 = arith.constant 0 : i32
    %c0_i32_0 = arith.constant 0 : i32
    %c0_i32_1 = arith.constant 0 : i32
    return %c0_i32, %c0_i32_0 : i32, i32
  }
  func.func @transform_4(%arg0: i32) -> (i32, i32) {
    %c0_i32 = arith.constant 0 : i32
    %c0_i32_0 = arith.constant 0 : i32
    %c0_i32_1 = arith.constant 0 : i32
    return %c0_i32, %c0_i32_0 : i32, i32
  }
  func.func @transform_5(%arg0: i32) -> (i32, i32) {
    %c0_i32 = arith.constant 0 : i32
    %c0_i32_0 = arith.constant 0 : i32
    %c0_i32_1 = arith.constant 0 : i32
    return %c0_i32, %c0_i32_0 : i32, i32
  }
  func.func @transform_6(%arg0: i32) -> (i32, i32) {
    %c0_i32 = arith.constant 0 : i32
    %c0_i32_0 = arith.constant 0 : i32
    %c0_i32_1 = arith.constant 0 : i32
    return %c0_i32, %c0_i32_0 : i32, i32
  }
  func.func @transform_7(%arg0: i32) -> (i32, i32) {
    %c0_i32 = arith.constant 0 : i32
    %c0_i32_0 = arith.constant 0 : i32
    %c0_i32_1 = arith.constant 0 : i32
    return %c0_i32, %c0_i32_0 : i32, i32
  }
  func.func @transform_8(%arg0: i32) -> (i32, i32) {
    %c0_i32 = arith.constant 0 : i32
    %c0_i32_0 = arith.constant 0 : i32
    %c0_i32_1 = arith.constant 0 : i32
    return %c0_i32, %c0_i32_0 : i32, i32
  }
  func.func @transform_9(%arg0: i32) -> (i32, i32) {
    %c0_i32 = arith.constant 0 : i32
    %c0_i32_0 = arith.constant 0 : i32
    %c0_i32_1 = arith.constant 0 : i32
    return %c0_i32, %c0_i32_0 : i32, i32
  }
  func.func @transform_10(%arg0: i32) -> (i32, i32) {
    %c0_i32 = arith.constant 0 : i32
    %c0_i32_0 = arith.constant 0 : i32
    %c0_i32_1 = arith.constant 0 : i32
    return %c0_i32, %c0_i32_0 : i32, i32
  }
  func.func @transform_11(%arg0: i32) -> (i32, i32) {
    %c0_i32 = arith.constant 0 : i32
    %c0_i32_0 = arith.constant 0 : i32
    %c0_i32_1 = arith.constant 0 : i32
    return %c0_i32, %c0_i32_0 : i32, i32
  }
  func.func @transform_12(%arg0: i32) -> (i32, i32) {
    %c0_i32 = arith.constant 0 : i32
    %c0_i32_0 = arith.constant 0 : i32
    %c0_i32_1 = arith.constant 0 : i32
    return %c0_i32, %c0_i32_0 : i32, i32
  }
  func.func @transform_13(%arg0: i32) -> (i32, i32, i32) {
    %c0_i32 = arith.constant 0 : i32
    %c0_i32_0 = arith.constant 0 : i32
    %c0_i32_1 = arith.constant 0 : i32
    return %arg0, %c0_i32, %c0_i32_0 : i32, i32, i32
  }
}

</mosaic_0001>

<llo_original>
// kernel: tpu_custom_call.1
$region0: #{tpu_custom_call.1}
  #allocation0 [shape = 'u32[]', space=smem, size = 0x4, offset = 0x4, fixed_abs, tag = 'smem constant byte address 0x4 - core index']
  #allocation1 [shape = 'u32[144,128]{1,0:T(1,128)}', space=vmem, size = 0x12000, scoped, tag = 'internal scratch']
  %s0 = inlined_call_operand.vmem [shape: f32[1,16,32], index: 0, kind: input, shape index: {}]
  %s1 = inlined_call_operand.vmem [shape: f32[1,2,64], index: 1, kind: input, shape index: {}]
  %s2 = inlined_call_operand.vmem [shape: f32[1,2,64], index: 2, kind: input, shape index: {}]
  %s3 = inlined_call_operand.vmem [shape: bf16[32,512], index: 3, kind: input, shape index: {}]
  %s4 = inlined_call_operand.vmem [shape: bf16[64,256], index: 4, kind: input, shape index: {}]
  %s5 = inlined_call_operand.vmem [shape: bf16[64,384], index: 5, kind: input, shape index: {}]
  %s6 = inlined_call_operand.vmem [shape: bf16[64,192], index: 6, kind: input, shape index: {}]
  %s7 = inlined_call_operand.vmem [shape: f32[12,256], index: 7, kind: input, shape index: {}]
  %s8 = inlined_call_operand.vmem [shape: f32[32,32], index: 8, kind: input, shape index: {}]
  %s9 = inlined_call_operand.vmem [shape: f32[96,150], index: 9, kind: input, shape index: {}]
  %s10 = inlined_call_operand.vmem [shape: f32[150,65], index: 10, kind: input, shape index: {}]
  %s11 = inlined_call_operand.vmem [shape: f32[96,100], index: 11, kind: input, shape index: {}]
  %s12 = inlined_call_operand.vmem [shape: f32[100,8], index: 12, kind: input, shape index: {}]
  %s13 = inlined_call_operand.hbm [shape: f32[1,2,8], index: 13, kind: output, shape index: {}]
  %s14 = sld [smem:[#allocation0]]
  $region62: #{tpu_custom_call.1} parent=0
    _
  %s16 = ssub.s32 1, %s14
  %s17 = scalar_select 0, %s16, %s14
  $region1: #{tpu_custom_call.1} parent=0
    #allocation2 [shape = 'u8[1024]{0}', space=vmem, size = 0x400, scoped, tag = 'output window, operand 0, single buffered']
    #allocation3 [shape = 's32[1]{0}', space=sflag, size = 0x4, scoped, tag = 'scoped memory for tpu_custom_call.1']
    %18 = vsyncpa [#allocation3], 0
    // Predicated region
    $region2: #{tpu_custom_call.1} parent=1 // pred_check
      _
    $region3: #{tpu_custom_call.1} parent=1 // pred_check_branch
      %20 = sbr.rel (0) target = $region5
    $region4: #{tpu_custom_call.1} parent=1 // pred_region
      _
    $region5: #{tpu_custom_call.1} parent=1 // pred_fallthru
      _
    // Predicated region
    $region6: #{tpu_custom_call.1} parent=1 // pred_check
      _
    $region7: #{tpu_custom_call.1} parent=1 // pred_check_branch
      %22 = sbr.rel (0) target = $region9
    $region8: #{tpu_custom_call.1} parent=1 // pred_region
      _
    $region9: #{tpu_custom_call.1} parent=1 // pred_fallthru
      _
    // Predicated region
    $region10: #{tpu_custom_call.1} parent=1 // pred_check
      _
    $region11: #{tpu_custom_call.1} parent=1 // pred_check_branch
      %24 = sbr.rel (0) target = $region13
    $region12: #{tpu_custom_call.1} parent=1 // pred_region
      _
    $region13: #{tpu_custom_call.1} parent=1 // pred_fallthru
      _
    // Predicated region
    $region14: #{tpu_custom_call.1} parent=1 // pred_check
      _
    $region15: #{tpu_custom_call.1} parent=1 // pred_check_branch
      %26 = sbr.rel (0) target = $region17
    $region16: #{tpu_custom_call.1} parent=1 // pred_region
      _
    $region17: #{tpu_custom_call.1} parent=1 // pred_fallthru
      _
    // Predicated region
    $region18: #{tpu_custom_call.1} parent=1 // pred_check
      _
    $region19: #{tpu_custom_call.1} parent=1 // pred_check_branch
      %28 = sbr.rel (0) target = $region21
    $region20: #{tpu_custom_call.1} parent=1 // pred_region
      _
    $region21: #{tpu_custom_call.1} parent=1 // pred_fallthru
      _
    // Predicated region
    $region22: #{tpu_custom_call.1} parent=1 // pred_check
      _
    $region23: #{tpu_custom_call.1} parent=1 // pred_check_branch
      %30 = sbr.rel (0) target = $region25
    $region24: #{tpu_custom_call.1} parent=1 // pred_region
      _
    $region25: #{tpu_custom_call.1} parent=1 // pred_fallthru
      _
    // Predicated region
    $region26: #{tpu_custom_call.1} parent=1 // pred_check
      _
    $region27: #{tpu_custom_call.1} parent=1 // pred_check_branch
      %32 = sbr.rel (0) target = $region29
    $region28: #{tpu_custom_call.1} parent=1 // pred_region
      _
    $region29: #{tpu_custom_call.1} parent=1 // pred_fallthru
      _
    // Predicated region
    $region30: #{tpu_custom_call.1} parent=1 // pred_check
      _
    $region31: #{tpu_custom_call.1} parent=1 // pred_check_branch
      %34 = sbr.rel (0) target = $region33
    $region32: #{tpu_custom_call.1} parent=1 // pred_region
      _
    $region33: #{tpu_custom_call.1} parent=1 // pred_fallthru
      _
    // Predicated region
    $region34: #{tpu_custom_call.1} parent=1 // pred_check
      _
    $region35: #{tpu_custom_call.1} parent=1 // pred_check_branch
      %36 = sbr.rel (0) target = $region37
    $region36: #{tpu_custom_call.1} parent=1 // pred_region
      _
    $region37: #{tpu_custom_call.1} parent=1 // pred_fallthru
      _
    // Predicated region
    $region38: #{tpu_custom_call.1} parent=1 // pred_check
      _
    $region39: #{tpu_custom_call.1} parent=1 // pred_check_branch
      %38 = sbr.rel (0) target = $region41
    $region40: #{tpu_custom_call.1} parent=1 // pred_region
      _
    $region41: #{tpu_custom_call.1} parent=1 // pred_fallthru
      _
    // Predicated region
    $region42: #{tpu_custom_call.1} parent=1 // pred_check
      _
    $region43: #{tpu_custom_call.1} parent=1 // pred_check_branch
      %40 = sbr.rel (0) target = $region45
    $region44: #{tpu_custom_call.1} parent=1 // pred_region
      _
    $region45: #{tpu_custom_call.1} parent=1 // pred_fallthru
      _
    // Predicated region
    $region46: #{tpu_custom_call.1} parent=1 // pred_check
      _
    $region47: #{tpu_custom_call.1} parent=1 // pred_check_branch
      %42 = sbr.rel (0) target = $region49
    $region48: #{tpu_custom_call.1} parent=1 // pred_region
      _
    $region49: #{tpu_custom_call.1} parent=1 // pred_fallthru
      _
    // Predicated region
    $region50: #{tpu_custom_call.1} parent=1 // pred_check
      _
    $region51: #{tpu_custom_call.1} parent=1 // pred_check_branch
      %44 = sbr.rel (0) target = $region53
    $region52: #{tpu_custom_call.1} parent=1 // pred_region
      _
    $region53: #{tpu_custom_call.1} parent=1 // pred_fallthru
      _
    %v46 = vld [vmem:[%s0] sm:$0xff]
    %v47 = vld [vmem:[%s0 + $0x8] sm:$0xff]
    %v48 = vpack.c.bf16 %v47, %v46
    %v49 = vld [vmem:[%s7] ss:$8 sm:$0x3]
    %s50 = scalar_lea.vmem %s7, 1
    %v51 = vld [vmem:[%s50] ss:$8 sm:$0x3]
    %v52 = vld [vmem:[%s7 + $0x2] ss:$0 sm:$0xff]
    %v53 = vld [vmem:[%s7 + $0x3] ss:$0 sm:$0xff]
    %s54 = scalar_lea.vmem %s7, 4
    %v55 = vld [vmem:[%s54] ss:$8 sm:$0x3]
    %v56 = vld [vmem:[%s7 + $0x5] ss:$0 sm:$0xff]
    %v57 = vld [vmem:[%s7 + $0x6] ss:$0 sm:$0xff]
    %v58 = vld [vmem:[%s7 + $0x7] ss:$0 sm:$0xff]
    %v59 = vld [vmem:[%s7 + $0x10] ss:$0 sm:$0xff]
    %v60 = vld [vmem:[%s7 + $0x11] ss:$0 sm:$0xff]
    %v61 = vld [vmem:[%s7 + $0x12] ss:$0 sm:$0xff]
    %v62 = vld [vmem:[%s7 + $0x13] ss:$0 sm:$0xff]
    %v63 = vld [vmem:[%s3] sm:$0xff]
    %v64 = vld [vmem:[%s3 + $0x8] sm:$0xff]
    %v65 = vld [vmem:[%s3 + $0x10] sm:$0xff]
    %v66 = vld [vmem:[%s3 + $0x18] sm:$0xff]
    %v67 = vld [vmem:[%s3 + $0x20] sm:$0xff]
    %v68 = vld [vmem:[%s3 + $0x28] sm:$0xff]
    %v69 = vld [vmem:[%s3 + $0x30] sm:$0xff]
    %v70 = vld [vmem:[%s3 + $0x38] sm:$0xff]
    %v79 = vunpack.c.l.b16 %v63
    %v80 = vunpack.c.h.b16 %v63
    %v81 = vunpack.c.l.b16 %v64
    %v82 = vunpack.c.h.b16 %v64
    %v83 = vunpack.c.l.b16 %v65
    %v84 = vunpack.c.h.b16 %v65
    %v85 = vunpack.c.l.b16 %v66
    %v86 = vunpack.c.h.b16 %v66
    %v87 = vunpack.c.l.b16 %v67
    %v88 = vunpack.c.h.b16 %v67
    %v89 = vunpack.c.l.b16 %v68
    %v90 = vunpack.c.h.b16 %v68
    %v91 = vunpack.c.l.b16 %v69
    %v92 = vunpack.c.h.b16 %v69
    %v93 = vunpack.c.l.b16 %v70
    %v94 = vunpack.c.h.b16 %v70
    %v95 = vpack.c.b16 %v83, %v79
    %v96 = vpack.c.b16 %v84, %v80
    %v97 = vpack.c.b16 %v85, %v81
    %v98 = vpack.c.b16 %v86, %v82
    %v99 = vpack.c.b16 %v91, %v87
    %v100 = vpack.c.b16 %v92, %v88
    %v101 = vpack.c.b16 %v93, %v89
    %v102 = vpack.c.b16 %v94, %v90
    %vm111 = vcmask 261120
    %v113 = vsel %vm111, %v48, 0
    %115 = vmatprep.subr.bf16.mxu0 %v96
    %116 = vmatpush1.bf16.msra.mxu0 %v95
    %117 = vmatprep.subr.bf16.mxu0 %v100
    %118 = vmatpush1.bf16.msra.mxu0 %v99
    %119 = vmatprep.subr.bf16.mxu0 0
    %120 = vmatpush1.bf16.msra.mxu0 0
    %121 = vmatprep.subr.bf16.mxu0 0
    %122 = vmatpush1.bf16.msra.mxu0 0
    %123 = vmatprep.subr.bf16.mxu0 0
    %124 = vmatpush1.bf16.msra.mxu0 0
    %125 = vmatprep.subr.bf16.mxu0 0
    %126 = vmatpush1.bf16.msra.mxu0 0
    %127 = vmatprep.subr.bf16.mxu0 0
    %128 = vmatpush1.bf16.msra.mxu0 0
    %129 = vmatprep.subr.bf16.mxu0 0
    %130 = vmatpush1.bf16.msra.mxu0 0
    %131 = vmatprep.subr.bf16.mxu0 0
    %132 = vmatpush1.bf16.msra.mxu0 0
    %133 = vmatprep.subr.bf16.mxu0 0
    %134 = vmatpush1.bf16.msra.mxu0 0
    %135 = vmatprep.subr.bf16.mxu0 0
    %136 = vmatpush1.bf16.msra.mxu0 0
    %137 = vmatprep.subr.bf16.mxu0 0
    %138 = vmatpush1.bf16.msra.mxu0 0
    %139 = vmatprep.subr.bf16.mxu0 0
    %140 = vmatpush1.bf16.msra.mxu0 0
    %141 = vmatprep.subr.bf16.mxu0 0
    %142 = vmatpush1.bf16.msra.mxu0 0
    %143 = vmatprep.subr.bf16.mxu0 0
    %144 = vmatpush1.bf16.msra.mxu0 0
    %145 = vmatprep.subr.bf16.mxu0 0
    %146 = vmatpush1.bf16.msra.mxu0 0
    %147 = vmatprep.mubr.bf16.mxu0 0
    %148 = vmatmul.mubr.bf16.gmra.mrb[0].mxu0 %v113
    %v149 = vpop.f32.mrb[0].mxu0
    %v150 = vadd.f32 0.0, %v149
    %v151 = vpop.f32.mrb[0].mxu0
    %v152 = vadd.f32 0.0, %v151
    %v153 = vpop.f32.mrb[0].mxu0
    %v154 = vadd.f32 0.0, %v153
    %v155 = vpop.f32.mrb[0].mxu0
    %v156 = vadd.f32 0.0, %v155
    %157 = vdwg.mxu0
    %158 = vmatprep.subr.bf16.mxu0 %v98
    %159 = vmatpush1.bf16.msra.mxu0 %v97
    %160 = vmatprep.subr.bf16.mxu0 %v102
    %161 = vmatpush1.bf16.msra.mxu0 %v101
    %162 = vmatprep.subr.bf16.mxu0 0
    %163 = vmatpush1.bf16.msra.mxu0 0
    %164 = vmatprep.subr.bf16.mxu0 0
    %165 = vmatpush1.bf16.msra.mxu0 0
    %166 = vmatprep.subr.bf16.mxu0 0
    %167 = vmatpush1.bf16.msra.mxu0 0
    %168 = vmatprep.subr.bf16.mxu0 0
    %169 = vmatpush1.bf16.msra.mxu0 0
    %170 = vmatprep.subr.bf16.mxu0 0
    %171 = vmatpush1.bf16.msra.mxu0 0
    %172 = vmatprep.subr.bf16.mxu0 0
    %173 = vmatpush1.bf16.msra.mxu0 0
    %174 = vmatprep.subr.bf16.mxu0 0
    %175 = vmatpush1.bf16.msra.mxu0 0
    %176 = vmatprep.subr.bf16.mxu0 0
    %177 = vmatpush1.bf16.msra.mxu0 0
    %178 = vmatprep.subr.bf16.mxu0 0
    %179 = vmatpush1.bf16.msra.mxu0 0
    %180 = vmatprep.subr.bf16.mxu0 0
    %181 = vmatpush1.bf16.msra.mxu0 0
    %182 = vmatprep.subr.bf16.mxu0 0
    %183 = vmatpush1.bf16.msra.mxu0 0
    %184 = vmatprep.subr.bf16.mxu0 0
    %185 = vmatpush1.bf16.msra.mxu0 0
    %186 = vmatprep.subr.bf16.mxu0 0
    %187 = vmatpush1.bf16.msra.mxu0 0
    %188 = vmatprep.subr.bf16.mxu0 0
    %189 = vmatpush1.bf16.msra.mxu0 0
    %190 = vmatprep.mubr.bf16.mxu0 0
    %191 = vmatmul.mubr.bf16.gmra.mrb[0].mxu0 %v113
    %v192 = vpop.f32.mrb[0].mxu0
    %v193 = vadd.f32 0.0, %v192
    %v194 = vpop.f32.mrb[0].mxu0
    %v195 = vadd.f32 0.0, %v194
    %v196 = vpop.f32.mrb[0].mxu0
    %v197 = vadd.f32 0.0, %v196
    %v198 = vpop.f32.mrb[0].mxu0
    %v199 = vadd.f32 0.0, %v198
    %200 = vdwg.mxu0
    %v202 = vlaneseq
    %v203 = vshrl.u32 %v202, 7
    %v204 = vsub.s32 0, %v203
    %v205 = vrot.slane %v49, %v204
    %v206 = vlaneseq
    %v207 = vshrl.u32 %v206, 7
    %v208 = vsub.s32 1, %v207
    %v209 = vrot.slane %v49, %v208
    %v212 = vadd.f32 %v150, %v205
    %v213 = vadd.f32 %v152, %v209
    %v214 = vadd.f32 %v154, %v205
    %v215 = vadd.f32 %v156, %v209
    %v218 = vrot.slane %v197, 6
    %v219 = vrot.slane %v199, 6
    %v222 = vrot.slane %v197, 2
    %v223 = vrot.slane %v199, 2
    %v228 = vrot.slane %v193, 6
    %v229 = vrot.slane %v195, 6
    %v232 = vrot.slane %v193, 2
    %v233 = vrot.slane %v195, 2
    %vm236 = vcmask 1041408
    %v237 = vsel %vm236, %v218, %v222
    %v238 = vsel %vm236, %v219, %v223
    %vm239 = vcmask 1043456
    %v240 = vsel %vm239, %v237, %v218
    %v241 = vsel %vm239, %v238, %v219
    %vm242 = vcmask 1045504
    %v243 = vsel %vm242, %v240, %v222
    %v244 = vsel %vm242, %v241, %v223
    %v245 = vsel %vm236, %v228, %v232
    %v246 = vsel %vm236, %v229, %v233
    %v247 = vsel %vm239, %v245, %v228
    %v248 = vsel %vm239, %v246, %v229
    %v249 = vsel %vm242, %v247, %v232
    %v250 = vsel %vm242, %v248, %v233
    %v251 = vadd.f32 %v212, %v243
    %v252 = vadd.f32 %v213, %v244
    %v253 = vadd.f32 %v214, %v249
    %v254 = vadd.f32 %v215, %v250
    %v255 = vld [vmem:[%s4] sm:$0xff]
    %v256 = vld [vmem:[%s4 + $0x8] sm:$0xff]
    %v257 = vld [vmem:[%s4 + $0x10] sm:$0xff]
    %v258 = vld [vmem:[%s4 + $0x18] sm:$0xff]
    %v259 = vld [vmem:[%s4 + $0x20] sm:$0xff]
    %v260 = vld [vmem:[%s4 + $0x28] sm:$0xff]
    %v261 = vld [vmem:[%s4 + $0x30] sm:$0xff]
    %v262 = vld [vmem:[%s4 + $0x38] sm:$0xff]
    %v263 = vld [vmem:[%s1] sm:$0x3]
    %v264 = vld [vmem:[%s2] sm:$0x3]
    %v265 = vpack.c.bf16 %v263, %v263
    %v274 = vunpack.c.l.b16 %v255
    %v275 = vunpack.c.h.b16 %v255
    %v276 = vunpack.c.l.b16 %v256
    %v277 = vunpack.c.h.b16 %v256
    %v278 = vunpack.c.l.b16 %v257
    %v279 = vunpack.c.h.b16 %v257
    %v280 = vunpack.c.l.b16 %v258
    %v281 = vunpack.c.h.b16 %v258
    %v282 = vunpack.c.l.b16 %v259
    %v283 = vunpack.c.h.b16 %v259
    %v284 = vunpack.c.l.b16 %v260
    %v285 = vunpack.c.h.b16 %v260
    %v286 = vunpack.c.l.b16 %v261
    %v287 = vunpack.c.h.b16 %v261
    %v288 = vunpack.c.l.b16 %v262
    %v289 = vunpack.c.h.b16 %v262
    %v290 = vpack.c.b16 %v276, %v274
    %v291 = vpack.c.b16 %v277, %v275
    %v292 = vpack.c.b16 %v280, %v278
    %v293 = vpack.c.b16 %v281, %v279
    %v294 = vpack.c.b16 %v284, %v282
    %v295 = vpack.c.b16 %v285, %v283
    %v296 = vpack.c.b16 %v288, %v286
    %v297 = vpack.c.b16 %v289, %v287
    %vm306 = vcmask 523264
    %v308 = vsel %vm306, %v265, 0
    %310 = vmatprep.subr.bf16.mxu0 %v291
    %311 = vmatpush1.bf16.msra.mxu0 %v290
    %312 = vmatprep.subr.bf16.mxu0 %v293
    %313 = vmatpush1.bf16.msra.mxu0 %v292
    %314 = vmatprep.subr.bf16.mxu0 %v295
    %315 = vmatpush1.bf16.msra.mxu0 %v294
    %316 = vmatprep.subr.bf16.mxu0 %v297
    %317 = vmatpush1.bf16.msra.mxu0 %v296
    %318 = vmatprep.subr.bf16.mxu0 0
    %319 = vmatpush1.bf16.msra.mxu0 0
    %320 = vmatprep.subr.bf16.mxu0 0
    %321 = vmatpush1.bf16.msra.mxu0 0
    %322 = vmatprep.subr.bf16.mxu0 0
    %323 = vmatpush1.bf16.msra.mxu0 0
    %324 = vmatprep.subr.bf16.mxu0 0
    %325 = vmatpush1.bf16.msra.mxu0 0
    %326 = vmatprep.subr.bf16.mxu0 0
    %327 = vmatpush1.bf16.msra.mxu0 0
    %328 = vmatprep.subr.bf16.mxu0 0
    %329 = vmatpush1.bf16.msra.mxu0 0
    %330 = vmatprep.subr.bf16.mxu0 0
    %331 = vmatpush1.bf16.msra.mxu0 0
    %332 = vmatprep.subr.bf16.mxu0 0
    %333 = vmatpush1.bf16.msra.mxu0 0
    %334 = vmatprep.subr.bf16.mxu0 0
    %335 = vmatpush1.bf16.msra.mxu0 0
    %336 = vmatprep.subr.bf16.mxu0 0
    %337 = vmatpush1.bf16.msra.mxu0 0
    %338 = vmatprep.subr.bf16.mxu0 0
    %339 = vmatpush1.bf16.msra.mxu0 0
    %340 = vmatprep.subr.bf16.mxu0 0
    %341 = vmatpush1.bf16.msra.mxu0 0
    %342 = vmatprep.mubr.bf16.mxu0 0
    %343 = vmatmul.mubr.bf16.gmra.mrb[0].mxu0 %v308
    %v344 = vpop.f32.mrb[0].mxu0
    %v345 = vadd.f32 %v251, %v344
    %v346 = vpop.f32.mrb[0].mxu0
    %v347 = vadd.f32 %v252, %v346
    %v348 = vpop.f32.mrb[0].mxu0
    %v349 = vpop.f32.mrb[0].mxu0
    %350 = vdwg.mxu0
    %v351 = vxor.u32 %v345, 2147483648
    %v352 = vxor.u32 %v347, 2147483648
    %v353 = vmul.f32 %v351, 1.442695
    %v354 = vpow.pop %v353
    %v355 = vmul.f32 %v352, 1.442695
    %v356 = vpow.pop %v355
    %v357 = vadd.f32 %v354, 1.0
    %v358 = vadd.f32 %v356, 1.0
    %v359 = vrcp.pop %v357
    %v360 = vmul.f32 1.0, %v359
    %v361 = vrcp.pop %v358
    %v362 = vmul.f32 1.0, %v361
    %364 = vrot.lane.b32.xlu0 %v264, 64
    %v365 = vpop.permute.xlu0 %364
    %v367 = vmul.f32 %v360, %v365
    %v368 = vtanh.pop %v347
    %370 = vrot.lane.b32.xlu0 %v368, 64
    %v371 = vpop.permute.xlu0 %370
    %v373 = vmul.f32 %v360, %v371
    %375 = vrot.lane.b32.xlu0 %v373, 64
    %v376 = vpop.permute.xlu0 %375
    %v378 = vadd.f32 %v367, %v376
    %v379 = vtanh.pop %v378
    %381 = vrot.lane.b32.xlu0 %v379, 64
    %v382 = vpop.permute.xlu0 %381
    %v384 = vmul.f32 %v362, %v382
    %v385 = vpack.c.bf16 %v384, %v384
    %v388 = vrot.slane %v251, 2
    %v389 = vrot.slane %v252, 2
    %v393 = vsel %vm306, %v385, 0
    %395 = vmatprep.subr.bf16.mxu0 %v291
    %396 = vmatpush1.bf16.msra.mxu0 %v290
    %397 = vmatprep.subr.bf16.mxu0 %v293
    %398 = vmatpush1.bf16.msra.mxu0 %v292
    %399 = vmatprep.subr.bf16.mxu0 %v295
    %400 = vmatpush1.bf16.msra.mxu0 %v294
    %401 = vmatprep.subr.bf16.mxu0 %v297
    %402 = vmatpush1.bf16.msra.mxu0 %v296
    %403 = vmatprep.subr.bf16.mxu0 0
    %404 = vmatpush1.bf16.msra.mxu0 0
    %405 = vmatprep.subr.bf16.mxu0 0
    %406 = vmatpush1.bf16.msra.mxu0 0
    %407 = vmatprep.subr.bf16.mxu0 0
    %408 = vmatpush1.bf16.msra.mxu0 0
    %409 = vmatprep.subr.bf16.mxu0 0
    %410 = vmatpush1.bf16.msra.mxu0 0
    %411 = vmatprep.subr.bf16.mxu0 0
    %412 = vmatpush1.bf16.msra.mxu0 0
    %413 = vmatprep.subr.bf16.mxu0 0
    %414 = vmatpush1.bf16.msra.mxu0 0
    %415 = vmatprep.subr.bf16.mxu0 0
    %416 = vmatpush1.bf16.msra.mxu0 0
    %417 = vmatprep.subr.bf16.mxu0 0
    %418 = vmatpush1.bf16.msra.mxu0 0
    %419 = vmatprep.subr.bf16.mxu0 0
    %420 = vmatpush1.bf16.msra.mxu0 0
    %421 = vmatprep.subr.bf16.mxu0 0
    %422 = vmatpush1.bf16.msra.mxu0 0
    %423 = vmatprep.subr.bf16.mxu0 0
    %424 = vmatpush1.bf16.msra.mxu0 0
    %425 = vmatprep.subr.bf16.mxu0 0
    %426 = vmatpush1.bf16.msra.mxu0 0
    %427 = vmatprep.mubr.bf16.mxu0 0
    %428 = vmatmul.mubr.bf16.gmra.mrb[0].mxu0 %v393
    %v429 = vpop.f32.mrb[0].mxu0
    %v430 = vadd.f32 %v388, %v429
    %v431 = vpop.f32.mrb[0].mxu0
    %v432 = vadd.f32 %v389, %v431
    %v433 = vpop.f32.mrb[0].mxu0
    %v434 = vpop.f32.mrb[0].mxu0
    %435 = vdwg.mxu0
    %v436 = vxor.u32 %v430, 2147483648
    %v437 = vxor.u32 %v432, 2147483648
    %v438 = vmul.f32 %v436, 1.442695
    %v439 = vpow.pop %v438
    %v440 = vmul.f32 %v437, 1.442695
    %v441 = vpow.pop %v440
    %v442 = vadd.f32 %v439, 1.0
    %v443 = vadd.f32 %v441, 1.0
    %v444 = vrcp.pop %v442
    %v445 = vmul.f32 1.0, %v444
    %v446 = vrcp.pop %v443
    %v447 = vmul.f32 1.0, %v446
    %v448 = vmul.f32 %v445, %v378
    %v449 = vtanh.pop %v432
    %451 = vrot.lane.b32.xlu0 %v449, 64
    %v452 = vpop.permute.xlu0 %451
    %v454 = vmul.f32 %v445, %v452
    %456 = vrot.lane.b32.xlu0 %v454, 64
    %v457 = vpop.permute.xlu0 %456
    %v459 = vadd.f32 %v448, %v457
    %v460 = vtanh.pop %v459
    %462 = vrot.lane.b32.xlu0 %v460, 64
    %v463 = vpop.permute.xlu0 %462
    %v465 = vmul.f32 %v447, %v463
    %v466 = vpack.c.bf16 %v465, %v465
    %v467 = vrot.slane %v251, 4
    %v468 = vrot.slane %v252, 4
    %v472 = vsel %vm306, %v466, 0
    %474 = vmatprep.subr.bf16.mxu0 %v291
    %475 = vmatpush1.bf16.msra.mxu0 %v290
    %476 = vmatprep.subr.bf16.mxu0 %v293
    %477 = vmatpush1.bf16.msra.mxu0 %v292
    %478 = vmatprep.subr.bf16.mxu0 %v295
    %479 = vmatpush1.bf16.msra.mxu0 %v294
    %480 = vmatprep.subr.bf16.mxu0 %v297
    %481 = vmatpush1.bf16.msra.mxu0 %v296
    %482 = vmatprep.subr.bf16.mxu0 0
    %483 = vmatpush1.bf16.msra.mxu0 0
    %484 = vmatprep.subr.bf16.mxu0 0
    %485 = vmatpush1.bf16.msra.mxu0 0
    %486 = vmatprep.subr.bf16.mxu0 0
    %487 = vmatpush1.bf16.msra.mxu0 0
    %488 = vmatprep.subr.bf16.mxu0 0
    %489 = vmatpush1.bf16.msra.mxu0 0
    %490 = vmatprep.subr.bf16.mxu0 0
    %491 = vmatpush1.bf16.msra.mxu0 0
    %492 = vmatprep.subr.bf16.mxu0 0
    %493 = vmatpush1.bf16.msra.mxu0 0
    %494 = vmatprep.subr.bf16.mxu0 0
    %495 = vmatpush1.bf16.msra.mxu0 0
    %496 = vmatprep.subr.bf16.mxu0 0
    %497 = vmatpush1.bf16.msra.mxu0 0
    %498 = vmatprep.subr.bf16.mxu0 0
    %499 = vmatpush1.bf16.msra.mxu0 0
    %500 = vmatprep.subr.bf16.mxu0 0
    %501 = vmatpush1.bf16.msra.mxu0 0
    %502 = vmatprep.subr.bf16.mxu0 0
    %503 = vmatpush1.bf16.msra.mxu0 0
    %504 = vmatprep.subr.bf16.mxu0 0
    %505 = vmatpush1.bf16.msra.mxu0 0
    %506 = vmatprep.mubr.bf16.mxu0 0
    %507 = vmatmul.mubr.bf16.gmra.mrb[0].mxu0 %v472
    %v508 = vpop.f32.mrb[0].mxu0
    %v509 = vadd.f32 %v467, %v508
    %v510 = vpop.f32.mrb[0].mxu0
    %v511 = vadd.f32 %v468, %v510
    %v512 = vpop.f32.mrb[0].mxu0
    %v513 = vpop.f32.mrb[0].mxu0
    %514 = vdwg.mxu0
    %v515 = vxor.u32 %v509, 2147483648
    %v516 = vxor.u32 %v511, 2147483648
    %v517 = vmul.f32 %v515, 1.442695
    %v518 = vpow.pop %v517
    %v519 = vmul.f32 %v516, 1.442695
    %v520 = vpow.pop %v519
    %v521 = vadd.f32 %v518, 1.0
    %v522 = vadd.f32 %v520, 1.0
    %v523 = vrcp.pop %v521
    %v524 = vmul.f32 1.0, %v523
    %v525 = vrcp.pop %v522
    %v526 = vmul.f32 1.0, %v525
    %v527 = vmul.f32 %v524, %v459
    %v528 = vtanh.pop %v511
    %530 = vrot.lane.b32.xlu0 %v528, 64
    %v531 = vpop.permute.xlu0 %530
    %v533 = vmul.f32 %v524, %v531
    %535 = vrot.lane.b32.xlu0 %v533, 64
    %v536 = vpop.permute.xlu0 %535
    %v538 = vadd.f32 %v527, %v536
    %v539 = vtanh.pop %v538
    %541 = vrot.lane.b32.xlu0 %v539, 64
    %v542 = vpop.permute.xlu0 %541
    %v544 = vmul.f32 %v526, %v542
    %v545 = vpack.c.bf16 %v544, %v544
    %v546 = vrot.slane %v251, 6
    %v547 = vrot.slane %v252, 6
    %v551 = vsel %vm306, %v545, 0
    %553 = vmatprep.subr.bf16.mxu0 %v291
    %554 = vmatpush1.bf16.msra.mxu0 %v290
    %555 = vmatprep.subr.bf16.mxu0 %v293
    %556 = vmatpush1.bf16.msra.mxu0 %v292
    %557 = vmatprep.subr.bf16.mxu0 %v295
    %558 = vmatpush1.bf16.msra.mxu0 %v294
    %559 = vmatprep.subr.bf16.mxu0 %v297
    %560 = vmatpush1.bf16.msra.mxu0 %v296
    %561 = vmatprep.subr.bf16.mxu0 0
    %562 = vmatpush1.bf16.msra.mxu0 0
    %563 = vmatprep.subr.bf16.mxu0 0
    %564 = vmatpush1.bf16.msra.mxu0 0
    %565 = vmatprep.subr.bf16.mxu0 0
    %566 = vmatpush1.bf16.msra.mxu0 0
    %567 = vmatprep.subr.bf16.mxu0 0
    %568 = vmatpush1.bf16.msra.mxu0 0
    %569 = vmatprep.subr.bf16.mxu0 0
    %570 = vmatpush1.bf16.msra.mxu0 0
    %571 = vmatprep.subr.bf16.mxu0 0
    %572 = vmatpush1.bf16.msra.mxu0 0
    %573 = vmatprep.subr.bf16.mxu0 0
    %574 = vmatpush1.bf16.msra.mxu0 0
    %575 = vmatprep.subr.bf16.mxu0 0
    %576 = vmatpush1.bf16.msra.mxu0 0
    %577 = vmatprep.subr.bf16.mxu0 0
    %578 = vmatpush1.bf16.msra.mxu0 0
    %579 = vmatprep.subr.bf16.mxu0 0
    %580 = vmatpush1.bf16.msra.mxu0 0
    %581 = vmatprep.subr.bf16.mxu0 0
    %582 = vmatpush1.bf16.msra.mxu0 0
    %583 = vmatprep.subr.bf16.mxu0 0
    %584 = vmatpush1.bf16.msra.mxu0 0
    %585 = vmatprep.mubr.bf16.mxu0 0
    %586 = vmatmul.mubr.bf16.gmra.mrb[0].mxu0 %v551
    %v587 = vpop.f32.mrb[0].mxu0
    %v588 = vadd.f32 %v546, %v587
    %v589 = vpop.f32.mrb[0].mxu0
    %v590 = vadd.f32 %v547, %v589
    %v591 = vpop.f32.mrb[0].mxu0
    %v592 = vpop.f32.mrb[0].mxu0
    %593 = vdwg.mxu0
    %v594 = vxor.u32 %v588, 2147483648
    %v595 = vxor.u32 %v590, 2147483648
    %v596 = vmul.f32 %v594, 1.442695
    %v597 = vpow.pop %v596
    %v598 = vmul.f32 %v595, 1.442695
    %v599 = vpow.pop %v598
    %v600 = vadd.f32 %v597, 1.0
    %v601 = vadd.f32 %v599, 1.0
    %v602 = vrcp.pop %v600
    %v603 = vmul.f32 1.0, %v602
    %v604 = vrcp.pop %v601
    %v605 = vmul.f32 1.0, %v604
    %v606 = vmul.f32 %v603, %v538
    %v607 = vtanh.pop %v590
    %609 = vrot.lane.b32.xlu0 %v607, 64
    %v610 = vpop.permute.xlu0 %609
    %v612 = vmul.f32 %v603, %v610
    %614 = vrot.lane.b32.xlu0 %v612, 64
    %v615 = vpop.permute.xlu0 %614
    %v617 = vadd.f32 %v606, %v615
    %v618 = vtanh.pop %v617
    %620 = vrot.lane.b32.xlu0 %v618, 64
    %v621 = vpop.permute.xlu0 %620
    %v623 = vmul.f32 %v605, %v621
    %v624 = vpack.c.bf16 %v623, %v623
    %v626 = vsel %vm306, %v624, 0
    %628 = vmatprep.subr.bf16.mxu0 %v291
    %629 = vmatpush1.bf16.msra.mxu0 %v290
    %630 = vmatprep.subr.bf16.mxu0 %v293
    %631 = vmatpush1.bf16.msra.mxu0 %v292
    %632 = vmatprep.subr.bf16.mxu0 %v295
    %633 = vmatpush1.bf16.msra.mxu0 %v294
    %634 = vmatprep.subr.bf16.mxu0 %v297
    %635 = vmatpush1.bf16.msra.mxu0 %v296
    %636 = vmatprep.subr.bf16.mxu0 0
    %637 = vmatpush1.bf16.msra.mxu0 0
    %638 = vmatprep.subr.bf16.mxu0 0
    %639 = vmatpush1.bf16.msra.mxu0 0
    %640 = vmatprep.subr.bf16.mxu0 0
    %641 = vmatpush1.bf16.msra.mxu0 0
    %642 = vmatprep.subr.bf16.mxu0 0
    %643 = vmatpush1.bf16.msra.mxu0 0
    %644 = vmatprep.subr.bf16.mxu0 0
    %645 = vmatpush1.bf16.msra.mxu0 0
    %646 = vmatprep.subr.bf16.mxu0 0
    %647 = vmatpush1.bf16.msra.mxu0 0
    %648 = vmatprep.subr.bf16.mxu0 0
    %649 = vmatpush1.bf16.msra.mxu0 0
    %650 = vmatprep.subr.bf16.mxu0 0
    %651 = vmatpush1.bf16.msra.mxu0 0
    %652 = vmatprep.subr.bf16.mxu0 0
    %653 = vmatpush1.bf16.msra.mxu0 0
    %654 = vmatprep.subr.bf16.mxu0 0
    %655 = vmatpush1.bf16.msra.mxu0 0
    %656 = vmatprep.subr.bf16.mxu0 0
    %657 = vmatpush1.bf16.msra.mxu0 0
    %658 = vmatprep.subr.bf16.mxu0 0
    %659 = vmatpush1.bf16.msra.mxu0 0
    %660 = vmatprep.mubr.bf16.mxu0 0
    %661 = vmatmul.mubr.bf16.gmra.mrb[0].mxu0 %v626
    %v662 = vpop.f32.mrb[0].mxu0
    %v663 = vadd.f32 %v253, %v662
    %v664 = vpop.f32.mrb[0].mxu0
    %v665 = vadd.f32 %v254, %v664
    %v666 = vpop.f32.mrb[0].mxu0
    %v667 = vpop.f32.mrb[0].mxu0
    %668 = vdwg.mxu0
    %v669 = vxor.u32 %v663, 2147483648
    %v670 = vxor.u32 %v665, 2147483648
    %v671 = vmul.f32 %v669, 1.442695
    %v672 = vpow.pop %v671
    %v673 = vmul.f32 %v670, 1.442695
    %v674 = vpow.pop %v673
    %v675 = vadd.f32 %v672, 1.0
    %v676 = vadd.f32 %v674, 1.0
    %v677 = vrcp.pop %v675
    %v678 = vmul.f32 1.0, %v677
    %v679 = vrcp.pop %v676
    %v680 = vmul.f32 1.0, %v679
    %v681 = vmul.f32 %v678, %v617
    %v682 = vtanh.pop %v665
    %684 = vrot.lane.b32.xlu0 %v682, 64
    %v685 = vpop.permute.xlu0 %684
    %v687 = vmul.f32 %v678, %v685
    %689 = vrot.lane.b32.xlu0 %v687, 64
    %v690 = vpop.permute.xlu0 %689
    %v692 = vadd.f32 %v681, %v690
    %v693 = vtanh.pop %v692
    %695 = vrot.lane.b32.xlu0 %v693, 64
    %v696 = vpop.permute.xlu0 %695
    %v698 = vmul.f32 %v680, %v696
    %v699 = vpack.c.bf16 %v698, %v698
    %v702 = vrot.slane %v253, 2
    %v703 = vrot.slane %v254, 2
    %v707 = vsel %vm306, %v699, 0
    %709 = vmatprep.subr.bf16.mxu0 %v291
    %710 = vmatpush1.bf16.msra.mxu0 %v290
    %711 = vmatprep.subr.bf16.mxu0 %v293
    %712 = vmatpush1.bf16.msra.mxu0 %v292
    %713 = vmatprep.subr.bf16.mxu0 %v295
    %714 = vmatpush1.bf16.msra.mxu0 %v294
    %715 = vmatprep.subr.bf16.mxu0 %v297
    %716 = vmatpush1.bf16.msra.mxu0 %v296
    %717 = vmatprep.subr.bf16.mxu0 0
    %718 = vmatpush1.bf16.msra.mxu0 0
    %719 = vmatprep.subr.bf16.mxu0 0
    %720 = vmatpush1.bf16.msra.mxu0 0
    %721 = vmatprep.subr.bf16.mxu0 0
    %722 = vmatpush1.bf16.msra.mxu0 0
    %723 = vmatprep.subr.bf16.mxu0 0
    %724 = vmatpush1.bf16.msra.mxu0 0
    %725 = vmatprep.subr.bf16.mxu0 0
    %726 = vmatpush1.bf16.msra.mxu0 0
    %727 = vmatprep.subr.bf16.mxu0 0
    %728 = vmatpush1.bf16.msra.mxu0 0
    %729 = vmatprep.subr.bf16.mxu0 0
    %730 = vmatpush1.bf16.msra.mxu0 0
    %731 = vmatprep.subr.bf16.mxu0 0
    %732 = vmatpush1.bf16.msra.mxu0 0
    %733 = vmatprep.subr.bf16.mxu0 0
    %734 = vmatpush1.bf16.msra.mxu0 0
    %735 = vmatprep.subr.bf16.mxu0 0
    %736 = vmatpush1.bf16.msra.mxu0 0
    %737 = vmatprep.subr.bf16.mxu0 0
    %738 = vmatpush1.bf16.msra.mxu0 0
    %739 = vmatprep.subr.bf16.mxu0 0
    %740 = vmatpush1.bf16.msra.mxu0 0
    %741 = vmatprep.mubr.bf16.mxu0 0
    %742 = vmatmul.mubr.bf16.gmra.mrb[0].mxu0 %v707
    %v743 = vpop.f32.mrb[0].mxu0
    %v744 = vadd.f32 %v702, %v743
    %v745 = vpop.f32.mrb[0].mxu0
    %v746 = vadd.f32 %v703, %v745
    %v747 = vpop.f32.mrb[0].mxu0
    %v748 = vpop.f32.mrb[0].mxu0
    %749 = vdwg.mxu0
    %v750 = vxor.u32 %v744, 2147483648
    %v751 = vxor.u32 %v746, 2147483648
    %v752 = vmul.f32 %v750, 1.442695
    %v753 = vpow.pop %v752
    %v754 = vmul.f32 %v751, 1.442695
    %v755 = vpow.pop %v754
    %v756 = vadd.f32 %v753, 1.0
    %v757 = vadd.f32 %v755, 1.0
    %v758 = vrcp.pop %v756
    %v759 = vmul.f32 1.0, %v758
    %v760 = vrcp.pop %v757
    %v761 = vmul.f32 1.0, %v760
    %v762 = vmul.f32 %v759, %v692
    %v763 = vtanh.pop %v746
    %765 = vrot.lane.b32.xlu0 %v763, 64
    %v766 = vpop.permute.xlu0 %765
    %v768 = vmul.f32 %v759, %v766
    %770 = vrot.lane.b32.xlu0 %v768, 64
    %v771 = vpop.permute.xlu0 %770
    %v773 = vadd.f32 %v762, %v771
    %v774 = vtanh.pop %v773
    %776 = vrot.lane.b32.xlu0 %v774, 64
    %v777 = vpop.permute.xlu0 %776
    %v779 = vmul.f32 %v761, %v777
    %v780 = vpack.c.bf16 %v779, %v779
    %v781 = vrot.slane %v253, 4
    %v782 = vrot.slane %v254, 4
    %v786 = vsel %vm306, %v780, 0
    %788 = vmatprep.subr.bf16.mxu0 %v291
    %789 = vmatpush1.bf16.msra.mxu0 %v290
    %790 = vmatprep.subr.bf16.mxu0 %v293
    %791 = vmatpush1.bf16.msra.mxu0 %v292
    %792 = vmatprep.subr.bf16.mxu0 %v295
    %793 = vmatpush1.bf16.msra.mxu0 %v294
    %794 = vmatprep.subr.bf16.mxu0 %v297
    %795 = vmatpush1.bf16.msra.mxu0 %v296
    %796 = vmatprep.subr.bf16.mxu0 0
    %797 = vmatpush1.bf16.msra.mxu0 0
    %798 = vmatprep.subr.bf16.mxu0 0
    %799 = vmatpush1.bf16.msra.mxu0 0
    %800 = vmatprep.subr.bf16.mxu0 0
    %801 = vmatpush1.bf16.msra.mxu0 0
    %802 = vmatprep.subr.bf16.mxu0 0
    %803 = vmatpush1.bf16.msra.mxu0 0
    %804 = vmatprep.subr.bf16.mxu0 0
    %805 = vmatpush1.bf16.msra.mxu0 0
    %806 = vmatprep.subr.bf16.mxu0 0
    %807 = vmatpush1.bf16.msra.mxu0 0
    %808 = vmatprep.subr.bf16.mxu0 0
    %809 = vmatpush1.bf16.msra.mxu0 0
    %810 = vmatprep.subr.bf16.mxu0 0
    %811 = vmatpush1.bf16.msra.mxu0 0
    %812 = vmatprep.subr.bf16.mxu0 0
    %813 = vmatpush1.bf16.msra.mxu0 0
    %814 = vmatprep.subr.bf16.mxu0 0
    %815 = vmatpush1.bf16.msra.mxu0 0
    %816 = vmatprep.subr.bf16.mxu0 0
    %817 = vmatpush1.bf16.msra.mxu0 0
    %818 = vmatprep.subr.bf16.mxu0 0
    %819 = vmatpush1.bf16.msra.mxu0 0
    %820 = vmatprep.mubr.bf16.mxu0 0
    %821 = vmatmul.mubr.bf16.gmra.mrb[0].mxu0 %v786
    %v822 = vpop.f32.mrb[0].mxu0
    %v823 = vadd.f32 %v781, %v822
    %v824 = vpop.f32.mrb[0].mxu0
    %v825 = vadd.f32 %v782, %v824
    %v826 = vpop.f32.mrb[0].mxu0
    %v827 = vpop.f32.mrb[0].mxu0
    %828 = vdwg.mxu0
    %v829 = vxor.u32 %v823, 2147483648
    %v830 = vxor.u32 %v825, 2147483648
    %v831 = vmul.f32 %v829, 1.442695
    %v832 = vpow.pop %v831
    %v833 = vmul.f32 %v830, 1.442695
    %v834 = vpow.pop %v833
    %v835 = vadd.f32 %v832, 1.0
    %v836 = vadd.f32 %v834, 1.0
    %v837 = vrcp.pop %v835
    %v838 = vmul.f32 1.0, %v837
    %v839 = vrcp.pop %v836
    %v840 = vmul.f32 1.0, %v839
    %v841 = vmul.f32 %v838, %v773
    %v842 = vtanh.pop %v825
    %844 = vrot.lane.b32.xlu0 %v842, 64
    %v845 = vpop.permute.xlu0 %844
    %v847 = vmul.f32 %v838, %v845
    %849 = vrot.lane.b32.xlu0 %v847, 64
    %v850 = vpop.permute.xlu0 %849
    %v852 = vadd.f32 %v841, %v850
    %v853 = vtanh.pop %v852
    %855 = vrot.lane.b32.xlu0 %v853, 64
    %v856 = vpop.permute.xlu0 %855
    %v858 = vmul.f32 %v840, %v856
    %v859 = vpack.c.bf16 %v858, %v858
    %v860 = vrot.slane %v253, 6
    %v861 = vrot.slane %v254, 6
    %v865 = vsel %vm306, %v859, 0
    %867 = vmatprep.subr.bf16.mxu0 %v291
    %868 = vmatpush1.bf16.msra.mxu0 %v290
    %869 = vmatprep.subr.bf16.mxu0 %v293
    %870 = vmatpush1.bf16.msra.mxu0 %v292
    %871 = vmatprep.subr.bf16.mxu0 %v295
    %872 = vmatpush1.bf16.msra.mxu0 %v294
    %873 = vmatprep.subr.bf16.mxu0 %v297
    %874 = vmatpush1.bf16.msra.mxu0 %v296
    %875 = vmatprep.subr.bf16.mxu0 0
    %876 = vmatpush1.bf16.msra.mxu0 0
    %877 = vmatprep.subr.bf16.mxu0 0
    %878 = vmatpush1.bf16.msra.mxu0 0
    %879 = vmatprep.subr.bf16.mxu0 0
    %880 = vmatpush1.bf16.msra.mxu0 0
    %881 = vmatprep.subr.bf16.mxu0 0
    %882 = vmatpush1.bf16.msra.mxu0 0
    %883 = vmatprep.subr.bf16.mxu0 0
    %884 = vmatpush1.bf16.msra.mxu0 0
    %885 = vmatprep.subr.bf16.mxu0 0
    %886 = vmatpush1.bf16.msra.mxu0 0
    %887 = vmatprep.subr.bf16.mxu0 0
    %888 = vmatpush1.bf16.msra.mxu0 0
    %889 = vmatprep.subr.bf16.mxu0 0
    %890 = vmatpush1.bf16.msra.mxu0 0
    %891 = vmatprep.subr.bf16.mxu0 0
    %892 = vmatpush1.bf16.msra.mxu0 0
    %893 = vmatprep.subr.bf16.mxu0 0
    %894 = vmatpush1.bf16.msra.mxu0 0
    %895 = vmatprep.subr.bf16.mxu0 0
    %896 = vmatpush1.bf16.msra.mxu0 0
    %897 = vmatprep.subr.bf16.mxu0 0
    %898 = vmatpush1.bf16.msra.mxu0 0
    %899 = vmatprep.mubr.bf16.mxu0 0
    %900 = vmatmul.mubr.bf16.gmra.mrb[0].mxu0 %v865
    %v901 = vpop.f32.mrb[0].mxu0
    %v902 = vadd.f32 %v860, %v901
    %v903 = vpop.f32.mrb[0].mxu0
    %v904 = vadd.f32 %v861, %v903
    %v905 = vpop.f32.mrb[0].mxu0
    %v906 = vpop.f32.mrb[0].mxu0
    %907 = vdwg.mxu0
    %v908 = vxor.u32 %v902, 2147483648
    %v909 = vxor.u32 %v904, 2147483648
    %v910 = vmul.f32 %v908, 1.442695
    %v911 = vpow.pop %v910
    %v912 = vmul.f32 %v909, 1.442695
    %v913 = vpow.pop %v912
    %v914 = vadd.f32 %v911, 1.0
    %v915 = vadd.f32 %v913, 1.0
    %v916 = vrcp.pop %v914
    %v917 = vmul.f32 1.0, %v916
    %v918 = vrcp.pop %v915
    %v919 = vmul.f32 1.0, %v918
    %v920 = vmul.f32 %v917, %v852
    %v921 = vtanh.pop %v904
    %923 = vrot.lane.b32.xlu0 %v921, 64
    %v924 = vpop.permute.xlu0 %923
    %v926 = vmul.f32 %v917, %v924
    %928 = vrot.lane.b32.xlu0 %v926, 64
    %v929 = vpop.permute.xlu0 %928
    %v931 = vadd.f32 %v920, %v929
    %v932 = vtanh.pop %v931
    %934 = vrot.lane.b32.xlu0 %v932, 64
    %v935 = vpop.permute.xlu0 %934
    %v937 = vmul.f32 %v919, %v935
    %v938 = vsel %vm111, %v384, %v937
    %v939 = vsel %vm111, %v465, %v858
    %v940 = vsel %vm111, %v544, %v779
    %v941 = vsel %vm111, %v623, %v698
    %v942 = vsel %vm111, %v698, %v623
    %v943 = vsel %vm111, %v779, %v544
    %v944 = vsel %vm111, %v858, %v465
    %v945 = vsel %vm111, %v937, %v384
    %v947 = vrot.slane %v939, 6
    %v950 = vrot.slane %v940, 4
    %v953 = vrot.slane %v941, 2
    %v956 = vrot.slane %v943, 6
    %v959 = vrot.slane %v944, 4
    %v962 = vrot.slane %v945, 2
    %v964 = vsel %vm236, %v938, %v947
    %v965 = vsel %vm239, %v964, %v950
    %v966 = vsel %vm242, %v965, %v953
    %v967 = vsel %vm236, %v942, %v956
    %v968 = vsel %vm239, %v967, %v959
    %v969 = vsel %vm242, %v968, %v962
    %v970 = vpack.c.bf16 %v969, %v966
    %v971 = vld [vmem:[%s5] sm:$0xff]
    %v972 = vld [vmem:[%s5 + $0x8] sm:$0xf]
    %v973 = vld [vmem:[%s5 + $0xc] sm:$0xff]
    %v974 = vld [vmem:[%s5 + $0x14] sm:$0xf]
    %v975 = vld [vmem:[%s5 + $0x18] sm:$0xff]
    %v976 = vld [vmem:[%s5 + $0x20] sm:$0xf]
    %v977 = vld [vmem:[%s5 + $0x24] sm:$0xff]
    %v978 = vld [vmem:[%s5 + $0x2c] sm:$0xf]
    %v979 = vld [vmem:[%s5 + $0x30] sm:$0xff]
    %v980 = vld [vmem:[%s5 + $0x38] sm:$0xf]
    %v981 = vld [vmem:[%s5 + $0x3c] sm:$0xff]
    %v982 = vld [vmem:[%s5 + $0x44] sm:$0xf]
    %v983 = vld [vmem:[%s5 + $0x48] sm:$0xff]
    %v984 = vld [vmem:[%s5 + $0x50] sm:$0xf]
    %v985 = vld [vmem:[%s5 + $0x54] sm:$0xff]
    %v986 = vld [vmem:[%s5 + $0x5c] sm:$0xf]
    %v1003 = vunpack.c.l.b16 %v971
    %v1004 = vunpack.c.h.b16 %v971
    %v1005 = vunpack.c.l.b16 %v972
    %v1006 = vunpack.c.l.b16 %v973
    %v1007 = vunpack.c.h.b16 %v973
    %v1008 = vunpack.c.l.b16 %v974
    %v1009 = vunpack.c.l.b16 %v975
    %v1010 = vunpack.c.h.b16 %v975
    %v1011 = vunpack.c.l.b16 %v976
    %v1012 = vunpack.c.l.b16 %v977
    %v1013 = vunpack.c.h.b16 %v977
    %v1014 = vunpack.c.l.b16 %v978
    %v1015 = vunpack.c.l.b16 %v979
    %v1016 = vunpack.c.h.b16 %v979
    %v1017 = vunpack.c.l.b16 %v980
    %v1018 = vunpack.c.l.b16 %v981
    %v1019 = vunpack.c.h.b16 %v981
    %v1020 = vunpack.c.l.b16 %v982
    %v1021 = vunpack.c.l.b16 %v983
    %v1022 = vunpack.c.h.b16 %v983
    %v1023 = vunpack.c.l.b16 %v984
    %v1024 = vunpack.c.l.b16 %v985
    %v1025 = vunpack.c.h.b16 %v985
    %v1026 = vunpack.c.l.b16 %v986
    %v1027 = vpack.c.b16 %v1006, %v1003
    %v1028 = vpack.c.b16 %v1007, %v1004
    %v1029 = vpack.c.b16 %v1008, %v1005
    %v1030 = vpack.c.b16 %v1012, %v1009
    %v1031 = vpack.c.b16 %v1013, %v1010
    %v1032 = vpack.c.b16 %v1014, %v1011
    %v1033 = vpack.c.b16 %v1018, %v1015
    %v1034 = vpack.c.b16 %v1019, %v1016
    %v1035 = vpack.c.b16 %v1020, %v1017
    %v1036 = vpack.c.b16 %v1024, %v1021
    %v1037 = vpack.c.b16 %v1025, %v1022
    %v1038 = vpack.c.b16 %v1026, %v1023
    %v1052 = vsel %vm306, %v970, 0
    %1054 = vmatprep.subr.bf16.mxu0 %v1028
    %1055 = vmatpush1.bf16.msra.mxu0 %v1027
    %1056 = vmatprep.subr.bf16.mxu0 %v1031
    %1057 = vmatpush1.bf16.msra.mxu0 %v1030
    %1058 = vmatprep.subr.bf16.mxu0 %v1034
    %1059 = vmatpush1.bf16.msra.mxu0 %v1033
    %1060 = vmatprep.subr.bf16.mxu0 %v1037
    %1061 = vmatpush1.bf16.msra.mxu0 %v1036
    %1062 = vmatprep.subr.bf16.mxu0 0
    %1063 = vmatpush1.bf16.msra.mxu0 0
    %1064 = vmatprep.subr.bf16.mxu0 0
    %1065 = vmatpush1.bf16.msra.mxu0 0
    %1066 = vmatprep.subr.bf16.mxu0 0
    %1067 = vmatpush1.bf16.msra.mxu0 0
    %1068 = vmatprep.subr.bf16.mxu0 0
    %1069 = vmatpush1.bf16.msra.mxu0 0
    %1070 = vmatprep.subr.bf16.mxu0 0
    %1071 = vmatpush1.bf16.msra.mxu0 0
    %1072 = vmatprep.subr.bf16.mxu0 0
    %1073 = vmatpush1.bf16.msra.mxu0 0
    %1074 = vmatprep.subr.bf16.mxu0 0
    %1075 = vmatpush1.bf16.msra.mxu0 0
    %1076 = vmatprep.subr.bf16.mxu0 0
    %1077 = vmatpush1.bf16.msra.mxu0 0
    %1078 = vmatprep.subr.bf16.mxu0 0
    %1079 = vmatpush1.bf16.msra.mxu0 0
    %1080 = vmatprep.subr.bf16.mxu0 0
    %1081 = vmatpush1.bf16.msra.mxu0 0
    %1082 = vmatprep.subr.bf16.mxu0 0
    %1083 = vmatpush1.bf16.msra.mxu0 0
    %1084 = vmatprep.subr.bf16.mxu0 0
    %1085 = vmatpush1.bf16.msra.mxu0 0
    %1086 = vmatprep.mubr.bf16.mxu0 0
    %1087 = vmatmul.mubr.bf16.gmra.mrb[0].mxu0 %v1052
    %v1088 = vpop.f32.mrb[0].mxu0
    %v1089 = vadd.f32 0.0, %v1088
    %v1090 = vpop.f32.mrb[0].mxu0
    %v1091 = vadd.f32 0.0, %v1090
    %v1092 = vpop.f32.mrb[0].mxu0
    %v1093 = vadd.f32 0.0, %v1092
    %v1094 = vpop.f32.mrb[0].mxu0
    %v1095 = vadd.f32 0.0, %v1094
    %1096 = vdwg.mxu0
    %1097 = vmatprep.subr.bf16.mxu0 0
    %1098 = vmatpush1.bf16.msra.mxu0 %v1029
    %1099 = vmatprep.subr.bf16.mxu0 0
    %1100 = vmatpush1.bf16.msra.mxu0 %v1032
    %1101 = vmatprep.subr.bf16.mxu0 0
    %1102 = vmatpush1.bf16.msra.mxu0 %v1035
    %1103 = vmatprep.subr.bf16.mxu0 0
    %1104 = vmatpush1.bf16.msra.mxu0 %v1038
    %1105 = vmatprep.subr.bf16.mxu0 0
    %1106 = vmatpush1.bf16.msra.mxu0 0
    %1107 = vmatprep.subr.bf16.mxu0 0
    %1108 = vmatpush1.bf16.msra.mxu0 0
    %1109 = vmatprep.subr.bf16.mxu0 0
    %1110 = vmatpush1.bf16.msra.mxu0 0
    %1111 = vmatprep.subr.bf16.mxu0 0
    %1112 = vmatpush1.bf16.msra.mxu0 0
    %1113 = vmatprep.subr.bf16.mxu0 0
    %1114 = vmatpush1.bf16.msra.mxu0 0
    %1115 = vmatprep.subr.bf16.mxu0 0
    %1116 = vmatpush1.bf16.msra.mxu0 0
    %1117 = vmatprep.subr.bf16.mxu0 0
    %1118 = vmatpush1.bf16.msra.mxu0 0
    %1119 = vmatprep.subr.bf16.mxu0 0
    %1120 = vmatpush1.bf16.msra.mxu0 0
    %1121 = vmatprep.subr.bf16.mxu0 0
    %1122 = vmatpush1.bf16.msra.mxu0 0
    %1123 = vmatprep.subr.bf16.mxu0 0
    %1124 = vmatpush1.bf16.msra.mxu0 0
    %1125 = vmatprep.subr.bf16.mxu0 0
    %1126 = vmatpush1.bf16.msra.mxu0 0
    %1127 = vmatprep.subr.bf16.mxu0 0
    %1128 = vmatpush1.bf16.msra.mxu0 0
    %1129 = vmatprep.mubr.bf16.mxu0 0
    %1130 = vmatmul.mubr.bf16.gmra.mrb[0].mxu0 %v1052
    %v1131 = vpop.f32.mrb[0].mxu0
    %v1132 = vadd.f32 0.0, %v1131
    %v1133 = vpop.f32.mrb[0].mxu0
    %v1134 = vpop.f32.mrb[0].mxu0
    %v1135 = vadd.f32 0.0, %v1134
    %v1136 = vpop.f32.mrb[0].mxu0
    %1137 = vdwg.mxu0
    %v1139 = vlaneseq
    %v1140 = vshrl.u32 %v1139, 7
    %v1141 = vsub.s32 0, %v1140
    %v1142 = vrot.slane %v51, %v1141
    %v1143 = vlaneseq
    %v1144 = vshrl.u32 %v1143, 7
    %v1145 = vsub.s32 1, %v1144
    %v1146 = vrot.slane %v51, %v1145
    %v1149 = vadd.f32 %v1089, %v1142
    %v1150 = vadd.f32 %v1091, %v1146
    %v1151 = vadd.f32 %v1093, %v1142
    %v1152 = vadd.f32 %v1095, %v1146
    %v1155 = vrot.slane %v1095, 6
    %v1156 = vrot.slane %v1135, 6
    %v1159 = vrot.slane %v1095, 2
    %v1160 = vrot.slane %v1135, 2
    %v1165 = vrot.slane %v1091, 6
    %v1166 = vrot.slane %v1132, 6
    %v1169 = vrot.slane %v1091, 2
    %v1170 = vrot.slane %v1132, 2
    %v1173 = vsel %vm236, %v1155, %v1159
    %v1174 = vsel %vm236, %v1156, %v1160
    %v1175 = vsel %vm239, %v1173, %v1155
    %v1176 = vsel %vm239, %v1174, %v1156
    %v1177 = vsel %vm242, %v1175, %v1159
    %v1178 = vsel %vm242, %v1176, %v1160
    %v1179 = vsel %vm236, %v1165, %v1169
    %v1180 = vsel %vm236, %v1166, %v1170
    %v1181 = vsel %vm239, %v1179, %v1165
    %v1182 = vsel %vm239, %v1180, %v1166
    %v1183 = vsel %vm242, %v1181, %v1169
    %v1184 = vsel %vm242, %v1182, %v1170
    %1189 = vrot.lane.b32.xlu0 %v1177, 64
    %v1190 = vpop.permute.xlu0 %1189
    %1191 = vrot.lane.b32.xlu0 %v1178, 64
    %v1192 = vpop.permute.xlu0 %1191
    %1193 = vrot.lane.b32.xlu0 %v1183, 64
    %v1194 = vpop.permute.xlu0 %1193
    %1195 = vrot.lane.b32.xlu0 %v1184, 64
    %v1196 = vpop.permute.xlu0 %1195
    %v1197 = vsel %vm306, %v1190, %v1192
    %v1198 = vsel %vm306, %v1194, %v1196
    %v1203 = vadd.f32 %v1149, %v1197
    %v1204 = vadd.f32 %v1150, %v1192
    %v1205 = vadd.f32 %v1151, %v1198
    %v1206 = vadd.f32 %v1152, %v1196
    %v1207 = vld [vmem:[%s6] sm:$0xff]
    %v1208 = vld [vmem:[%s6 + $0x8] sm:$0xff]
    %v1209 = vld [vmem:[%s6 + $0x10] sm:$0xff]
    %v1210 = vld [vmem:[%s6 + $0x18] sm:$0xff]
    %v1211 = vld [vmem:[%s6 + $0x20] sm:$0xff]
    %v1212 = vld [vmem:[%s6 + $0x28] sm:$0xff]
    %v1213 = vld [vmem:[%s6 + $0x30] sm:$0xff]
    %v1214 = vld [vmem:[%s6 + $0x38] sm:$0xff]
    %v1215 = vpack.c.bf16 %v937, %v937
    %v1224 = vunpack.c.l.b16 %v1207
    %v1225 = vunpack.c.h.b16 %v1207
    %v1226 = vunpack.c.l.b16 %v1208
    %v1227 = vunpack.c.h.b16 %v1208
    %v1228 = vunpack.c.l.b16 %v1209
    %v1229 = vunpack.c.h.b16 %v1209
    %v1230 = vunpack.c.l.b16 %v1210
    %v1231 = vunpack.c.h.b16 %v1210
    %v1232 = vunpack.c.l.b16 %v1211
    %v1233 = vunpack.c.h.b16 %v1211
    %v1234 = vunpack.c.l.b16 %v1212
    %v1235 = vunpack.c.h.b16 %v1212
    %v1236 = vunpack.c.l.b16 %v1213
    %v1237 = vunpack.c.h.b16 %v1213
    %v1238 = vunpack.c.l.b16 %v1214
    %v1239 = vunpack.c.h.b16 %v1214
    %v1240 = vpack.c.b16 %v1226, %v1224
    %v1241 = vpack.c.b16 %v1227, %v1225
    %v1242 = vpack.c.b16 %v1230, %v1228
    %v1243 = vpack.c.b16 %v1231, %v1229
    %v1244 = vpack.c.b16 %v1234, %v1232
    %v1245 = vpack.c.b16 %v1235, %v1233
    %v1246 = vpack.c.b16 %v1238, %v1236
    %v1247 = vpack.c.b16 %v1239, %v1237
    %v1257 = vsel %vm306, %v1215, 0
    %1259 = vmatprep.subr.bf16.mxu0 %v1241
    %1260 = vmatpush1.bf16.msra.mxu0 %v1240
    %1261 = vmatprep.subr.bf16.mxu0 %v1243
    %1262 = vmatpush1.bf16.msra.mxu0 %v1242
    %1263 = vmatprep.subr.bf16.mxu0 %v1245
    %1264 = vmatpush1.bf16.msra.mxu0 %v1244
    %1265 = vmatprep.subr.bf16.mxu0 %v1247
    %1266 = vmatpush1.bf16.msra.mxu0 %v1246
    %1267 = vmatprep.subr.bf16.mxu0 0
    %1268 = vmatpush1.bf16.msra.mxu0 0
    %1269 = vmatprep.subr.bf16.mxu0 0
    %1270 = vmatpush1.bf16.msra.mxu0 0
    %1271 = vmatprep.subr.bf16.mxu0 0
    %1272 = vmatpush1.bf16.msra.mxu0 0
    %1273 = vmatprep.subr.bf16.mxu0 0
    %1274 = vmatpush1.bf16.msra.mxu0 0
    %1275 = vmatprep.subr.bf16.mxu0 0
    %1276 = vmatpush1.bf16.msra.mxu0 0
    %1277 = vmatprep.subr.bf16.mxu0 0
    %1278 = vmatpush1.bf16.msra.mxu0 0
    %1279 = vmatprep.subr.bf16.mxu0 0
    %1280 = vmatpush1.bf16.msra.mxu0 0
    %1281 = vmatprep.subr.bf16.mxu0 0
    %1282 = vmatpush1.bf16.msra.mxu0 0
    %1283 = vmatprep.subr.bf16.mxu0 0
    %1284 = vmatpush1.bf16.msra.mxu0 0
    %1285 = vmatprep.subr.bf16.mxu0 0
    %1286 = vmatpush1.bf16.msra.mxu0 0
    %1287 = vmatprep.subr.bf16.mxu0 0
    %1288 = vmatpush1.bf16.msra.mxu0 0
    %1289 = vmatprep.subr.bf16.mxu0 0
    %1290 = vmatpush1.bf16.msra.mxu0 0
    %1291 = vmatprep.mubr.bf16.mxu0 0
    %1292 = vmatmul.mubr.bf16.gmra.mrb[0].mxu0 %v1257
    %v1293 = vpop.f32.mrb[0].mxu0
    %v1294 = vadd.f32 0.0, %v1293
    %v1295 = vpop.f32.mrb[0].mxu0
    %v1296 = vadd.f32 0.0, %v1295
    %v1297 = vpop.f32.mrb[0].mxu0
    %v1298 = vpop.f32.mrb[0].mxu0
    %1299 = vdwg.mxu0
    %v1300 = vadd.f32 %v1203, %v1294
    %v1301 = vxor.u32 %v1300, 2147483648
    %v1302 = vmul.f32 %v1301, 1.442695
    %v1303 = vpow.pop %v1302
    %v1304 = vadd.f32 %v1303, 1.0
    %v1305 = vrcp.pop %v1304
    %v1306 = vmul.f32 1.0, %v1305
    %v1307 = vadd.f32 %v1296, %v52
    %v1308 = vmul.f32 %v1306, %v1307
    %v1309 = vadd.f32 %v1204, %v1308
    %v1310 = vtanh.pop %v1309
    %v1311 = vsub.f32 1.0, %v1306
    %1313 = vrot.lane.b32.xlu0 %v1310, 64
    %v1314 = vpop.permute.xlu0 %1313
    %v1316 = vmul.f32 %v1311, %v1314
    %1318 = vrot.lane.b32.xlu0 %v937, 64
    %v1319 = vpop.permute.xlu0 %1318
    %v1321 = vmul.f32 %v1306, %v1319
    %v1322 = vadd.f32 %v1316, %v1321
    %v1323 = vpack.c.bf16 %v1322, %v1322
    %1325 = vrot.lane.b32.xlu0 %v1323, 64
    %v1326 = vpop.permute.xlu0 %1325
    %v1328 = vsel %vm306, %v1326, 0
    %1330 = vmatprep.subr.bf16.mxu0 %v1241
    %1331 = vmatpush1.bf16.msra.mxu0 %v1240
    %1332 = vmatprep.subr.bf16.mxu0 %v1243
    %1333 = vmatpush1.bf16.msra.mxu0 %v1242
    %1334 = vmatprep.subr.bf16.mxu0 %v1245
    %1335 = vmatpush1.bf16.msra.mxu0 %v1244
    %1336 = vmatprep.subr.bf16.mxu0 %v1247
    %1337 = vmatpush1.bf16.msra.mxu0 %v1246
    %1338 = vmatprep.subr.bf16.mxu0 0
    %1339 = vmatpush1.bf16.msra.mxu0 0
    %1340 = vmatprep.subr.bf16.mxu0 0
    %1341 = vmatpush1.bf16.msra.mxu0 0
    %1342 = vmatprep.subr.bf16.mxu0 0
    %1343 = vmatpush1.bf16.msra.mxu0 0
    %1344 = vmatprep.subr.bf16.mxu0 0
    %1345 = vmatpush1.bf16.msra.mxu0 0
    %1346 = vmatprep.subr.bf16.mxu0 0
    %1347 = vmatpush1.bf16.msra.mxu0 0
    %1348 = vmatprep.subr.bf16.mxu0 0
    %1349 = vmatpush1.bf16.msra.mxu0 0
    %1350 = vmatprep.subr.bf16.mxu0 0
    %1351 = vmatpush1.bf16.msra.mxu0 0
    %1352 = vmatprep.subr.bf16.mxu0 0
    %1353 = vmatpush1.bf16.msra.mxu0 0
    %1354 = vmatprep.subr.bf16.mxu0 0
    %1355 = vmatpush1.bf16.msra.mxu0 0
    %1356 = vmatprep.subr.bf16.mxu0 0
    %1357 = vmatpush1.bf16.msra.mxu0 0
    %1358 = vmatprep.subr.bf16.mxu0 0
    %1359 = vmatpush1.bf16.msra.mxu0 0
    %1360 = vmatprep.subr.bf16.mxu0 0
    %1361 = vmatpush1.bf16.msra.mxu0 0
    %1362 = vmatprep.mubr.bf16.mxu0 0
    %1363 = vmatmul.mubr.bf16.gmra.mrb[0].mxu0 %v1328
    %v1364 = vpop.f32.mrb[0].mxu0
    %v1365 = vadd.f32 0.0, %v1364
    %v1366 = vpop.f32.mrb[0].mxu0
    %v1367 = vadd.f32 0.0, %v1366
    %v1368 = vpop.f32.mrb[0].mxu0
    %v1369 = vpop.f32.mrb[0].mxu0
    %1370 = vdwg.mxu0
    %v1372 = vrot.slane %v1365, 6
    %v1374 = vadd.f32 %v1203, %v1372
    %v1375 = vxor.u32 %v1374, 2147483648
    %v1376 = vmul.f32 %v1375, 1.442695
    %v1377 = vpow.pop %v1376
    %v1378 = vadd.f32 %v1377, 1.0
    %v1379 = vrcp.pop %v1378
    %v1380 = vmul.f32 1.0, %v1379
    %v1381 = vadd.f32 %v1367, %v52
    %v1383 = vrot.slane %v1381, 6
    %v1385 = vmul.f32 %v1380, %v1383
    %v1386 = vadd.f32 %v1204, %v1385
    %v1387 = vtanh.pop %v1386
    %v1388 = vsub.f32 1.0, %v1380
    %1390 = vrot.lane.b32.xlu0 %v1387, 64
    %v1391 = vpop.permute.xlu0 %1390
    %v1393 = vmul.f32 %v1388, %v1391
    %v1395 = vrot.slane %v1322, 6
    %v1397 = vmul.f32 %v1380, %v1395
    %v1398 = vadd.f32 %v1393, %v1397
    %v1399 = vpack.c.bf16 %v1398, %v1398
    %v1401 = vrot.slane %v1399, 1
    %1402 = vrot.lane.b32.xlu0 %v1401, 64
    %v1403 = vpop.permute.xlu0 %1402
    %v1405 = vsel %vm306, %v1403, 0
    %1407 = vmatprep.subr.bf16.mxu0 %v1241
    %1408 = vmatpush1.bf16.msra.mxu0 %v1240
    %1409 = vmatprep.subr.bf16.mxu0 %v1243
    %1410 = vmatpush1.bf16.msra.mxu0 %v1242
    %1411 = vmatprep.subr.bf16.mxu0 %v1245
    %1412 = vmatpush1.bf16.msra.mxu0 %v1244
    %1413 = vmatprep.subr.bf16.mxu0 %v1247
    %1414 = vmatpush1.bf16.msra.mxu0 %v1246
    %1415 = vmatprep.subr.bf16.mxu0 0
    %1416 = vmatpush1.bf16.msra.mxu0 0
    %1417 = vmatprep.subr.bf16.mxu0 0
    %1418 = vmatpush1.bf16.msra.mxu0 0
    %1419 = vmatprep.subr.bf16.mxu0 0
    %1420 = vmatpush1.bf16.msra.mxu0 0
    %1421 = vmatprep.subr.bf16.mxu0 0
    %1422 = vmatpush1.bf16.msra.mxu0 0
    %1423 = vmatprep.subr.bf16.mxu0 0
    %1424 = vmatpush1.bf16.msra.mxu0 0
    %1425 = vmatprep.subr.bf16.mxu0 0
    %1426 = vmatpush1.bf16.msra.mxu0 0
    %1427 = vmatprep.subr.bf16.mxu0 0
    %1428 = vmatpush1.bf16.msra.mxu0 0
    %1429 = vmatprep.subr.bf16.mxu0 0
    %1430 = vmatpush1.bf16.msra.mxu0 0
    %1431 = vmatprep.subr.bf16.mxu0 0
    %1432 = vmatpush1.bf16.msra.mxu0 0
    %1433 = vmatprep.subr.bf16.mxu0 0
    %1434 = vmatpush1.bf16.msra.mxu0 0
    %1435 = vmatprep.subr.bf16.mxu0 0
    %1436 = vmatpush1.bf16.msra.mxu0 0
    %1437 = vmatprep.subr.bf16.mxu0 0
    %1438 = vmatpush1.bf16.msra.mxu0 0
    %1439 = vmatprep.mubr.bf16.mxu0 0
    %1440 = vmatmul.mubr.bf16.gmra.mrb[0].mxu0 %v1405
    %v1441 = vpop.f32.mrb[0].mxu0
    %v1442 = vadd.f32 0.0, %v1441
    %v1443 = vpop.f32.mrb[0].mxu0
    %v1444 = vadd.f32 0.0, %v1443
    %v1445 = vpop.f32.mrb[0].mxu0
    %v1446 = vpop.f32.mrb[0].mxu0
    %1447 = vdwg.mxu0
    %v1449 = vrot.slane %v1442, 4
    %v1451 = vadd.f32 %v1203, %v1449
    %v1452 = vxor.u32 %v1451, 2147483648
    %v1453 = vmul.f32 %v1452, 1.442695
    %v1454 = vpow.pop %v1453
    %v1455 = vadd.f32 %v1454, 1.0
    %v1456 = vrcp.pop %v1455
    %v1457 = vmul.f32 1.0, %v1456
    %v1458 = vadd.f32 %v1444, %v52
    %v1460 = vrot.slane %v1458, 4
    %v1462 = vmul.f32 %v1457, %v1460
    %v1463 = vadd.f32 %v1204, %v1462
    %v1464 = vtanh.pop %v1463
    %v1465 = vsub.f32 1.0, %v1457
    %1467 = vrot.lane.b32.xlu0 %v1464, 64
    %v1468 = vpop.permute.xlu0 %1467
    %v1470 = vmul.f32 %v1465, %v1468
    %v1472 = vrot.slane %v1398, 6
    %v1474 = vmul.f32 %v1457, %v1472
    %v1475 = vadd.f32 %v1470, %v1474
    %v1476 = vpack.c.bf16 %v1475, %v1475
    %v1478 = vrot.slane %v1476, 2
    %1479 = vrot.lane.b32.xlu0 %v1478, 64
    %v1480 = vpop.permute.xlu0 %1479
    %v1482 = vsel %vm306, %v1480, 0
    %1484 = vmatprep.subr.bf16.mxu0 %v1241
    %1485 = vmatpush1.bf16.msra.mxu0 %v1240
    %1486 = vmatprep.subr.bf16.mxu0 %v1243
    %1487 = vmatpush1.bf16.msra.mxu0 %v1242
    %1488 = vmatprep.subr.bf16.mxu0 %v1245
    %1489 = vmatpush1.bf16.msra.mxu0 %v1244
    %1490 = vmatprep.subr.bf16.mxu0 %v1247
    %1491 = vmatpush1.bf16.msra.mxu0 %v1246
    %1492 = vmatprep.subr.bf16.mxu0 0
    %1493 = vmatpush1.bf16.msra.mxu0 0
    %1494 = vmatprep.subr.bf16.mxu0 0
    %1495 = vmatpush1.bf16.msra.mxu0 0
    %1496 = vmatprep.subr.bf16.mxu0 0
    %1497 = vmatpush1.bf16.msra.mxu0 0
    %1498 = vmatprep.subr.bf16.mxu0 0
    %1499 = vmatpush1.bf16.msra.mxu0 0
    %1500 = vmatprep.subr.bf16.mxu0 0
    %1501 = vmatpush1.bf16.msra.mxu0 0
    %1502 = vmatprep.subr.bf16.mxu0 0
    %1503 = vmatpush1.bf16.msra.mxu0 0
    %1504 = vmatprep.subr.bf16.mxu0 0
    %1505 = vmatpush1.bf16.msra.mxu0 0
    %1506 = vmatprep.subr.bf16.mxu0 0
    %1507 = vmatpush1.bf16.msra.mxu0 0
    %1508 = vmatprep.subr.bf16.mxu0 0
    %1509 = vmatpush1.bf16.msra.mxu0 0
    %1510 = vmatprep.subr.bf16.mxu0 0
    %1511 = vmatpush1.bf16.msra.mxu0 0
    %1512 = vmatprep.subr.bf16.mxu0 0
    %1513 = vmatpush1.bf16.msra.mxu0 0
    %1514 = vmatprep.subr.bf16.mxu0 0
    %1515 = vmatpush1.bf16.msra.mxu0 0
    %1516 = vmatprep.mubr.bf16.mxu0 0
    %1517 = vmatmul.mubr.bf16.gmra.mrb[0].mxu0 %v1482
    %v1518 = vpop.f32.mrb[0].mxu0
    %v1519 = vadd.f32 0.0, %v1518
    %v1520 = vpop.f32.mrb[0].mxu0
    %v1521 = vadd.f32 0.0, %v1520
    %v1522 = vpop.f32.mrb[0].mxu0
    %v1523 = vpop.f32.mrb[0].mxu0
    %1524 = vdwg.mxu0
    %v1526 = vrot.slane %v1519, 2
    %v1528 = vadd.f32 %v1203, %v1526
    %v1529 = vxor.u32 %v1528, 2147483648
    %v1530 = vmul.f32 %v1529, 1.442695
    %v1531 = vpow.pop %v1530
    %v1532 = vadd.f32 %v1531, 1.0
    %v1533 = vrcp.pop %v1532
    %v1534 = vmul.f32 1.0, %v1533
    %v1535 = vadd.f32 %v1521, %v52
    %v1537 = vrot.slane %v1535, 2
    %v1539 = vmul.f32 %v1534, %v1537
    %v1540 = vadd.f32 %v1204, %v1539
    %v1541 = vtanh.pop %v1540
    %v1542 = vsub.f32 1.0, %v1534
    %1544 = vrot.lane.b32.xlu0 %v1541, 64
    %v1545 = vpop.permute.xlu0 %1544
    %v1547 = vmul.f32 %v1542, %v1545
    %v1549 = vrot.slane %v1475, 6
    %v1551 = vmul.f32 %v1534, %v1549
    %v1552 = vadd.f32 %v1547, %v1551
    %v1553 = vpack.c.bf16 %v1552, %v1552
    %v1555 = vrot.slane %v1553, 3
    %1556 = vrot.lane.b32.xlu0 %v1555, 64
    %v1557 = vpop.permute.xlu0 %1556
    %v1559 = vsel %vm306, %v1557, 0
    %1561 = vmatprep.subr.bf16.mxu0 %v1241
    %1562 = vmatpush1.bf16.msra.mxu0 %v1240
    %1563 = vmatprep.subr.bf16.mxu0 %v1243
    %1564 = vmatpush1.bf16.msra.mxu0 %v1242
    %1565 = vmatprep.subr.bf16.mxu0 %v1245
    %1566 = vmatpush1.bf16.msra.mxu0 %v1244
    %1567 = vmatprep.subr.bf16.mxu0 %v1247
    %1568 = vmatpush1.bf16.msra.mxu0 %v1246
    %1569 = vmatprep.subr.bf16.mxu0 0
    %1570 = vmatpush1.bf16.msra.mxu0 0
    %1571 = vmatprep.subr.bf16.mxu0 0
    %1572 = vmatpush1.bf16.msra.mxu0 0
    %1573 = vmatprep.subr.bf16.mxu0 0
    %1574 = vmatpush1.bf16.msra.mxu0 0
    %1575 = vmatprep.subr.bf16.mxu0 0
    %1576 = vmatpush1.bf16.msra.mxu0 0
    %1577 = vmatprep.subr.bf16.mxu0 0
    %1578 = vmatpush1.bf16.msra.mxu0 0
    %1579 = vmatprep.subr.bf16.mxu0 0
    %1580 = vmatpush1.bf16.msra.mxu0 0
    %1581 = vmatprep.subr.bf16.mxu0 0
    %1582 = vmatpush1.bf16.msra.mxu0 0
    %1583 = vmatprep.subr.bf16.mxu0 0
    %1584 = vmatpush1.bf16.msra.mxu0 0
    %1585 = vmatprep.subr.bf16.mxu0 0
    %1586 = vmatpush1.bf16.msra.mxu0 0
    %1587 = vmatprep.subr.bf16.mxu0 0
    %1588 = vmatpush1.bf16.msra.mxu0 0
    %1589 = vmatprep.subr.bf16.mxu0 0
    %1590 = vmatpush1.bf16.msra.mxu0 0
    %1591 = vmatprep.subr.bf16.mxu0 0
    %1592 = vmatpush1.bf16.msra.mxu0 0
    %1593 = vmatprep.mubr.bf16.mxu0 0
    %1594 = vmatmul.mubr.bf16.gmra.mrb[0].mxu0 %v1559
    %v1595 = vpop.f32.mrb[0].mxu0
    %v1596 = vadd.f32 0.0, %v1595
    %v1597 = vpop.f32.mrb[0].mxu0
    %v1598 = vadd.f32 0.0, %v1597
    %v1599 = vpop.f32.mrb[0].mxu0
    %v1600 = vpop.f32.mrb[0].mxu0
    %1601 = vdwg.mxu0
    %v1602 = vadd.f32 %v1205, %v1596
    %v1603 = vxor.u32 %v1602, 2147483648
    %v1604 = vmul.f32 %v1603, 1.442695
    %v1605 = vpow.pop %v1604
    %v1606 = vadd.f32 %v1605, 1.0
    %v1607 = vrcp.pop %v1606
    %v1608 = vmul.f32 1.0, %v1607
    %v1609 = vadd.f32 %v1598, %v52
    %v1610 = vmul.f32 %v1608, %v1609
    %v1611 = vadd.f32 %v1206, %v1610
    %v1612 = vtanh.pop %v1611
    %v1613 = vsub.f32 1.0, %v1608
    %1615 = vrot.lane.b32.xlu0 %v1612, 64
    %v1616 = vpop.permute.xlu0 %1615
    %v1618 = vmul.f32 %v1613, %v1616
    %v1620 = vrot.slane %v1552, 6
    %v1622 = vmul.f32 %v1608, %v1620
    %v1623 = vadd.f32 %v1618, %v1622
    %v1624 = vpack.c.bf16 %v1623, %v1623
    %1626 = vrot.lane.b32.xlu0 %v1624, 64
    %v1627 = vpop.permute.xlu0 %1626
    %v1629 = vsel %vm306, %v1627, 0
    %1631 = vmatprep.subr.bf16.mxu0 %v1241
    %1632 = vmatpush1.bf16.msra.mxu0 %v1240
    %1633 = vmatprep.subr.bf16.mxu0 %v1243
    %1634 = vmatpush1.bf16.msra.mxu0 %v1242
    %1635 = vmatprep.subr.bf16.mxu0 %v1245
    %1636 = vmatpush1.bf16.msra.mxu0 %v1244
    %1637 = vmatprep.subr.bf16.mxu0 %v1247
    %1638 = vmatpush1.bf16.msra.mxu0 %v1246
    %1639 = vmatprep.subr.bf16.mxu0 0
    %1640 = vmatpush1.bf16.msra.mxu0 0
    %1641 = vmatprep.subr.bf16.mxu0 0
    %1642 = vmatpush1.bf16.msra.mxu0 0
    %1643 = vmatprep.subr.bf16.mxu0 0
    %1644 = vmatpush1.bf16.msra.mxu0 0
    %1645 = vmatprep.subr.bf16.mxu0 0
    %1646 = vmatpush1.bf16.msra.mxu0 0
    %1647 = vmatprep.subr.bf16.mxu0 0
    %1648 = vmatpush1.bf16.msra.mxu0 0
    %1649 = vmatprep.subr.bf16.mxu0 0
    %1650 = vmatpush1.bf16.msra.mxu0 0
    %1651 = vmatprep.subr.bf16.mxu0 0
    %1652 = vmatpush1.bf16.msra.mxu0 0
    %1653 = vmatprep.subr.bf16.mxu0 0
    %1654 = vmatpush1.bf16.msra.mxu0 0
    %1655 = vmatprep.subr.bf16.mxu0 0
    %1656 = vmatpush1.bf16.msra.mxu0 0
    %1657 = vmatprep.subr.bf16.mxu0 0
    %1658 = vmatpush1.bf16.msra.mxu0 0
    %1659 = vmatprep.subr.bf16.mxu0 0
    %1660 = vmatpush1.bf16.msra.mxu0 0
    %1661 = vmatprep.subr.bf16.mxu0 0
    %1662 = vmatpush1.bf16.msra.mxu0 0
    %1663 = vmatprep.mubr.bf16.mxu0 0
    %1664 = vmatmul.mubr.bf16.gmra.mrb[0].mxu0 %v1629
    %v1665 = vpop.f32.mrb[0].mxu0
    %v1666 = vadd.f32 0.0, %v1665
    %v1667 = vpop.f32.mrb[0].mxu0
    %v1668 = vadd.f32 0.0, %v1667
    %v1669 = vpop.f32.mrb[0].mxu0
    %v1670 = vpop.f32.mrb[0].mxu0
    %1671 = vdwg.mxu0
    %v1673 = vrot.slane %v1666, 6
    %v1675 = vadd.f32 %v1205, %v1673
    %v1676 = vxor.u32 %v1675, 2147483648
    %v1677 = vmul.f32 %v1676, 1.442695
    %v1678 = vpow.pop %v1677
    %v1679 = vadd.f32 %v1678, 1.0
    %v1680 = vrcp.pop %v1679
    %v1681 = vmul.f32 1.0, %v1680
    %v1682 = vadd.f32 %v1668, %v52
    %v1684 = vrot.slane %v1682, 6
    %v1686 = vmul.f32 %v1681, %v1684
    %v1687 = vadd.f32 %v1206, %v1686
    %v1688 = vtanh.pop %v1687
    %v1689 = vsub.f32 1.0, %v1681
    %1691 = vrot.lane.b32.xlu0 %v1688, 64
    %v1692 = vpop.permute.xlu0 %1691
    %v1694 = vmul.f32 %v1689, %v1692
    %v1696 = vrot.slane %v1623, 6
    %v1698 = vmul.f32 %v1681, %v1696
    %v1699 = vadd.f32 %v1694, %v1698
    %v1700 = vpack.c.bf16 %v1699, %v1699
    %v1702 = vrot.slane %v1700, 1
    %1703 = vrot.lane.b32.xlu0 %v1702, 64
    %v1704 = vpop.permute.xlu0 %1703
    %v1706 = vsel %vm306, %v1704, 0
    %1708 = vmatprep.subr.bf16.mxu0 %v1241
    %1709 = vmatpush1.bf16.msra.mxu0 %v1240
    %1710 = vmatprep.subr.bf16.mxu0 %v1243
    %1711 = vmatpush1.bf16.msra.mxu0 %v1242
    %1712 = vmatprep.subr.bf16.mxu0 %v1245
    %1713 = vmatpush1.bf16.msra.mxu0 %v1244
    %1714 = vmatprep.subr.bf16.mxu0 %v1247
    %1715 = vmatpush1.bf16.msra.mxu0 %v1246
    %1716 = vmatprep.subr.bf16.mxu0 0
    %1717 = vmatpush1.bf16.msra.mxu0 0
    %1718 = vmatprep.subr.bf16.mxu0 0
    %1719 = vmatpush1.bf16.msra.mxu0 0
    %1720 = vmatprep.subr.bf16.mxu0 0
    %1721 = vmatpush1.bf16.msra.mxu0 0
    %1722 = vmatprep.subr.bf16.mxu0 0
    %1723 = vmatpush1.bf16.msra.mxu0 0
    %1724 = vmatprep.subr.bf16.mxu0 0
    %1725 = vmatpush1.bf16.msra.mxu0 0
    %1726 = vmatprep.subr.bf16.mxu0 0
    %1727 = vmatpush1.bf16.msra.mxu0 0
    %1728 = vmatprep.subr.bf16.mxu0 0
    %1729 = vmatpush1.bf16.msra.mxu0 0
    %1730 = vmatprep.subr.bf16.mxu0 0
    %1731 = vmatpush1.bf16.msra.mxu0 0
    %1732 = vmatprep.subr.bf16.mxu0 0
    %1733 = vmatpush1.bf16.msra.mxu0 0
    %1734 = vmatprep.subr.bf16.mxu0 0
    %1735 = vmatpush1.bf16.msra.mxu0 0
    %1736 = vmatprep.subr.bf16.mxu0 0
    %1737 = vmatpush1.bf16.msra.mxu0 0
    %1738 = vmatprep.subr.bf16.mxu0 0
    %1739 = vmatpush1.bf16.msra.mxu0 0
    %1740 = vmatprep.mubr.bf16.mxu0 0
    %1741 = vmatmul.mubr.bf16.gmra.mrb[0].mxu0 %v1706
    %v1742 = vpop.f32.mrb[0].mxu0
    %v1743 = vadd.f32 0.0, %v1742
    %v1744 = vpop.f32.mrb[0].mxu0
    %v1745 = vadd.f32 0.0, %v1744
    %v1746 = vpop.f32.mrb[0].mxu0
    %v1747 = vpop.f32.mrb[0].mxu0
    %1748 = vdwg.mxu0
    %v1750 = vrot.slane %v1743, 4
    %v1752 = vadd.f32 %v1205, %v1750
    %v1753 = vxor.u32 %v1752, 2147483648
    %v1754 = vmul.f32 %v1753, 1.442695
    %v1755 = vpow.pop %v1754
    %v1756 = vadd.f32 %v1755, 1.0
    %v1757 = vrcp.pop %v1756
    %v1758 = vmul.f32 1.0, %v1757
    %v1759 = vadd.f32 %v1745, %v52
    %v1761 = vrot.slane %v1759, 4
    %v1763 = vmul.f32 %v1758, %v1761
    %v1764 = vadd.f32 %v1206, %v1763
    %v1765 = vtanh.pop %v1764
    %v1766 = vsub.f32 1.0, %v1758
    %1768 = vrot.lane.b32.xlu0 %v1765, 64
    %v1769 = vpop.permute.xlu0 %1768
    %v1771 = vmul.f32 %v1766, %v1769
    %v1773 = vrot.slane %v1699, 6
    %v1775 = vmul.f32 %v1758, %v1773
    %v1776 = vadd.f32 %v1771, %v1775
    %v1777 = vpack.c.bf16 %v1776, %v1776
    %v1779 = vrot.slane %v1777, 2
    %1780 = vrot.lane.b32.xlu0 %v1779, 64
    %v1781 = vpop.permute.xlu0 %1780
    %v1783 = vsel %vm306, %v1781, 0
    %1785 = vmatprep.subr.bf16.mxu0 %v1241
    %1786 = vmatpush1.bf16.msra.mxu0 %v1240
    %1787 = vmatprep.subr.bf16.mxu0 %v1243
    %1788 = vmatpush1.bf16.msra.mxu0 %v1242
    %1789 = vmatprep.subr.bf16.mxu0 %v1245
    %1790 = vmatpush1.bf16.msra.mxu0 %v1244
    %1791 = vmatprep.subr.bf16.mxu0 %v1247
    %1792 = vmatpush1.bf16.msra.mxu0 %v1246
    %1793 = vmatprep.subr.bf16.mxu0 0
    %1794 = vmatpush1.bf16.msra.mxu0 0
    %1795 = vmatprep.subr.bf16.mxu0 0
    %1796 = vmatpush1.bf16.msra.mxu0 0
    %1797 = vmatprep.subr.bf16.mxu0 0
    %1798 = vmatpush1.bf16.msra.mxu0 0
    %1799 = vmatprep.subr.bf16.mxu0 0
    %1800 = vmatpush1.bf16.msra.mxu0 0
    %1801 = vmatprep.subr.bf16.mxu0 0
    %1802 = vmatpush1.bf16.msra.mxu0 0
    %1803 = vmatprep.subr.bf16.mxu0 0
    %1804 = vmatpush1.bf16.msra.mxu0 0
    %1805 = vmatprep.subr.bf16.mxu0 0
    %1806 = vmatpush1.bf16.msra.mxu0 0
    %1807 = vmatprep.subr.bf16.mxu0 0
    %1808 = vmatpush1.bf16.msra.mxu0 0
    %1809 = vmatprep.subr.bf16.mxu0 0
    %1810 = vmatpush1.bf16.msra.mxu0 0
    %1811 = vmatprep.subr.bf16.mxu0 0
    %1812 = vmatpush1.bf16.msra.mxu0 0
    %1813 = vmatprep.subr.bf16.mxu0 0
    %1814 = vmatpush1.bf16.msra.mxu0 0
    %1815 = vmatprep.subr.bf16.mxu0 0
    %1816 = vmatpush1.bf16.msra.mxu0 0
    %1817 = vmatprep.mubr.bf16.mxu0 0
    %1818 = vmatmul.mubr.bf16.gmra.mrb[0].mxu0 %v1783
    %v1819 = vpop.f32.mrb[0].mxu0
    %v1820 = vadd.f32 0.0, %v1819
    %v1821 = vpop.f32.mrb[0].mxu0
    %v1822 = vadd.f32 0.0, %v1821
    %v1823 = vpop.f32.mrb[0].mxu0
    %v1824 = vpop.f32.mrb[0].mxu0
    %1825 = vdwg.mxu0
    %v1827 = vrot.slane %v1820, 2
    %v1829 = vadd.f32 %v1205, %v1827
    %v1830 = vxor.u32 %v1829, 2147483648
    %v1831 = vmul.f32 %v1830, 1.442695
    %v1832 = vpow.pop %v1831
    %v1833 = vadd.f32 %v1832, 1.0
    %v1834 = vrcp.pop %v1833
    %v1835 = vmul.f32 1.0, %v1834
    %v1836 = vadd.f32 %v1822, %v52
    %v1838 = vrot.slane %v1836, 2
    %v1840 = vmul.f32 %v1835, %v1838
    %v1841 = vadd.f32 %v1206, %v1840
    %v1842 = vtanh.pop %v1841
    %v1843 = vsub.f32 1.0, %v1835
    %1845 = vrot.lane.b32.xlu0 %v1842, 64
    %v1846 = vpop.permute.xlu0 %1845
    %v1848 = vmul.f32 %v1843, %v1846
    %v1850 = vrot.slane %v1776, 6
    %v1852 = vmul.f32 %v1835, %v1850
    %v1853 = vadd.f32 %v1848, %v1852
    %v1854 = vld [vmem:[%s8] sm:$0xff]
    %v1855 = vld [vmem:[%s8 + $0x8] sm:$0xff]
    %v1856 = vld [vmem:[%s8 + $0x10] sm:$0xff]
    %v1857 = vld [vmem:[%s8 + $0x18] sm:$0xff]
    %v1859 = vsel %vm111, %v46, 0
    %v1862 = vsel %vm111, %v47, 0
    %1864 = vmatprep.subr.mxu0 0.0
    %1865 = vmatpush1.msra.mxu0 %v1854
    %1866 = vmatprep.subr.mxu0 0.0
    %1867 = vmatpush1.msra.mxu0 %v1855
    %1868 = vmatprep.subr.mxu0 0.0
    %1869 = vmatpush1.msra.mxu0 %v1856
    %1870 = vmatprep.subr.mxu0 0.0
    %1871 = vmatpush1.msra.mxu0 %v1857
    %1872 = vmatprep.subr.mxu0 0.0
    %1873 = vmatpush1.msra.mxu0 0.0
    %1874 = vmatprep.subr.mxu0 0.0
    %1875 = vmatpush1.msra.mxu0 0.0
    %1876 = vmatprep.subr.mxu0 0.0
    %1877 = vmatpush1.msra.mxu0 0.0
    %1878 = vmatprep.subr.mxu0 0.0
    %1879 = vmatpush1.msra.mxu0 0.0
    %1880 = vmatprep.subr.mxu0 0.0
    %1881 = vmatpush1.msra.mxu0 0.0
    %1882 = vmatprep.subr.mxu0 0.0
    %1883 = vmatpush1.msra.mxu0 0.0
    %1884 = vmatprep.subr.mxu0 0.0
    %1885 = vmatpush1.msra.mxu0 0.0
    %1886 = vmatprep.subr.mxu0 0.0
    %1887 = vmatpush1.msra.mxu0 0.0
    %1888 = vmatprep.subr.mxu0 0.0
    %1889 = vmatpush1.msra.mxu0 0.0
    %1890 = vmatprep.subr.mxu0 0.0
    %1891 = vmatpush1.msra.mxu0 0.0
    %1892 = vmatprep.subr.mxu0 0.0
    %1893 = vmatpush1.msra.mxu0 0.0
    %1894 = vmatprep.subr.mxu0 0.0
    %1895 = vmatpush1.msra.mxu0 0.0
    %1896 = vmatprep.subr.mxu0 0.0
    %1897 = vmatpush1.msra.mxu0 0.0
    %1898 = vmatprep.subr.mxu0 0.0
    %1899 = vmatpush1.msra.mxu0 0.0
    %1900 = vmatprep.subr.mxu0 0.0
    %1901 = vmatpush1.msra.mxu0 0.0
    %1902 = vmatprep.subr.mxu0 0.0
    %1903 = vmatpush1.msra.mxu0 0.0
    %1904 = vmatprep.subr.mxu0 0.0
    %1905 = vmatpush1.msra.mxu0 0.0
    %1906 = vmatprep.subr.mxu0 0.0
    %1907 = vmatpush1.msra.mxu0 0.0
    %1908 = vmatprep.subr.mxu0 0.0
    %1909 = vmatpush1.msra.mxu0 0.0
    %1910 = vmatprep.subr.mxu0 0.0
    %1911 = vmatpush1.msra.mxu0 0.0
    %1912 = vmatprep.subr.mxu0 0.0
    %1913 = vmatpush1.msra.mxu0 0.0
    %1914 = vmatprep.subr.mxu0 0.0
    %1915 = vmatpush1.msra.mxu0 0.0
    %1916 = vmatprep.subr.mxu0 0.0
    %1917 = vmatpush1.msra.mxu0 0.0
    %1918 = vmatprep.subr.mxu0 0.0
    %1919 = vmatpush1.msra.mxu0 0.0
    %1920 = vmatprep.subr.mxu0 0.0
    %1921 = vmatpush1.msra.mxu0 0.0
    %1922 = vmatprep.subr.mxu0 0.0
    %1923 = vmatpush1.msra.mxu0 0.0
    %1924 = vmatprep.subr.mxu0 0.0
    %1925 = vmatpush1.msra.mxu0 0.0
    %1926 = vmatprep.subr.mxu0 0.0
    %1927 = vmatpush1.msra.mxu0 0.0
    %1928 = vmatprep.mubr.f32.mxu0 0.0
    %1929 = vmatmul.mubr.f32.gmra.mrb[0].mxu0 %v1859
    %v1930 = vpop.f32.mrb[0].mxu0
    %v1931 = vadd.f32 %v53, %v1930
    %v1932 = vpop.f32.mrb[0].mxu0
    %1933 = vmatprep.mubr.f32.mxu0 0.0
    %1934 = vmatmul.mubr.f32.gmra.mrb[0].mxu0 %v1862
    %v1935 = vpop.f32.mrb[0].mxu0
    %v1936 = vadd.f32 %v53, %v1935
    %v1937 = vpop.f32.mrb[0].mxu0
    %1938 = vdwg.mxu0
    %v1939 = vtanh.pop %v1931
    %v1940 = vtanh.pop %v1936
    %1941 = vrot.lane.b32.xlu0 %v1322, 64
    %v1942 = vpop.permute.xlu0 %1941
    %v1945 = vrot.slane %v1853, 6
    %1946 = vrot.lane.b32.xlu0 %v1945, 64
    %v1947 = vpop.permute.xlu0 %1946
    %1950 = vrot.lane.b32.xlu0 %v1939, 64
    %v1951 = vpop.permute.xlu0 %1950
    %v1953 = vsel %vm111, %v1942, %v1947
    %v1954 = vsel %vm306, %v1953, %v1951
    %1955 = vrot.lane.b32.xlu0 %v1398, 64
    %v1956 = vpop.permute.xlu0 %1955
    %v1958 = vrot.slane %v1776, 2
    %1959 = vrot.lane.b32.xlu0 %v1958, 64
    %v1960 = vpop.permute.xlu0 %1959
    %v1962 = vsel %vm111, %v1956, %v1960
    %v1963 = vsel %vm306, %v1962, %v1951
    %1964 = vrot.lane.b32.xlu0 %v1475, 64
    %v1965 = vpop.permute.xlu0 %1964
    %1967 = vrot.lane.b32.xlu0 %v1773, 64
    %v1968 = vpop.permute.xlu0 %1967
    %v1970 = vsel %vm111, %v1965, %v1968
    %v1971 = vsel %vm306, %v1970, %v1951
    %1972 = vrot.lane.b32.xlu0 %v1552, 64
    %v1973 = vpop.permute.xlu0 %1972
    %v1975 = vrot.slane %v1623, 2
    %1976 = vrot.lane.b32.xlu0 %v1975, 64
    %v1977 = vpop.permute.xlu0 %1976
    %v1979 = vsel %vm111, %v1973, %v1977
    %v1980 = vsel %vm306, %v1979, %v1951
    %1981 = vrot.lane.b32.xlu0 %v1623, 64
    %v1982 = vpop.permute.xlu0 %1981
    %1984 = vrot.lane.b32.xlu0 %v1620, 64
    %v1985 = vpop.permute.xlu0 %1984
    %1988 = vrot.lane.b32.xlu0 %v1940, 64
    %v1989 = vpop.permute.xlu0 %1988
    %v1991 = vsel %vm111, %v1982, %v1985
    %v1992 = vsel %vm306, %v1991, %v1989
    %1993 = vrot.lane.b32.xlu0 %v1699, 64
    %v1994 = vpop.permute.xlu0 %1993
    %v1996 = vrot.slane %v1475, 2
    %1997 = vrot.lane.b32.xlu0 %v1996, 64
    %v1998 = vpop.permute.xlu0 %1997
    %v2000 = vsel %vm111, %v1994, %v1998
    %v2001 = vsel %vm306, %v2000, %v1989
    %2002 = vrot.lane.b32.xlu0 %v1776, 64
    %v2003 = vpop.permute.xlu0 %2002
    %2005 = vrot.lane.b32.xlu0 %v1472, 64
    %v2006 = vpop.permute.xlu0 %2005
    %v2008 = vsel %vm111, %v2003, %v2006
    %v2009 = vsel %vm306, %v2008, %v1989
    %2010 = vrot.lane.b32.xlu0 %v1853, 64
    %v2011 = vpop.permute.xlu0 %2010
    %v2013 = vrot.slane %v1322, 2
    %2014 = vrot.lane.b32.xlu0 %v2013, 64
    %v2015 = vpop.permute.xlu0 %2014
    %v2017 = vsel %vm111, %v2011, %v2015
    %v2018 = vsel %vm306, %v2017, %v1989
    %v2020 = vrot.slane %v1963, 1
    %v2023 = vrot.slane %v1971, 2
    %v2026 = vrot.slane %v1980, 3
    %v2029 = vrot.slane %v1992, 4
    %v2032 = vrot.slane %v2001, 5
    %v2035 = vrot.slane %v2009, 6
    %v2038 = vrot.slane %v2018, 7
    %vm2040 = vcmask 1040384
    %v2041 = vsel %vm2040, %v1954, %v2020
    %v2042 = vsel %vm236, %v2041, %v2023
    %vm2043 = vcmask 1042432
    %v2044 = vsel %vm2043, %v2042, %v2026
    %v2045 = vsel %vm239, %v2044, %v2029
    %vm2046 = vcmask 1044480
    %v2047 = vsel %vm2046, %v2045, %v2032
    %v2048 = vsel %vm242, %v2047, %v2035
    %vm2049 = vcmask 1046528
    %v2050 = vsel %vm2049, %v2048, %v2038
    %v2052 = vrot.slane %v1954, 1
    %v2054 = vrot.slane %v1963, 2
    %v2056 = vrot.slane %v1971, 3
    %v2058 = vrot.slane %v1980, 4
    %v2060 = vrot.slane %v1992, 5
    %v2062 = vrot.slane %v2001, 6
    %v2064 = vrot.slane %v2009, 7
    %v2066 = vsel %vm2040, %v2052, %v2054
    %v2067 = vsel %vm236, %v2066, %v2056
    %v2068 = vsel %vm2043, %v2067, %v2058
    %v2069 = vsel %vm239, %v2068, %v2060
    %v2070 = vsel %vm2046, %v2069, %v2062
    %v2071 = vsel %vm242, %v2070, %v2064
    %v2072 = vsel %vm2049, %v2071, %v2018
    %v2073 = vld [vmem:[%s9] sm:$0xff]
    %v2074 = vld [vmem:[%s9 + $0x8] sm:$0xff]
    %v2075 = vld [vmem:[%s9 + $0x10] sm:$0xff]
    %v2076 = vld [vmem:[%s9 + $0x18] sm:$0xff]
    %v2077 = vld [vmem:[%s9 + $0x20] sm:$0xff]
    %v2078 = vld [vmem:[%s9 + $0x28] sm:$0xff]
    %v2079 = vld [vmem:[%s9 + $0x30] sm:$0xff]
    %v2080 = vld [vmem:[%s9 + $0x38] sm:$0xff]
    %v2081 = vld [vmem:[%s9 + $0x40] sm:$0xff]
    %v2082 = vld [vmem:[%s9 + $0x48] sm:$0xff]
    %v2083 = vld [vmem:[%s9 + $0x50] sm:$0xff]
    %v2084 = vld [vmem:[%s9 + $0x58] sm:$0xff]
    %v2085 = vld [vmem:[%s9 + $0x60] sm:$0xff]
    %v2086 = vld [vmem:[%s9 + $0x68] sm:$0xff]
    %v2087 = vld [vmem:[%s9 + $0x70] sm:$0xff]
    %v2088 = vld [vmem:[%s9 + $0x78] sm:$0xff]
    %v2089 = vld [vmem:[%s9 + $0x80] sm:$0xff]
    %v2090 = vld [vmem:[%s9 + $0x88] sm:$0xff]
    %v2091 = vld [vmem:[%s9 + $0x90] sm:$0xff]
    %v2092 = vld [vmem:[%s9 + $0x98] sm:$0xff]
    %v2093 = vld [vmem:[%s9 + $0xa0] sm:$0xff]
    %v2094 = vld [vmem:[%s9 + $0xa8] sm:$0xff]
    %v2095 = vld [vmem:[%s9 + $0xb0] sm:$0xff]
    %v2096 = vld [vmem:[%s9 + $0xb8] sm:$0xff]
    %v2098 = vlaneseq
    %v2099 = vshrl.u32 %v2098, 7
    %v2100 = vsub.s32 0, %v2099
    %v2101 = vrot.slane %v55, %v2100
    %v2102 = vlaneseq
    %v2103 = vshrl.u32 %v2102, 7
    %v2104 = vsub.s32 1, %v2103
    %v2105 = vrot.slane %v55, %v2104
    %vm2108 = vcmask 785408
    %v2110 = vsel %vm2108, %v2050, 0
    %v2113 = vsel %vm2108, %v2072, 0
    %2115 = vmatprep.subr.mxu0 %v2074
    %2116 = vmatpush1.msra.mxu0 %v2073
    %2117 = vmatprep.subr.mxu0 %v2076
    %2118 = vmatpush1.msra.mxu0 %v2075
    %2119 = vmatprep.subr.mxu0 %v2078
    %2120 = vmatpush1.msra.mxu0 %v2077
    %2121 = vmatprep.subr.mxu0 %v2080
    %2122 = vmatpush1.msra.mxu0 %v2079
    %2123 = vmatprep.subr.mxu0 %v2082
    %2124 = vmatpush1.msra.mxu0 %v2081
    %2125 = vmatprep.subr.mxu0 %v2084
    %2126 = vmatpush1.msra.mxu0 %v2083
    %2127 = vmatprep.subr.mxu0 %v2086
    %2128 = vmatpush1.msra.mxu0 %v2085
    %2129 = vmatprep.subr.mxu0 %v2088
    %2130 = vmatpush1.msra.mxu0 %v2087
    %2131 = vmatprep.subr.mxu0 %v2090
    %2132 = vmatpush1.msra.mxu0 %v2089
    %2133 = vmatprep.subr.mxu0 %v2092
    %2134 = vmatpush1.msra.mxu0 %v2091
    %2135 = vmatprep.subr.mxu0 %v2094
    %2136 = vmatpush1.msra.mxu0 %v2093
    %2137 = vmatprep.subr.mxu0 %v2096
    %2138 = vmatpush1.msra.mxu0 %v2095
    %2139 = vmatprep.subr.mxu0 0.0
    %2140 = vmatpush1.msra.mxu0 0.0
    %2141 = vmatprep.subr.mxu0 0.0
    %2142 = vmatpush1.msra.mxu0 0.0
    %2143 = vmatprep.subr.mxu0 0.0
    %2144 = vmatpush1.msra.mxu0 0.0
    %2145 = vmatprep.subr.mxu0 0.0
    %2146 = vmatpush1.msra.mxu0 0.0
    %2147 = vmatprep.subr.mxu0 0.0
    %2148 = vmatpush1.msra.mxu0 0.0
    %2149 = vmatprep.subr.mxu0 0.0
    %2150 = vmatpush1.msra.mxu0 0.0
    %2151 = vmatprep.subr.mxu0 0.0
    %2152 = vmatpush1.msra.mxu0 0.0
    %2153 = vmatprep.subr.mxu0 0.0
    %2154 = vmatpush1.msra.mxu0 0.0
    %2155 = vmatprep.subr.mxu0 0.0
    %2156 = vmatpush1.msra.mxu0 0.0
    %2157 = vmatprep.subr.mxu0 0.0
    %2158 = vmatpush1.msra.mxu0 0.0
    %2159 = vmatprep.subr.mxu0 0.0
    %2160 = vmatpush1.msra.mxu0 0.0
    %2161 = vmatprep.subr.mxu0 0.0
    %2162 = vmatpush1.msra.mxu0 0.0
    %2163 = vmatprep.subr.mxu0 0.0
    %2164 = vmatpush1.msra.mxu0 0.0
    %2165 = vmatprep.subr.mxu0 0.0
    %2166 = vmatpush1.msra.mxu0 0.0
    %2167 = vmatprep.subr.mxu0 0.0
    %2168 = vmatpush1.msra.mxu0 0.0
    %2169 = vmatprep.subr.mxu0 0.0
    %2170 = vmatpush1.msra.mxu0 0.0
    %2171 = vmatprep.subr.mxu0 0.0
    %2172 = vmatpush1.msra.mxu0 0.0
    %2173 = vmatprep.subr.mxu0 0.0
    %2174 = vmatpush1.msra.mxu0 0.0
    %2175 = vmatprep.subr.mxu0 0.0
    %2176 = vmatpush1.msra.mxu0 0.0
    %2177 = vmatprep.subr.mxu0 0.0
    %2178 = vmatpush1.msra.mxu0 0.0
    %2179 = vmatprep.mubr.f32.mxu0 0.0
    %2180 = vmatmul.mubr.f32.gmra.mrb[0].mxu0 %v2110
    %v2181 = vpop.f32.mrb[0].mxu0
    %v2182 = vadd.f32 %v2101, %v2181
    %v2183 = vpop.f32.mrb[0].mxu0
    %v2184 = vadd.f32 %v2105, %v2183
    %2185 = vmatprep.mubr.f32.mxu0 0.0
    %2186 = vmatmul.mubr.f32.gmra.mrb[0].mxu0 %v2113
    %v2187 = vpop.f32.mrb[0].mxu0
    %v2188 = vadd.f32 %v2101, %v2187
    %v2189 = vpop.f32.mrb[0].mxu0
    %v2190 = vadd.f32 %v2105, %v2189
    %2191 = vdwg.mxu0
    %v2192 = vtanh.pop %v2182
    %v2193 = vtanh.pop %v2184
    %v2194 = vtanh.pop %v2188
    %v2195 = vtanh.pop %v2190
    %v2196 = vld [vmem:[%s10] sm:$0xff]
    %v2197 = vld [vmem:[%s10 + $0x8] sm:$0xff]
    %v2198 = vld [vmem:[%s10 + $0x10] sm:$0xff]
    %v2199 = vld [vmem:[%s10 + $0x18] sm:$0xff]
    %v2200 = vld [vmem:[%s10 + $0x20] sm:$0xff]
    %v2201 = vld [vmem:[%s10 + $0x28] sm:$0xff]
    %v2202 = vld [vmem:[%s10 + $0x30] sm:$0xff]
    %v2203 = vld [vmem:[%s10 + $0x38] sm:$0xff]
    %v2204 = vld [vmem:[%s10 + $0x40] sm:$0xff]
    %v2205 = vld [vmem:[%s10 + $0x48] sm:$0xff]
    %v2206 = vld [vmem:[%s10 + $0x50] sm:$0xff]
    %v2207 = vld [vmem:[%s10 + $0x58] sm:$0xff]
    %v2208 = vld [vmem:[%s10 + $0x60] sm:$0xff]
    %v2209 = vld [vmem:[%s10 + $0x68] sm:$0xff]
    %v2210 = vld [vmem:[%s10 + $0x70] sm:$0xff]
    %v2211 = vld [vmem:[%s10 + $0x78] sm:$0xff]
    %v2212 = vld [vmem:[%s10 + $0x80] sm:$0xff]
    %v2213 = vld [vmem:[%s10 + $0x88] sm:$0xff]
    %v2214 = vld [vmem:[%s10 + $0x90] sm:$0x3f]
    %vm2215 = vcmask 179200
    %v2217 = vsel %vm2215, %v2193, 0
    %v2220 = vsel %vm2215, %v2195, 0
    %v2223 = vsel %vm242, %v2214, 0
    %2225 = vmatprep.subr.mxu0 0.0
    %2226 = vmatpush1.msra.mxu0 %v2196
    %2227 = vmatprep.subr.mxu0 0.0
    %2228 = vmatpush1.msra.mxu0 %v2197
    %2229 = vmatprep.subr.mxu0 0.0
    %2230 = vmatpush1.msra.mxu0 %v2198
    %2231 = vmatprep.subr.mxu0 0.0
    %2232 = vmatpush1.msra.mxu0 %v2199
    %2233 = vmatprep.subr.mxu0 0.0
    %2234 = vmatpush1.msra.mxu0 %v2200
    %2235 = vmatprep.subr.mxu0 0.0
    %2236 = vmatpush1.msra.mxu0 %v2201
    %2237 = vmatprep.subr.mxu0 0.0
    %2238 = vmatpush1.msra.mxu0 %v2202
    %2239 = vmatprep.subr.mxu0 0.0
    %2240 = vmatpush1.msra.mxu0 %v2203
    %2241 = vmatprep.subr.mxu0 0.0
    %2242 = vmatpush1.msra.mxu0 %v2204
    %2243 = vmatprep.subr.mxu0 0.0
    %2244 = vmatpush1.msra.mxu0 %v2205
    %2245 = vmatprep.subr.mxu0 0.0
    %2246 = vmatpush1.msra.mxu0 %v2206
    %2247 = vmatprep.subr.mxu0 0.0
    %2248 = vmatpush1.msra.mxu0 %v2207
    %2249 = vmatprep.subr.mxu0 0.0
    %2250 = vmatpush1.msra.mxu0 %v2208
    %2251 = vmatprep.subr.mxu0 0.0
    %2252 = vmatpush1.msra.mxu0 %v2209
    %2253 = vmatprep.subr.mxu0 0.0
    %2254 = vmatpush1.msra.mxu0 %v2210
    %2255 = vmatprep.subr.mxu0 0.0
    %2256 = vmatpush1.msra.mxu0 %v2211
    %2257 = vmatprep.subr.mxu0 0.0
    %2258 = vmatpush1.msra.mxu0 %v2212
    %2259 = vmatprep.subr.mxu0 0.0
    %2260 = vmatpush1.msra.mxu0 %v2213
    %2261 = vmatprep.subr.mxu0 0.0
    %2262 = vmatpush1.msra.mxu0 %v2223
    %2263 = vmatprep.subr.mxu0 0.0
    %2264 = vmatpush1.msra.mxu0 0.0
    %2265 = vmatprep.subr.mxu0 0.0
    %2266 = vmatpush1.msra.mxu0 0.0
    %2267 = vmatprep.subr.mxu0 0.0
    %2268 = vmatpush1.msra.mxu0 0.0
    %2269 = vmatprep.subr.mxu0 0.0
    %2270 = vmatpush1.msra.mxu0 0.0
    %2271 = vmatprep.subr.mxu0 0.0
    %2272 = vmatpush1.msra.mxu0 0.0
    %2273 = vmatprep.subr.mxu0 0.0
    %2274 = vmatpush1.msra.mxu0 0.0
    %2275 = vmatprep.subr.mxu0 0.0
    %2276 = vmatpush1.msra.mxu0 0.0
    %2277 = vmatprep.subr.mxu0 0.0
    %2278 = vmatpush1.msra.mxu0 0.0
    %2279 = vmatprep.subr.mxu0 0.0
    %2280 = vmatpush1.msra.mxu0 0.0
    %2281 = vmatprep.subr.mxu0 0.0
    %2282 = vmatpush1.msra.mxu0 0.0
    %2283 = vmatprep.subr.mxu0 0.0
    %2284 = vmatpush1.msra.mxu0 0.0
    %2285 = vmatprep.subr.mxu0 0.0
    %2286 = vmatpush1.msra.mxu0 0.0
    %2287 = vmatprep.subr.mxu0 0.0
    %2288 = vmatpush1.msra.mxu0 0.0
    %2289 = vmatprep.mubr.f32.mxu0 %v2217
    %2290 = vmatmul.mubr.f32.gmra.mrb[0].mxu0 %v2192
    %v2291 = vpop.f32.mrb[0].mxu0
    %v2292 = vadd.f32 %v56, %v2291
    %v2293 = vpop.f32.mrb[0].mxu0
    %2294 = vmatprep.mubr.f32.mxu0 %v2220
    %2295 = vmatmul.mubr.f32.gmra.mrb[0].mxu0 %v2194
    %v2296 = vpop.f32.mrb[0].mxu0
    %v2297 = vadd.f32 %v56, %v2296
    %v2298 = vpop.f32.mrb[0].mxu0
    %2299 = vdwg.mxu0
    %vm2300 = vcmask 531456
    %v2301 = vsel %vm2300, %v2292, -inf
    %v2302 = vrot.slane %v2301, 4
    %v2303 = vmax.f32 %v2301, %v2302
    %v2304 = vrot.slane %v2303, 2
    %v2305 = vmax.f32 %v2303, %v2304
    %v2306 = vrot.slane %v2305, 1
    %v2307 = vmax.f32 %v2305, %v2306
    %v2308 = vsub.f32 %v2292, %v2307
    %v2309 = vmul.f32 %v2308, 1.442695
    %v2310 = vpow.pop %v2309
    %v2311 = vsel %vm2300, %v2310, 0.0
    %v2312 = vrot.slane %v2311, 4
    %v2313 = vadd.f32 %v2311, %v2312
    %v2314 = vrot.slane %v2313, 2
    %v2315 = vadd.f32 %v2313, %v2314
    %v2316 = vrot.slane %v2315, 1
    %v2317 = vadd.f32 %v2315, %v2316
    %v2318 = vrcp.pop %v2317
    %v2319 = vmul.f32 %v2310, %v2318
    %2320 = vxpose.xlu0.b32.start [1/16] %v2319, 128
    %2321 = vxpose.xlu0.b32.cont [2/16] 0.0, 128
    %2322 = vxpose.xlu0.b32.cont [3/16] 0.0, 128
    %2323 = vxpose.xlu0.b32.cont [4/16] 0.0, 128
    %2324 = vxpose.xlu0.b32.cont [5/16] 0.0, 128
    %2325 = vxpose.xlu0.b32.cont [6/16] 0.0, 128
    %2326 = vxpose.xlu0.b32.cont [7/16] 0.0, 128
    %2327 = vxpose.xlu0.b32.cont [8/16] 0.0, 128
    %2328 = vxpose.xlu0.b32.cont [9/16] 0.0, 128
    %2329 = vxpose.xlu0.b32.cont [10/16] 0.0, 128
    %2330 = vxpose.xlu0.b32.cont [11/16] 0.0, 128
    %2331 = vxpose.xlu0.b32.cont [12/16] 0.0, 128
    %2332 = vxpose.xlu0.b32.cont [13/16] 0.0, 128
    %2333 = vxpose.xlu0.b32.cont [14/16] 0.0, 128
    %2334 = vxpose.xlu0.b32.cont [15/16] 0.0, 128
    %2335 = vxpose.xlu0.b32.end [16/16] 0.0, 128
    %v2336 = vpop.trf.xlu0
    %v2337 = vpop.trf.xlu0
    %v2338 = vpop.trf.xlu0
    %v2339 = vpop.trf.xlu0
    %v2340 = vpop.trf.xlu0
    %v2341 = vpop.trf.xlu0
    %v2342 = vpop.trf.xlu0
    %v2343 = vpop.trf.xlu0
    %v2344 = vpop.trf.xlu0
    %v2345 = vpop.trf.xlu0
    %v2346 = vpop.trf.xlu0
    %v2347 = vpop.trf.xlu0
    %v2348 = vpop.trf.xlu0
    %v2349 = vpop.trf.xlu0
    %v2350 = vpop.trf.xlu0
    %v2351 = vpop.trf.xlu0
    %vm2352 = vcmask 64512
    %v2354 = vsel %vm2352, %v2336, 0
    %v2357 = vsel %vm2352, %v2337, 0
    %v2360 = vsel %vm2352, %v2338, 0
    %v2363 = vsel %vm2352, %v2339, 0
    %v2366 = vsel %vm2352, %v2340, 0
    %v2369 = vsel %vm2352, %v2341, 0
    %v2372 = vsel %vm2352, %v2342, 0
    %v2375 = vsel %vm2352, %v2343, 0
    %v2378 = vsel %vm2352, %v2344, 0
    %2380 = vmatprep.subr.mxu0 0.0
    %2381 = vmatpush1.msra.mxu0 %v2050
    %2382 = vmatprep.subr.mxu0 0.0
    %2383 = vmatpush1.msra.mxu0 0.0
    %2384 = vmatprep.subr.mxu0 0.0
    %2385 = vmatpush1.msra.mxu0 0.0
    %2386 = vmatprep.subr.mxu0 0.0
    %2387 = vmatpush1.msra.mxu0 0.0
    %2388 = vmatprep.subr.mxu0 0.0
    %2389 = vmatpush1.msra.mxu0 0.0
    %2390 = vmatprep.subr.mxu0 0.0
    %2391 = vmatpush1.msra.mxu0 0.0
    %2392 = vmatprep.subr.mxu0 0.0
    %2393 = vmatpush1.msra.mxu0 0.0
    %2394 = vmatprep.subr.mxu0 0.0
    %2395 = vmatpush1.msra.mxu0 0.0
    %2396 = vmatprep.subr.mxu0 0.0
    %2397 = vmatpush1.msra.mxu0 0.0
    %2398 = vmatprep.subr.mxu0 0.0
    %2399 = vmatpush1.msra.mxu0 0.0
    %2400 = vmatprep.subr.mxu0 0.0
    %2401 = vmatpush1.msra.mxu0 0.0
    %2402 = vmatprep.subr.mxu0 0.0
    %2403 = vmatpush1.msra.mxu0 0.0
    %2404 = vmatprep.subr.mxu0 0.0
    %2405 = vmatpush1.msra.mxu0 0.0
    %2406 = vmatprep.subr.mxu0 0.0
    %2407 = vmatpush1.msra.mxu0 0.0
    %2408 = vmatprep.subr.mxu0 0.0
    %2409 = vmatpush1.msra.mxu0 0.0
    %2410 = vmatprep.subr.mxu0 0.0
    %2411 = vmatpush1.msra.mxu0 0.0
    %2412 = vmatprep.subr.mxu0 0.0
    %2413 = vmatpush1.msra.mxu0 0.0
    %2414 = vmatprep.subr.mxu0 0.0
    %2415 = vmatpush1.msra.mxu0 0.0
    %2416 = vmatprep.subr.mxu0 0.0
    %2417 = vmatpush1.msra.mxu0 0.0
    %2418 = vmatprep.subr.mxu0 0.0
    %2419 = vmatpush1.msra.mxu0 0.0
    %2420 = vmatprep.subr.mxu0 0.0
    %2421 = vmatpush1.msra.mxu0 0.0
    %2422 = vmatprep.subr.mxu0 0.0
    %2423 = vmatpush1.msra.mxu0 0.0
    %2424 = vmatprep.subr.mxu0 0.0
    %2425 = vmatpush1.msra.mxu0 0.0
    %2426 = vmatprep.subr.mxu0 0.0
    %2427 = vmatpush1.msra.mxu0 0.0
    %2428 = vmatprep.subr.mxu0 0.0
    %2429 = vmatpush1.msra.mxu0 0.0
    %2430 = vmatprep.subr.mxu0 0.0
    %2431 = vmatpush1.msra.mxu0 0.0
    %2432 = vmatprep.subr.mxu0 0.0
    %2433 = vmatpush1.msra.mxu0 0.0
    %2434 = vmatprep.subr.mxu0 0.0
    %2435 = vmatpush1.msra.mxu0 0.0
    %2436 = vmatprep.subr.mxu0 0.0
    %2437 = vmatpush1.msra.mxu0 0.0
    %2438 = vmatprep.subr.mxu0 0.0
    %2439 = vmatpush1.msra.mxu0 0.0
    %2440 = vmatprep.subr.mxu0 0.0
    %2441 = vmatpush1.msra.mxu0 0.0
    %2442 = vmatprep.subr.mxu0 0.0
    %2443 = vmatpush1.msra.mxu0 0.0
    %2444 = vmatprep.mubr.f32.mxu0 0.0
    %2445 = vmatmul.mubr.f32.gmra.mrb[0].mxu0 %v2354
    %v2446 = vpop.f32.mrb[0].mxu0
    %v2447 = vadd.f32 0.0, %v2446
    %v2448 = vpop.f32.mrb[0].mxu0
    %2449 = vmatprep.mubr.f32.mxu0 0.0
    %2450 = vmatmul.mubr.f32.gmra.mrb[0].mxu0 %v2357
    %v2451 = vpop.f32.mrb[0].mxu0
    %v2452 = vadd.f32 0.0, %v2451
    %v2453 = vpop.f32.mrb[0].mxu0
    %2454 = vmatprep.mubr.f32.mxu0 0.0
    %2455 = vmatmul.mubr.f32.gmra.mrb[0].mxu0 %v2360
    %v2456 = vpop.f32.mrb[0].mxu0
    %v2457 = vadd.f32 0.0, %v2456
    %v2458 = vpop.f32.mrb[0].mxu0
    %2459 = vmatprep.mubr.f32.mxu0 0.0
    %2460 = vmatmul.mubr.f32.gmra.mrb[0].mxu0 %v2363
    %v2461 = vpop.f32.mrb[0].mxu0
    %v2462 = vadd.f32 0.0, %v2461
    %v2463 = vpop.f32.mrb[0].mxu0
    %2464 = vmatprep.mubr.f32.mxu0 0.0
    %2465 = vmatmul.mubr.f32.gmra.mrb[0].mxu0 %v2366
    %v2466 = vpop.f32.mrb[0].mxu0
    %v2467 = vadd.f32 0.0, %v2466
    %v2468 = vpop.f32.mrb[0].mxu0
    %2469 = vmatprep.mubr.f32.mxu0 0.0
    %2470 = vmatmul.mubr.f32.gmra.mrb[0].mxu0 %v2369
    %v2471 = vpop.f32.mrb[0].mxu0
    %v2472 = vadd.f32 0.0, %v2471
    %v2473 = vpop.f32.mrb[0].mxu0
    %2474 = vmatprep.mubr.f32.mxu0 0.0
    %2475 = vmatmul.mubr.f32.gmra.mrb[0].mxu0 %v2372
    %v2476 = vpop.f32.mrb[0].mxu0
    %v2477 = vadd.f32 0.0, %v2476
    %v2478 = vpop.f32.mrb[0].mxu0
    %2479 = vmatprep.mubr.f32.mxu0 0.0
    %2480 = vmatmul.mubr.f32.gmra.mrb[0].mxu0 %v2375
    %v2481 = vpop.f32.mrb[0].mxu0
    %v2482 = vadd.f32 0.0, %v2481
    %v2483 = vpop.f32.mrb[0].mxu0
    %2484 = vmatprep.mubr.f32.mxu0 0.0
    %2485 = vmatmul.mubr.f32.gmra.mrb[0].mxu0 %v2378
    %v2486 = vpop.f32.mrb[0].mxu0
    %v2487 = vadd.f32 0.0, %v2486
    %v2488 = vpop.f32.mrb[0].mxu0
    %2489 = vdwg.mxu0
    %v2490 = vsel %vm2300, %v2297, -inf
    %v2491 = vrot.slane %v2490, 4
    %v2492 = vmax.f32 %v2490, %v2491
    %v2493 = vrot.slane %v2492, 2
    %v2494 = vmax.f32 %v2492, %v2493
    %v2495 = vrot.slane %v2494, 1
    %v2496 = vmax.f32 %v2494, %v2495
    %v2497 = vsub.f32 %v2297, %v2496
    %v2498 = vmul.f32 %v2497, 1.442695
    %v2499 = vpow.pop %v2498
    %v2500 = vsel %vm2300, %v2499, 0.0
    %v2501 = vrot.slane %v2500, 4
    %v2502 = vadd.f32 %v2500, %v2501
    %v2503 = vrot.slane %v2502, 2
    %v2504 = vadd.f32 %v2502, %v2503
    %v2505 = vrot.slane %v2504, 1
    %v2506 = vadd.f32 %v2504, %v2505
    %v2507 = vrcp.pop %v2506
    %v2508 = vmul.f32 %v2499, %v2507
    %2509 = vxpose.xlu0.b32.start [1/16] %v2508, 128
    %2510 = vxpose.xlu0.b32.cont [2/16] 0.0, 128
    %2511 = vxpose.xlu0.b32.cont [3/16] 0.0, 128
    %2512 = vxpose.xlu0.b32.cont [4/16] 0.0, 128
    %2513 = vxpose.xlu0.b32.cont [5/16] 0.0, 128
    %2514 = vxpose.xlu0.b32.cont [6/16] 0.0, 128
    %2515 = vxpose.xlu0.b32.cont [7/16] 0.0, 128
    %2516 = vxpose.xlu0.b32.cont [8/16] 0.0, 128
    %2517 = vxpose.xlu0.b32.cont [9/16] 0.0, 128
    %2518 = vxpose.xlu0.b32.cont [10/16] 0.0, 128
    %2519 = vxpose.xlu0.b32.cont [11/16] 0.0, 128
    %2520 = vxpose.xlu0.b32.cont [12/16] 0.0, 128
    %2521 = vxpose.xlu0.b32.cont [13/16] 0.0, 128
    %2522 = vxpose.xlu0.b32.cont [14/16] 0.0, 128
    %2523 = vxpose.xlu0.b32.cont [15/16] 0.0, 128
    %2524 = vxpose.xlu0.b32.end [16/16] 0.0, 128
    %v2525 = vpop.trf.xlu0
    %v2526 = vpop.trf.xlu0
    %v2527 = vpop.trf.xlu0
    %v2528 = vpop.trf.xlu0
    %v2529 = vpop.trf.xlu0
    %v2530 = vpop.trf.xlu0
    %v2531 = vpop.trf.xlu0
    %v2532 = vpop.trf.xlu0
    %v2533 = vpop.trf.xlu0
    %v2534 = vpop.trf.xlu0
    %v2535 = vpop.trf.xlu0
    %v2536 = vpop.trf.xlu0
    %v2537 = vpop.trf.xlu0
    %v2538 = vpop.trf.xlu0
    %v2539 = vpop.trf.xlu0
    %v2540 = vpop.trf.xlu0
    %v2542 = vsel %vm2352, %v2525, 0
    %v2545 = vsel %vm2352, %v2526, 0
    %v2548 = vsel %vm2352, %v2527, 0
    %v2551 = vsel %vm2352, %v2528, 0
    %v2554 = vsel %vm2352, %v2529, 0
    %v2557 = vsel %vm2352, %v2530, 0
    %v2560 = vsel %vm2352, %v2531, 0
    %v2563 = vsel %vm2352, %v2532, 0
    %v2566 = vsel %vm2352, %v2533, 0
    %2568 = vmatprep.subr.mxu0 0.0
    %2569 = vmatpush1.msra.mxu0 %v2072
    %2570 = vmatprep.subr.mxu0 0.0
    %2571 = vmatpush1.msra.mxu0 0.0
    %2572 = vmatprep.subr.mxu0 0.0
    %2573 = vmatpush1.msra.mxu0 0.0
    %2574 = vmatprep.subr.mxu0 0.0
    %2575 = vmatpush1.msra.mxu0 0.0
    %2576 = vmatprep.subr.mxu0 0.0
    %2577 = vmatpush1.msra.mxu0 0.0
    %2578 = vmatprep.subr.mxu0 0.0
    %2579 = vmatpush1.msra.mxu0 0.0
    %2580 = vmatprep.subr.mxu0 0.0
    %2581 = vmatpush1.msra.mxu0 0.0
    %2582 = vmatprep.subr.mxu0 0.0
    %2583 = vmatpush1.msra.mxu0 0.0
    %2584 = vmatprep.subr.mxu0 0.0
    %2585 = vmatpush1.msra.mxu0 0.0
    %2586 = vmatprep.subr.mxu0 0.0
    %2587 = vmatpush1.msra.mxu0 0.0
    %2588 = vmatprep.subr.mxu0 0.0
    %2589 = vmatpush1.msra.mxu0 0.0
    %2590 = vmatprep.subr.mxu0 0.0
    %2591 = vmatpush1.msra.mxu0 0.0
    %2592 = vmatprep.subr.mxu0 0.0
    %2593 = vmatpush1.msra.mxu0 0.0
    %2594 = vmatprep.subr.mxu0 0.0
    %2595 = vmatpush1.msra.mxu0 0.0
    %2596 = vmatprep.subr.mxu0 0.0
    %2597 = vmatpush1.msra.mxu0 0.0
    %2598 = vmatprep.subr.mxu0 0.0
    %2599 = vmatpush1.msra.mxu0 0.0
    %2600 = vmatprep.subr.mxu0 0.0
    %2601 = vmatpush1.msra.mxu0 0.0
    %2602 = vmatprep.subr.mxu0 0.0
    %2603 = vmatpush1.msra.mxu0 0.0
    %2604 = vmatprep.subr.mxu0 0.0
    %2605 = vmatpush1.msra.mxu0 0.0
    %2606 = vmatprep.subr.mxu0 0.0
    %2607 = vmatpush1.msra.mxu0 0.0
    %2608 = vmatprep.subr.mxu0 0.0
    %2609 = vmatpush1.msra.mxu0 0.0
    %2610 = vmatprep.subr.mxu0 0.0
    %2611 = vmatpush1.msra.mxu0 0.0
    %2612 = vmatprep.subr.mxu0 0.0
    %2613 = vmatpush1.msra.mxu0 0.0
    %2614 = vmatprep.subr.mxu0 0.0
    %2615 = vmatpush1.msra.mxu0 0.0
    %2616 = vmatprep.subr.mxu0 0.0
    %2617 = vmatpush1.msra.mxu0 0.0
    %2618 = vmatprep.subr.mxu0 0.0
    %2619 = vmatpush1.msra.mxu0 0.0
    %2620 = vmatprep.subr.mxu0 0.0
    %2621 = vmatpush1.msra.mxu0 0.0
    %2622 = vmatprep.subr.mxu0 0.0
    %2623 = vmatpush1.msra.mxu0 0.0
    %2624 = vmatprep.subr.mxu0 0.0
    %2625 = vmatpush1.msra.mxu0 0.0
    %2626 = vmatprep.subr.mxu0 0.0
    %2627 = vmatpush1.msra.mxu0 0.0
    %2628 = vmatprep.subr.mxu0 0.0
    %2629 = vmatpush1.msra.mxu0 0.0
    %2630 = vmatprep.subr.mxu0 0.0
    %2631 = vmatpush1.msra.mxu0 0.0
    %2632 = vmatprep.mubr.f32.mxu0 0.0
    %2633 = vmatmul.mubr.f32.gmra.mrb[0].mxu0 %v2542
    %v2634 = vpop.f32.mrb[0].mxu0
    %v2635 = vadd.f32 0.0, %v2634
    %v2636 = vpop.f32.mrb[0].mxu0
    %2637 = vmatprep.mubr.f32.mxu0 0.0
    %2638 = vmatmul.mubr.f32.gmra.mrb[0].mxu0 %v2545
    %v2639 = vpop.f32.mrb[0].mxu0
    %v2640 = vadd.f32 0.0, %v2639
    %v2641 = vpop.f32.mrb[0].mxu0
    %2642 = vmatprep.mubr.f32.mxu0 0.0
    %2643 = vmatmul.mubr.f32.gmra.mrb[0].mxu0 %v2548
    %v2644 = vpop.f32.mrb[0].mxu0
    %v2645 = vadd.f32 0.0, %v2644
    %v2646 = vpop.f32.mrb[0].mxu0
    %2647 = vmatprep.mubr.f32.mxu0 0.0
    %2648 = vmatmul.mubr.f32.gmra.mrb[0].mxu0 %v2551
    %v2649 = vpop.f32.mrb[0].mxu0
    %v2650 = vadd.f32 0.0, %v2649
    %v2651 = vpop.f32.mrb[0].mxu0
    %2652 = vmatprep.mubr.f32.mxu0 0.0
    %2653 = vmatmul.mubr.f32.gmra.mrb[0].mxu0 %v2554
    %v2654 = vpop.f32.mrb[0].mxu0
    %v2655 = vadd.f32 0.0, %v2654
    %v2656 = vpop.f32.mrb[0].mxu0
    %2657 = vmatprep.mubr.f32.mxu0 0.0
    %2658 = vmatmul.mubr.f32.gmra.mrb[0].mxu0 %v2557
    %v2659 = vpop.f32.mrb[0].mxu0
    %v2660 = vadd.f32 0.0, %v2659
    %v2661 = vpop.f32.mrb[0].mxu0
    %2662 = vmatprep.mubr.f32.mxu0 0.0
    %2663 = vmatmul.mubr.f32.gmra.mrb[0].mxu0 %v2560
    %v2664 = vpop.f32.mrb[0].mxu0
    %v2665 = vadd.f32 0.0, %v2664
    %v2666 = vpop.f32.mrb[0].mxu0
    %2667 = vmatprep.mubr.f32.mxu0 0.0
    %2668 = vmatmul.mubr.f32.gmra.mrb[0].mxu0 %v2563
    %v2669 = vpop.f32.mrb[0].mxu0
    %v2670 = vadd.f32 0.0, %v2669
    %v2671 = vpop.f32.mrb[0].mxu0
    %2672 = vmatprep.mubr.f32.mxu0 0.0
    %2673 = vmatmul.mubr.f32.gmra.mrb[0].mxu0 %v2566
    %v2674 = vpop.f32.mrb[0].mxu0
    %v2675 = vadd.f32 0.0, %v2674
    %v2676 = vpop.f32.mrb[0].mxu0
    %2677 = vdwg.mxu0
    %v2678 = vsel %vm2108, %v2447, 0.0
    %2679 = vadd.xlane.f32.xlu0 %v2678
    %v2680 = vpop.xlane.xlu0 %2679
    %v2681 = vsel %vm2108, %v2452, 0.0
    %2682 = vadd.xlane.f32.xlu0 %v2681
    %v2683 = vpop.xlane.xlu0 %2682
    %v2684 = vsel %vm2108, %v2457, 0.0
    %2685 = vadd.xlane.f32.xlu0 %v2684
    %v2686 = vpop.xlane.xlu0 %2685
    %v2687 = vsel %vm2108, %v2462, 0.0
    %2688 = vadd.xlane.f32.xlu0 %v2687
    %v2689 = vpop.xlane.xlu0 %2688
    %v2690 = vsel %vm2108, %v2467, 0.0
    %2691 = vadd.xlane.f32.xlu0 %v2690
    %v2692 = vpop.xlane.xlu0 %2691
    %v2693 = vsel %vm2108, %v2472, 0.0
    %2694 = vadd.xlane.f32.xlu0 %v2693
    %v2695 = vpop.xlane.xlu0 %2694
    %v2696 = vsel %vm2108, %v2477, 0.0
    %2697 = vadd.xlane.f32.xlu0 %v2696
    %v2698 = vpop.xlane.xlu0 %2697
    %v2699 = vsel %vm2108, %v2482, 0.0
    %2700 = vadd.xlane.f32.xlu0 %v2699
    %v2701 = vpop.xlane.xlu0 %2700
    %vm2702 = vcmask 778240
    %v2703 = vsel %vm2702, %v2487, 0.0
    %2704 = vadd.xlane.f32.xlu0 %v2703
    %v2705 = vpop.xlane.xlu0 %2704
    %v2706 = vsel %vm2108, %v2635, 0.0
    %2707 = vadd.xlane.f32.xlu0 %v2706
    %v2708 = vpop.xlane.xlu0 %2707
    %v2709 = vsel %vm2108, %v2640, 0.0
    %2710 = vadd.xlane.f32.xlu0 %v2709
    %v2711 = vpop.xlane.xlu0 %2710
    %v2712 = vsel %vm2108, %v2645, 0.0
    %2713 = vadd.xlane.f32.xlu0 %v2712
    %v2714 = vpop.xlane.xlu0 %2713
    %v2715 = vsel %vm2108, %v2650, 0.0
    %2716 = vadd.xlane.f32.xlu0 %v2715
    %v2717 = vpop.xlane.xlu0 %2716
    %v2718 = vsel %vm2108, %v2655, 0.0
    %2719 = vadd.xlane.f32.xlu0 %v2718
    %v2720 = vpop.xlane.xlu0 %2719
    %v2721 = vsel %vm2108, %v2660, 0.0
    %2722 = vadd.xlane.f32.xlu0 %v2721
    %v2723 = vpop.xlane.xlu0 %2722
    %v2724 = vsel %vm2108, %v2665, 0.0
    %2725 = vadd.xlane.f32.xlu0 %v2724
    %v2726 = vpop.xlane.xlu0 %2725
    %v2727 = vsel %vm2108, %v2670, 0.0
    %2728 = vadd.xlane.f32.xlu0 %v2727
    %v2729 = vpop.xlane.xlu0 %2728
    %v2730 = vsel %vm2702, %v2675, 0.0
    %2731 = vadd.xlane.f32.xlu0 %v2730
    %v2732 = vpop.xlane.xlu0 %2731
    %v2733 = vrcp.pop 96.0
    %v2734 = vmul.f32 %v2680, %v2733
    %v2735 = vmul.f32 %v2683, %v2733
    %v2736 = vmul.f32 %v2686, %v2733
    %v2737 = vmul.f32 %v2689, %v2733
    %v2738 = vmul.f32 %v2692, %v2733
    %v2739 = vmul.f32 %v2695, %v2733
    %v2740 = vmul.f32 %v2698, %v2733
    %v2741 = vmul.f32 %v2701, %v2733
    %v2742 = vmul.f32 %v2705, %v2733
    %v2743 = vmul.f32 %v2708, %v2733
    %v2744 = vmul.f32 %v2711, %v2733
    %v2745 = vmul.f32 %v2714, %v2733
    %v2746 = vmul.f32 %v2717, %v2733
    %v2747 = vmul.f32 %v2720, %v2733
    %v2748 = vmul.f32 %v2723, %v2733
    %v2749 = vmul.f32 %v2726, %v2733
    %v2750 = vmul.f32 %v2729, %v2733
    %v2751 = vmul.f32 %v2732, %v2733
    %v2752 = vsub.f32 %v2447, %v2734
    %v2753 = vsub.f32 %v2452, %v2735
    %v2754 = vsub.f32 %v2457, %v2736
    %v2755 = vsub.f32 %v2462, %v2737
    %v2756 = vsub.f32 %v2467, %v2738
    %v2757 = vsub.f32 %v2472, %v2739
    %v2758 = vsub.f32 %v2477, %v2740
    %v2759 = vsub.f32 %v2482, %v2741
    %v2760 = vsub.f32 %v2487, %v2742
    %v2761 = vsub.f32 %v2635, %v2743
    %v2762 = vsub.f32 %v2640, %v2744
    %v2763 = vsub.f32 %v2645, %v2745
    %v2764 = vsub.f32 %v2650, %v2746
    %v2765 = vsub.f32 %v2655, %v2747
    %v2766 = vsub.f32 %v2660, %v2748
    %v2767 = vsub.f32 %v2665, %v2749
    %v2768 = vsub.f32 %v2670, %v2750
    %v2769 = vsub.f32 %v2675, %v2751
    %v2770 = vmul.f32 %v2752, %v2752
    %v2771 = vmul.f32 %v2753, %v2753
    %v2772 = vmul.f32 %v2754, %v2754
    %v2773 = vmul.f32 %v2755, %v2755
    %v2774 = vmul.f32 %v2756, %v2756
    %v2775 = vmul.f32 %v2757, %v2757
    %v2776 = vmul.f32 %v2758, %v2758
    %v2777 = vmul.f32 %v2759, %v2759
    %v2778 = vmul.f32 %v2760, %v2760
    %v2779 = vmul.f32 %v2761, %v2761
    %v2780 = vmul.f32 %v2762, %v2762
    %v2781 = vmul.f32 %v2763, %v2763
    %v2782 = vmul.f32 %v2764, %v2764
    %v2783 = vmul.f32 %v2765, %v2765
    %v2784 = vmul.f32 %v2766, %v2766
    %v2785 = vmul.f32 %v2767, %v2767
    %v2786 = vmul.f32 %v2768, %v2768
    %v2787 = vmul.f32 %v2769, %v2769
    %v2788 = vsel %vm2108, %v2770, 0.0
    %2789 = vadd.xlane.f32.xlu0 %v2788
    %v2790 = vpop.xlane.xlu0 %2789
    %v2791 = vsel %vm2108, %v2771, 0.0
    %2792 = vadd.xlane.f32.xlu0 %v2791
    %v2793 = vpop.xlane.xlu0 %2792
    %v2794 = vsel %vm2108, %v2772, 0.0
    %2795 = vadd.xlane.f32.xlu0 %v2794
    %v2796 = vpop.xlane.xlu0 %2795
    %v2797 = vsel %vm2108, %v2773, 0.0
    %2798 = vadd.xlane.f32.xlu0 %v2797
    %v2799 = vpop.xlane.xlu0 %2798
    %v2800 = vsel %vm2108, %v2774, 0.0
    %2801 = vadd.xlane.f32.xlu0 %v2800
    %v2802 = vpop.xlane.xlu0 %2801
    %v2803 = vsel %vm2108, %v2775, 0.0
    %2804 = vadd.xlane.f32.xlu0 %v2803
    %v2805 = vpop.xlane.xlu0 %2804
    %v2806 = vsel %vm2108, %v2776, 0.0
    %2807 = vadd.xlane.f32.xlu0 %v2806
    %v2808 = vpop.xlane.xlu0 %2807
    %v2809 = vsel %vm2108, %v2777, 0.0
    %2810 = vadd.xlane.f32.xlu0 %v2809
    %v2811 = vpop.xlane.xlu0 %2810
    %v2812 = vsel %vm2702, %v2778, 0.0
    %2813 = vadd.xlane.f32.xlu0 %v2812
    %v2814 = vpop.xlane.xlu0 %2813
    %v2815 = vsel %vm2108, %v2779, 0.0
    %2816 = vadd.xlane.f32.xlu0 %v2815
    %v2817 = vpop.xlane.xlu0 %2816
    %v2818 = vsel %vm2108, %v2780, 0.0
    %2819 = vadd.xlane.f32.xlu0 %v2818
    %v2820 = vpop.xlane.xlu0 %2819
    %v2821 = vsel %vm2108, %v2781, 0.0
    %2822 = vadd.xlane.f32.xlu0 %v2821
    %v2823 = vpop.xlane.xlu0 %2822
    %v2824 = vsel %vm2108, %v2782, 0.0
    %2825 = vadd.xlane.f32.xlu0 %v2824
    %v2826 = vpop.xlane.xlu0 %2825
    %v2827 = vsel %vm2108, %v2783, 0.0
    %2828 = vadd.xlane.f32.xlu0 %v2827
    %v2829 = vpop.xlane.xlu0 %2828
    %v2830 = vsel %vm2108, %v2784, 0.0
    %2831 = vadd.xlane.f32.xlu0 %v2830
    %v2832 = vpop.xlane.xlu0 %2831
    %v2833 = vsel %vm2108, %v2785, 0.0
    %2834 = vadd.xlane.f32.xlu0 %v2833
    %v2835 = vpop.xlane.xlu0 %2834
    %v2836 = vsel %vm2108, %v2786, 0.0
    %2837 = vadd.xlane.f32.xlu0 %v2836
    %v2838 = vpop.xlane.xlu0 %2837
    %v2839 = vsel %vm2702, %v2787, 0.0
    %2840 = vadd.xlane.f32.xlu0 %v2839
    %v2841 = vpop.xlane.xlu0 %2840
    %v2842 = vmul.f32 %v2790, %v2733
    %v2843 = vmul.f32 %v2793, %v2733
    %v2844 = vmul.f32 %v2796, %v2733
    %v2845 = vmul.f32 %v2799, %v2733
    %v2846 = vmul.f32 %v2802, %v2733
    %v2847 = vmul.f32 %v2805, %v2733
    %v2848 = vmul.f32 %v2808, %v2733
    %v2849 = vmul.f32 %v2811, %v2733
    %v2850 = vmul.f32 %v2814, %v2733
    %v2851 = vmul.f32 %v2817, %v2733
    %v2852 = vmul.f32 %v2820, %v2733
    %v2853 = vmul.f32 %v2823, %v2733
    %v2854 = vmul.f32 %v2826, %v2733
    %v2855 = vmul.f32 %v2829, %v2733
    %v2856 = vmul.f32 %v2832, %v2733
    %v2857 = vmul.f32 %v2835, %v2733
    %v2858 = vmul.f32 %v2838, %v2733
    %v2859 = vmul.f32 %v2841, %v2733
    %v2860 = vadd.f32 %v2842, 1e-05
    %v2861 = vadd.f32 %v2843, 1e-05
    %v2862 = vadd.f32 %v2844, 1e-05
    %v2863 = vadd.f32 %v2845, 1e-05
    %v2864 = vadd.f32 %v2846, 1e-05
    %v2865 = vadd.f32 %v2847, 1e-05
    %v2866 = vadd.f32 %v2848, 1e-05
    %v2867 = vadd.f32 %v2849, 1e-05
    %v2868 = vadd.f32 %v2850, 1e-05
    %v2869 = vadd.f32 %v2851, 1e-05
    %v2870 = vadd.f32 %v2852, 1e-05
    %v2871 = vadd.f32 %v2853, 1e-05
    %v2872 = vadd.f32 %v2854, 1e-05
    %v2873 = vadd.f32 %v2855, 1e-05
    %v2874 = vadd.f32 %v2856, 1e-05
    %v2875 = vadd.f32 %v2857, 1e-05
    %v2876 = vadd.f32 %v2858, 1e-05
    %v2877 = vadd.f32 %v2859, 1e-05
    %v2878 = vrsqrt.pop %v2860
    %v2879 = vrsqrt.pop %v2861
    %v2880 = vrsqrt.pop %v2862
    %v2881 = vrsqrt.pop %v2863
    %v2882 = vrsqrt.pop %v2864
    %v2883 = vrsqrt.pop %v2865
    %v2884 = vrsqrt.pop %v2866
    %v2885 = vrsqrt.pop %v2867
    %v2886 = vrsqrt.pop %v2868
    %v2887 = vrsqrt.pop %v2869
    %v2888 = vrsqrt.pop %v2870
    %v2889 = vrsqrt.pop %v2871
    %v2890 = vrsqrt.pop %v2872
    %v2891 = vrsqrt.pop %v2873
    %v2892 = vrsqrt.pop %v2874
    %v2893 = vrsqrt.pop %v2875
    %v2894 = vrsqrt.pop %v2876
    %v2895 = vrsqrt.pop %v2877
    %v2896 = vmul.f32 %v2752, %v2878
    %v2897 = vmul.f32 %v2753, %v2879
    %v2898 = vmul.f32 %v2754, %v2880
    %v2899 = vmul.f32 %v2755, %v2881
    %v2900 = vmul.f32 %v2756, %v2882
    %v2901 = vmul.f32 %v2757, %v2883
    %v2902 = vmul.f32 %v2758, %v2884
    %v2903 = vmul.f32 %v2759, %v2885
    %v2904 = vmul.f32 %v2760, %v2886
    %v2905 = vmul.f32 %v2761, %v2887
    %v2906 = vmul.f32 %v2762, %v2888
    %v2907 = vmul.f32 %v2763, %v2889
    %v2908 = vmul.f32 %v2764, %v2890
    %v2909 = vmul.f32 %v2765, %v2891
    %v2910 = vmul.f32 %v2766, %v2892
    %v2911 = vmul.f32 %v2767, %v2893
    %v2912 = vmul.f32 %v2768, %v2894
    %v2913 = vmul.f32 %v2769, %v2895
    %v2914 = vmul.f32 %v2896, %v57
    %v2915 = vmul.f32 %v2897, %v57
    %v2916 = vmul.f32 %v2898, %v57
    %v2917 = vmul.f32 %v2899, %v57
    %v2918 = vmul.f32 %v2900, %v57
    %v2919 = vmul.f32 %v2901, %v57
    %v2920 = vmul.f32 %v2902, %v57
    %v2921 = vmul.f32 %v2903, %v57
    %v2922 = vmul.f32 %v2904, %v57
    %v2923 = vmul.f32 %v2905, %v57
    %v2924 = vmul.f32 %v2906, %v57
    %v2925 = vmul.f32 %v2907, %v57
    %v2926 = vmul.f32 %v2908, %v57
    %v2927 = vmul.f32 %v2909, %v57
    %v2928 = vmul.f32 %v2910, %v57
    %v2929 = vmul.f32 %v2911, %v57
    %v2930 = vmul.f32 %v2912, %v57
    %v2931 = vmul.f32 %v2913, %v57
    %v2932 = vadd.f32 %v2914, %v58
    %v2933 = vadd.f32 %v2915, %v58
    %v2934 = vadd.f32 %v2916, %v58
    %v2935 = vadd.f32 %v2917, %v58
    %v2936 = vadd.f32 %v2918, %v58
    %v2937 = vadd.f32 %v2919, %v58
    %v2938 = vadd.f32 %v2920, %v58
    %v2939 = vadd.f32 %v2921, %v58
    %v2940 = vadd.f32 %v2922, %v58
    %v2941 = vadd.f32 %v2923, %v58
    %v2942 = vadd.f32 %v2924, %v58
    %v2943 = vadd.f32 %v2925, %v58
    %v2944 = vadd.f32 %v2926, %v58
    %v2945 = vadd.f32 %v2927, %v58
    %v2946 = vadd.f32 %v2928, %v58
    %v2947 = vadd.f32 %v2929, %v58
    %v2948 = vadd.f32 %v2930, %v58
    %v2949 = vadd.f32 %v2931, %v58
    %v2950 = vxor.u32 %v2932, 2147483648
    %v2951 = vxor.u32 %v2933, 2147483648
    %v2952 = vxor.u32 %v2934, 2147483648
    %v2953 = vxor.u32 %v2935, 2147483648
    %v2954 = vxor.u32 %v2936, 2147483648
    %v2955 = vxor.u32 %v2937, 2147483648
    %v2956 = vxor.u32 %v2938, 2147483648
    %v2957 = vxor.u32 %v2939, 2147483648
    %v2958 = vxor.u32 %v2940, 2147483648
    %v2959 = vxor.u32 %v2941, 2147483648
    %v2960 = vxor.u32 %v2942, 2147483648
    %v2961 = vxor.u32 %v2943, 2147483648
    %v2962 = vxor.u32 %v2944, 2147483648
    %v2963 = vxor.u32 %v2945, 2147483648
    %v2964 = vxor.u32 %v2946, 2147483648
    %v2965 = vxor.u32 %v2947, 2147483648
    %v2966 = vxor.u32 %v2948, 2147483648
    %v2967 = vxor.u32 %v2949, 2147483648
    %v2968 = vmul.f32 %v2950, 1.442695
    %v2969 = vpow.pop %v2968
    %v2970 = vmul.f32 %v2951, 1.442695
    %v2971 = vpow.pop %v2970
    %v2972 = vmul.f32 %v2952, 1.442695
    %v2973 = vpow.pop %v2972
    %v2974 = vmul.f32 %v2953, 1.442695
    %v2975 = vpow.pop %v2974
    %v2976 = vmul.f32 %v2954, 1.442695
    %v2977 = vpow.pop %v2976
    %v2978 = vmul.f32 %v2955, 1.442695
    %v2979 = vpow.pop %v2978
    %v2980 = vmul.f32 %v2956, 1.442695
    %v2981 = vpow.pop %v2980
    %v2982 = vmul.f32 %v2957, 1.442695
    %v2983 = vpow.pop %v2982
    %v2984 = vmul.f32 %v2958, 1.442695
    %v2985 = vpow.pop %v2984
    %v2986 = vmul.f32 %v2959, 1.442695
    %v2987 = vpow.pop %v2986
    %v2988 = vmul.f32 %v2960, 1.442695
    %v2989 = vpow.pop %v2988
    %v2990 = vmul.f32 %v2961, 1.442695
    %v2991 = vpow.pop %v2990
    %v2992 = vmul.f32 %v2962, 1.442695
    %v2993 = vpow.pop %v2992
    %v2994 = vmul.f32 %v2963, 1.442695
    %v2995 = vpow.pop %v2994
    %v2996 = vmul.f32 %v2964, 1.442695
    %v2997 = vpow.pop %v2996
    %v2998 = vmul.f32 %v2965, 1.442695
    %v2999 = vpow.pop %v2998
    %v3000 = vmul.f32 %v2966, 1.442695
    %v3001 = vpow.pop %v3000
    %v3002 = vmul.f32 %v2967, 1.442695
    %v3003 = vpow.pop %v3002
    %v3004 = vadd.f32 %v2969, 1.0
    %v3005 = vadd.f32 %v2971, 1.0
    %v3006 = vadd.f32 %v2973, 1.0
    %v3007 = vadd.f32 %v2975, 1.0
    %v3008 = vadd.f32 %v2977, 1.0
    %v3009 = vadd.f32 %v2979, 1.0
    %v3010 = vadd.f32 %v2981, 1.0
    %v3011 = vadd.f32 %v2983, 1.0
    %v3012 = vadd.f32 %v2985, 1.0
    %v3013 = vadd.f32 %v2987, 1.0
    %v3014 = vadd.f32 %v2989, 1.0
    %v3015 = vadd.f32 %v2991, 1.0
    %v3016 = vadd.f32 %v2993, 1.0
    %v3017 = vadd.f32 %v2995, 1.0
    %v3018 = vadd.f32 %v2997, 1.0
    %v3019 = vadd.f32 %v2999, 1.0
    %v3020 = vadd.f32 %v3001, 1.0
    %v3021 = vadd.f32 %v3003, 1.0
    %v3022 = vrcp.pop %v3004
    %v3023 = vmul.f32 1.0, %v3022
    %v3024 = vrcp.pop %v3005
    %v3025 = vmul.f32 1.0, %v3024
    %v3026 = vrcp.pop %v3006
    %v3027 = vmul.f32 1.0, %v3026
    %v3028 = vrcp.pop %v3007
    %v3029 = vmul.f32 1.0, %v3028
    %v3030 = vrcp.pop %v3008
    %v3031 = vmul.f32 1.0, %v3030
    %v3032 = vrcp.pop %v3009
    %v3033 = vmul.f32 1.0, %v3032
    %v3034 = vrcp.pop %v3010
    %v3035 = vmul.f32 1.0, %v3034
    %v3036 = vrcp.pop %v3011
    %v3037 = vmul.f32 1.0, %v3036
    %v3038 = vrcp.pop %v3012
    %v3039 = vmul.f32 1.0, %v3038
    %v3040 = vrcp.pop %v3013
    %v3041 = vmul.f32 1.0, %v3040
    %v3042 = vrcp.pop %v3014
    %v3043 = vmul.f32 1.0, %v3042
    %v3044 = vrcp.pop %v3015
    %v3045 = vmul.f32 1.0, %v3044
    %v3046 = vrcp.pop %v3016
    %v3047 = vmul.f32 1.0, %v3046
    %v3048 = vrcp.pop %v3017
    %v3049 = vmul.f32 1.0, %v3048
    %v3050 = vrcp.pop %v3018
    %v3051 = vmul.f32 1.0, %v3050
    %v3052 = vrcp.pop %v3019
    %v3053 = vmul.f32 1.0, %v3052
    %v3054 = vrcp.pop %v3020
    %v3055 = vmul.f32 1.0, %v3054
    %v3056 = vrcp.pop %v3021
    %v3057 = vmul.f32 1.0, %v3056
    %v3058 = vmul.f32 %v2932, %v3023
    %v3059 = vmul.f32 %v2933, %v3025
    %v3060 = vmul.f32 %v2934, %v3027
    %v3061 = vmul.f32 %v2935, %v3029
    %v3062 = vmul.f32 %v2936, %v3031
    %v3063 = vmul.f32 %v2937, %v3033
    %v3064 = vmul.f32 %v2938, %v3035
    %v3065 = vmul.f32 %v2939, %v3037
    %v3066 = vmul.f32 %v2940, %v3039
    %v3067 = vmul.f32 %v2941, %v3041
    %v3068 = vmul.f32 %v2942, %v3043
    %v3069 = vmul.f32 %v2943, %v3045
    %v3070 = vmul.f32 %v2944, %v3047
    %v3071 = vmul.f32 %v2945, %v3049
    %v3072 = vmul.f32 %v2946, %v3051
    %v3073 = vmul.f32 %v2947, %v3053
    %v3074 = vmul.f32 %v2948, %v3055
    %v3075 = vmul.f32 %v2949, %v3057
    %v3076 = vld [vmem:[%s11] sm:$0xff]
    %v3077 = vld [vmem:[%s11 + $0x8] sm:$0xff]
    %v3078 = vld [vmem:[%s11 + $0x10] sm:$0xff]
    %v3079 = vld [vmem:[%s11 + $0x18] sm:$0xff]
    %v3080 = vld [vmem:[%s11 + $0x20] sm:$0xff]
    %v3081 = vld [vmem:[%s11 + $0x28] sm:$0xff]
    %v3082 = vld [vmem:[%s11 + $0x30] sm:$0xff]
    %v3083 = vld [vmem:[%s11 + $0x38] sm:$0xff]
    %v3084 = vld [vmem:[%s11 + $0x40] sm:$0xff]
    %v3085 = vld [vmem:[%s11 + $0x48] sm:$0xff]
    %v3086 = vld [vmem:[%s11 + $0x50] sm:$0xff]
    %v3087 = vld [vmem:[%s11 + $0x58] sm:$0xff]
    %v3089 = vsel %vm2108, %v3058, 0
    %v3092 = vsel %vm2108, %v3059, 0
    %v3095 = vsel %vm2108, %v3060, 0
    %v3098 = vsel %vm2108, %v3061, 0
    %v3101 = vsel %vm2108, %v3062, 0
    %v3104 = vsel %vm2108, %v3063, 0
    %v3107 = vsel %vm2108, %v3064, 0
    %v3110 = vsel %vm2108, %v3065, 0
    %v3113 = vsel %vm2108, %v3066, 0
    %3115 = vmatprep.subr.mxu0 0.0
    %3116 = vmatpush1.msra.mxu0 %v3076
    %3117 = vmatprep.subr.mxu0 0.0
    %3118 = vmatpush1.msra.mxu0 %v3077
    %3119 = vmatprep.subr.mxu0 0.0
    %3120 = vmatpush1.msra.mxu0 %v3078
    %3121 = vmatprep.subr.mxu0 0.0
    %3122 = vmatpush1.msra.mxu0 %v3079
    %3123 = vmatprep.subr.mxu0 0.0
    %3124 = vmatpush1.msra.mxu0 %v3080
    %3125 = vmatprep.subr.mxu0 0.0
    %3126 = vmatpush1.msra.mxu0 %v3081
    %3127 = vmatprep.subr.mxu0 0.0
    %3128 = vmatpush1.msra.mxu0 %v3082
    %3129 = vmatprep.subr.mxu0 0.0
    %3130 = vmatpush1.msra.mxu0 %v3083
    %3131 = vmatprep.subr.mxu0 0.0
    %3132 = vmatpush1.msra.mxu0 %v3084
    %3133 = vmatprep.subr.mxu0 0.0
    %3134 = vmatpush1.msra.mxu0 %v3085
    %3135 = vmatprep.subr.mxu0 0.0
    %3136 = vmatpush1.msra.mxu0 %v3086
    %3137 = vmatprep.subr.mxu0 0.0
    %3138 = vmatpush1.msra.mxu0 %v3087
    %3139 = vmatprep.subr.mxu0 0.0
    %3140 = vmatpush1.msra.mxu0 0.0
    %3141 = vmatprep.subr.mxu0 0.0
    %3142 = vmatpush1.msra.mxu0 0.0
    %3143 = vmatprep.subr.mxu0 0.0
    %3144 = vmatpush1.msra.mxu0 0.0
    %3145 = vmatprep.subr.mxu0 0.0
    %3146 = vmatpush1.msra.mxu0 0.0
    %3147 = vmatprep.subr.mxu0 0.0
    %3148 = vmatpush1.msra.mxu0 0.0
    %3149 = vmatprep.subr.mxu0 0.0
    %3150 = vmatpush1.msra.mxu0 0.0
    %3151 = vmatprep.subr.mxu0 0.0
    %3152 = vmatpush1.msra.mxu0 0.0
    %3153 = vmatprep.subr.mxu0 0.0
    %3154 = vmatpush1.msra.mxu0 0.0
    %3155 = vmatprep.subr.mxu0 0.0
    %3156 = vmatpush1.msra.mxu0 0.0
    %3157 = vmatprep.subr.mxu0 0.0
    %3158 = vmatpush1.msra.mxu0 0.0
    %3159 = vmatprep.subr.mxu0 0.0
    %3160 = vmatpush1.msra.mxu0 0.0
    %3161 = vmatprep.subr.mxu0 0.0
    %3162 = vmatpush1.msra.mxu0 0.0
    %3163 = vmatprep.subr.mxu0 0.0
    %3164 = vmatpush1.msra.mxu0 0.0
    %3165 = vmatprep.subr.mxu0 0.0
    %3166 = vmatpush1.msra.mxu0 0.0
    %3167 = vmatprep.subr.mxu0 0.0
    %3168 = vmatpush1.msra.mxu0 0.0
    %3169 = vmatprep.subr.mxu0 0.0
    %3170 = vmatpush1.msra.mxu0 0.0
    %3171 = vmatprep.subr.mxu0 0.0
    %3172 = vmatpush1.msra.mxu0 0.0
    %3173 = vmatprep.subr.mxu0 0.0
    %3174 = vmatpush1.msra.mxu0 0.0
    %3175 = vmatprep.subr.mxu0 0.0
    %3176 = vmatpush1.msra.mxu0 0.0
    %3177 = vmatprep.subr.mxu0 0.0
    %3178 = vmatpush1.msra.mxu0 0.0
    %3179 = vmatprep.mubr.f32.mxu0 0.0
    %3180 = vmatmul.mubr.f32.gmra.mrb[0].mxu0 %v3089
    %v3181 = vpop.f32.mrb[0].mxu0
    %v3182 = vadd.f32 %v59, %v3181
    %v3183 = vpop.f32.mrb[0].mxu0
    %3184 = vmatprep.mubr.f32.mxu0 0.0
    %3185 = vmatmul.mubr.f32.gmra.mrb[0].mxu0 %v3092
    %v3186 = vpop.f32.mrb[0].mxu0
    %v3187 = vadd.f32 %v59, %v3186
    %v3188 = vpop.f32.mrb[0].mxu0
    %3189 = vmatprep.mubr.f32.mxu0 0.0
    %3190 = vmatmul.mubr.f32.gmra.mrb[0].mxu0 %v3095
    %v3191 = vpop.f32.mrb[0].mxu0
    %v3192 = vadd.f32 %v59, %v3191
    %v3193 = vpop.f32.mrb[0].mxu0
    %3194 = vmatprep.mubr.f32.mxu0 0.0
    %3195 = vmatmul.mubr.f32.gmra.mrb[0].mxu0 %v3098
    %v3196 = vpop.f32.mrb[0].mxu0
    %v3197 = vadd.f32 %v59, %v3196
    %v3198 = vpop.f32.mrb[0].mxu0
    %3199 = vmatprep.mubr.f32.mxu0 0.0
    %3200 = vmatmul.mubr.f32.gmra.mrb[0].mxu0 %v3101
    %v3201 = vpop.f32.mrb[0].mxu0
    %v3202 = vadd.f32 %v59, %v3201
    %v3203 = vpop.f32.mrb[0].mxu0
    %3204 = vmatprep.mubr.f32.mxu0 0.0
    %3205 = vmatmul.mubr.f32.gmra.mrb[0].mxu0 %v3104
    %v3206 = vpop.f32.mrb[0].mxu0
    %v3207 = vadd.f32 %v59, %v3206
    %v3208 = vpop.f32.mrb[0].mxu0
    %3209 = vmatprep.mubr.f32.mxu0 0.0
    %3210 = vmatmul.mubr.f32.gmra.mrb[0].mxu0 %v3107
    %v3211 = vpop.f32.mrb[0].mxu0
    %v3212 = vadd.f32 %v59, %v3211
    %v3213 = vpop.f32.mrb[0].mxu0
    %3214 = vmatprep.mubr.f32.mxu0 0.0
    %3215 = vmatmul.mubr.f32.gmra.mrb[0].mxu0 %v3110
    %v3216 = vpop.f32.mrb[0].mxu0
    %v3217 = vadd.f32 %v59, %v3216
    %v3218 = vpop.f32.mrb[0].mxu0
    %3219 = vmatprep.mubr.f32.mxu0 0.0
    %3220 = vmatmul.mubr.f32.gmra.mrb[0].mxu0 %v3113
    %v3221 = vpop.f32.mrb[0].mxu0
    %v3222 = vadd.f32 %v59, %v3221
    %v3223 = vpop.f32.mrb[0].mxu0
    %3224 = vdwg.mxu0
    %vm3225 = vcmask 818176
    %v3226 = vsel %vm3225, %v3182, -inf
    %v3227 = vsel %vm3225, %v3187, -inf
    %v3228 = vsel %vm3225, %v3192, -inf
    %v3229 = vsel %vm3225, %v3197, -inf
    %v3230 = vsel %vm3225, %v3202, -inf
    %v3231 = vmax.f32 %v3226, %v3230
    %v3232 = vsel %vm3225, %v3207, -inf
    %v3233 = vmax.f32 %v3227, %v3232
    %v3234 = vsel %vm3225, %v3212, -inf
    %v3235 = vmax.f32 %v3228, %v3234
    %v3236 = vsel %vm3225, %v3217, -inf
    %v3237 = vmax.f32 %v3229, %v3236
    %vm3238 = vcmask 811008
    %v3239 = vsel %vm3238, %v3222, -inf
    %v3240 = vmax.f32 %v3231, %v3239
    %v3241 = vmax.f32 %v3240, %v3233
    %v3242 = vmax.f32 %v3235, %v3237
    %v3243 = vmax.f32 %v3241, %v3242
    %v3244 = vrot.slane %v3243, 4
    %v3245 = vmax.f32 %v3243, %v3244
    %v3246 = vrot.slane %v3245, 2
    %v3247 = vmax.f32 %v3245, %v3246
    %v3248 = vrot.slane %v3247, 1
    %v3249 = vmax.f32 %v3247, %v3248
    %v3251 = vsel %vm2108, %v3067, 0
    %v3254 = vsel %vm2108, %v3068, 0
    %v3257 = vsel %vm2108, %v3069, 0
    %v3260 = vsel %vm2108, %v3070, 0
    %v3263 = vsel %vm2108, %v3071, 0
    %v3266 = vsel %vm2108, %v3072, 0
    %v3269 = vsel %vm2108, %v3073, 0
    %v3272 = vsel %vm2108, %v3074, 0
    %v3275 = vsel %vm2108, %v3075, 0
    %3277 = vmatprep.subr.mxu0 0.0
    %3278 = vmatpush1.msra.mxu0 %v3076
    %3279 = vmatprep.subr.mxu0 0.0
    %3280 = vmatpush1.msra.mxu0 %v3077
    %3281 = vmatprep.subr.mxu0 0.0
    %3282 = vmatpush1.msra.mxu0 %v3078
    %3283 = vmatprep.subr.mxu0 0.0
    %3284 = vmatpush1.msra.mxu0 %v3079
    %3285 = vmatprep.subr.mxu0 0.0
    %3286 = vmatpush1.msra.mxu0 %v3080
    %3287 = vmatprep.subr.mxu0 0.0
    %3288 = vmatpush1.msra.mxu0 %v3081
    %3289 = vmatprep.subr.mxu0 0.0
    %3290 = vmatpush1.msra.mxu0 %v3082
    %3291 = vmatprep.subr.mxu0 0.0
    %3292 = vmatpush1.msra.mxu0 %v3083
    %3293 = vmatprep.subr.mxu0 0.0
    %3294 = vmatpush1.msra.mxu0 %v3084
    %3295 = vmatprep.subr.mxu0 0.0
    %3296 = vmatpush1.msra.mxu0 %v3085
    %3297 = vmatprep.subr.mxu0 0.0
    %3298 = vmatpush1.msra.mxu0 %v3086
    %3299 = vmatprep.subr.mxu0 0.0
    %3300 = vmatpush1.msra.mxu0 %v3087
    %3301 = vmatprep.subr.mxu0 0.0
    %3302 = vmatpush1.msra.mxu0 0.0
    %3303 = vmatprep.subr.mxu0 0.0
    %3304 = vmatpush1.msra.mxu0 0.0
    %3305 = vmatprep.subr.mxu0 0.0
    %3306 = vmatpush1.msra.mxu0 0.0
    %3307 = vmatprep.subr.mxu0 0.0
    %3308 = vmatpush1.msra.mxu0 0.0
    %3309 = vmatprep.subr.mxu0 0.0
    %3310 = vmatpush1.msra.mxu0 0.0
    %3311 = vmatprep.subr.mxu0 0.0
    %3312 = vmatpush1.msra.mxu0 0.0
    %3313 = vmatprep.subr.mxu0 0.0
    %3314 = vmatpush1.msra.mxu0 0.0
    %3315 = vmatprep.subr.mxu0 0.0
    %3316 = vmatpush1.msra.mxu0 0.0
    %3317 = vmatprep.subr.mxu0 0.0
    %3318 = vmatpush1.msra.mxu0 0.0
    %3319 = vmatprep.subr.mxu0 0.0
    %3320 = vmatpush1.msra.mxu0 0.0
    %3321 = vmatprep.subr.mxu0 0.0
    %3322 = vmatpush1.msra.mxu0 0.0
    %3323 = vmatprep.subr.mxu0 0.0
    %3324 = vmatpush1.msra.mxu0 0.0
    %3325 = vmatprep.subr.mxu0 0.0
    %3326 = vmatpush1.msra.mxu0 0.0
    %3327 = vmatprep.subr.mxu0 0.0
    %3328 = vmatpush1.msra.mxu0 0.0
    %3329 = vmatprep.subr.mxu0 0.0
    %3330 = vmatpush1.msra.mxu0 0.0
    %3331 = vmatprep.subr.mxu0 0.0
    %3332 = vmatpush1.msra.mxu0 0.0
    %3333 = vmatprep.subr.mxu0 0.0
    %3334 = vmatpush1.msra.mxu0 0.0
    %3335 = vmatprep.subr.mxu0 0.0
    %3336 = vmatpush1.msra.mxu0 0.0
    %3337 = vmatprep.subr.mxu0 0.0
    %3338 = vmatpush1.msra.mxu0 0.0
    %3339 = vmatprep.subr.mxu0 0.0
    %3340 = vmatpush1.msra.mxu0 0.0
    %3341 = vmatprep.mubr.f32.mxu0 0.0
    %3342 = vmatmul.mubr.f32.gmra.mrb[0].mxu0 %v3251
    %v3343 = vpop.f32.mrb[0].mxu0
    %v3344 = vadd.f32 %v59, %v3343
    %v3345 = vpop.f32.mrb[0].mxu0
    %3346 = vmatprep.mubr.f32.mxu0 0.0
    %3347 = vmatmul.mubr.f32.gmra.mrb[0].mxu0 %v3254
    %v3348 = vpop.f32.mrb[0].mxu0
    %v3349 = vadd.f32 %v59, %v3348
    %v3350 = vpop.f32.mrb[0].mxu0
    %3351 = vmatprep.mubr.f32.mxu0 0.0
    %3352 = vmatmul.mubr.f32.gmra.mrb[0].mxu0 %v3257
    %v3353 = vpop.f32.mrb[0].mxu0
    %v3354 = vadd.f32 %v59, %v3353
    %v3355 = vpop.f32.mrb[0].mxu0
    %3356 = vmatprep.mubr.f32.mxu0 0.0
    %3357 = vmatmul.mubr.f32.gmra.mrb[0].mxu0 %v3260
    %v3358 = vpop.f32.mrb[0].mxu0
    %v3359 = vadd.f32 %v59, %v3358
    %v3360 = vpop.f32.mrb[0].mxu0
    %3361 = vmatprep.mubr.f32.mxu0 0.0
    %3362 = vmatmul.mubr.f32.gmra.mrb[0].mxu0 %v3263
    %v3363 = vpop.f32.mrb[0].mxu0
    %v3364 = vadd.f32 %v59, %v3363
    %v3365 = vpop.f32.mrb[0].mxu0
    %3366 = vmatprep.mubr.f32.mxu0 0.0
    %3367 = vmatmul.mubr.f32.gmra.mrb[0].mxu0 %v3266
    %v3368 = vpop.f32.mrb[0].mxu0
    %v3369 = vadd.f32 %v59, %v3368
    %v3370 = vpop.f32.mrb[0].mxu0
    %3371 = vmatprep.mubr.f32.mxu0 0.0
    %3372 = vmatmul.mubr.f32.gmra.mrb[0].mxu0 %v3269
    %v3373 = vpop.f32.mrb[0].mxu0
    %v3374 = vadd.f32 %v59, %v3373
    %v3375 = vpop.f32.mrb[0].mxu0
    %3376 = vmatprep.mubr.f32.mxu0 0.0
    %3377 = vmatmul.mubr.f32.gmra.mrb[0].mxu0 %v3272
    %v3378 = vpop.f32.mrb[0].mxu0
    %v3379 = vadd.f32 %v59, %v3378
    %v3380 = vpop.f32.mrb[0].mxu0
    %3381 = vmatprep.mubr.f32.mxu0 0.0
    %3382 = vmatmul.mubr.f32.gmra.mrb[0].mxu0 %v3275
    %v3383 = vpop.f32.mrb[0].mxu0
    %v3384 = vadd.f32 %v59, %v3383
    %v3385 = vpop.f32.mrb[0].mxu0
    %3386 = vdwg.mxu0
    %v3387 = vsel %vm3225, %v3344, -inf
    %v3388 = vsel %vm3225, %v3349, -inf
    %v3389 = vsel %vm3225, %v3354, -inf
    %v3390 = vsel %vm3225, %v3359, -inf
    %v3391 = vsel %vm3225, %v3364, -inf
    %v3392 = vmax.f32 %v3387, %v3391
    %v3393 = vsel %vm3225, %v3369, -inf
    %v3394 = vmax.f32 %v3388, %v3393
    %v3395 = vsel %vm3225, %v3374, -inf
    %v3396 = vmax.f32 %v3389, %v3395
    %v3397 = vsel %vm3225, %v3379, -inf
    %v3398 = vmax.f32 %v3390, %v3397
    %v3399 = vsel %vm3238, %v3384, -inf
    %v3400 = vmax.f32 %v3392, %v3399
    %v3401 = vmax.f32 %v3400, %v3394
    %v3402 = vmax.f32 %v3396, %v3398
    %v3403 = vmax.f32 %v3401, %v3402
    %v3404 = vrot.slane %v3403, 4
    %v3405 = vmax.f32 %v3403, %v3404
    %v3406 = vrot.slane %v3405, 2
    %v3407 = vmax.f32 %v3405, %v3406
    %v3408 = vrot.slane %v3407, 1
    %v3409 = vmax.f32 %v3407, %v3408
    %v3410 = vsel %vm2040, %v3249, %v3409
    %vm3411 = vcmask 812032
    %v3412 = vsel %vm3411, %v3410, 0.0
    %3413 = vadd.xlane.f32.xlu0 %v3412
    %v3414 = vpop.xlane.xlu0 %3413
    %v3415 = vrcp.pop 100.0
    %v3416 = vmul.f32 %v3414, %v3415
    %v3417 = vsub.f32 %v3410, %v3416
    %v3418 = vmul.f32 %v3417, %v3417
    %v3419 = vsel %vm3411, %v3418, 0.0
    %3420 = vadd.xlane.f32.xlu0 %v3419
    %v3421 = vpop.xlane.xlu0 %3420
    %v3422 = vmul.f32 %v3421, %v3415
    %v3423 = vadd.f32 %v3422, 1e-05
    %v3424 = vrsqrt.pop %v3423
    %v3425 = vmul.f32 %v3417, %v3424
    %v3426 = vmul.f32 %v3425, %v60
    %v3427 = vadd.f32 %v3426, %v61
    %v3428 = vld [vmem:[%s12] sm:$0xff]
    %v3429 = vld [vmem:[%s12 + $0x8] sm:$0xff]
    %v3430 = vld [vmem:[%s12 + $0x10] sm:$0xff]
    %v3431 = vld [vmem:[%s12 + $0x18] sm:$0xff]
    %v3432 = vld [vmem:[%s12 + $0x20] sm:$0xff]
    %v3433 = vld [vmem:[%s12 + $0x28] sm:$0xff]
    %v3434 = vld [vmem:[%s12 + $0x30] sm:$0xff]
    %v3435 = vld [vmem:[%s12 + $0x38] sm:$0xff]
    %v3436 = vld [vmem:[%s12 + $0x40] sm:$0xff]
    %v3437 = vld [vmem:[%s12 + $0x48] sm:$0xff]
    %v3438 = vld [vmem:[%s12 + $0x50] sm:$0xff]
    %v3439 = vld [vmem:[%s12 + $0x58] sm:$0xff]
    %v3440 = vld [vmem:[%s12 + $0x60] sm:$0xf]
    %v3442 = vsel %vm3225, %v3427, 0
    %v3445 = vsel %vm239, %v3440, 0
    %3447 = vmatprep.subr.mxu0 0.0
    %3448 = vmatpush1.msra.mxu0 %v3428
    %3449 = vmatprep.subr.mxu0 0.0
    %3450 = vmatpush1.msra.mxu0 %v3429
    %3451 = vmatprep.subr.mxu0 0.0
    %3452 = vmatpush1.msra.mxu0 %v3430
    %3453 = vmatprep.subr.mxu0 0.0
    %3454 = vmatpush1.msra.mxu0 %v3431
    %3455 = vmatprep.subr.mxu0 0.0
    %3456 = vmatpush1.msra.mxu0 %v3432
    %3457 = vmatprep.subr.mxu0 0.0
    %3458 = vmatpush1.msra.mxu0 %v3433
    %3459 = vmatprep.subr.mxu0 0.0
    %3460 = vmatpush1.msra.mxu0 %v3434
    %3461 = vmatprep.subr.mxu0 0.0
    %3462 = vmatpush1.msra.mxu0 %v3435
    %3463 = vmatprep.subr.mxu0 0.0
    %3464 = vmatpush1.msra.mxu0 %v3436
    %3465 = vmatprep.subr.mxu0 0.0
    %3466 = vmatpush1.msra.mxu0 %v3437
    %3467 = vmatprep.subr.mxu0 0.0
    %3468 = vmatpush1.msra.mxu0 %v3438
    %3469 = vmatprep.subr.mxu0 0.0
    %3470 = vmatpush1.msra.mxu0 %v3439
    %3471 = vmatprep.subr.mxu0 0.0
    %3472 = vmatpush1.msra.mxu0 %v3445
    %3473 = vmatprep.subr.mxu0 0.0
    %3474 = vmatpush1.msra.mxu0 0.0
    %3475 = vmatprep.subr.mxu0 0.0
    %3476 = vmatpush1.msra.mxu0 0.0
    %3477 = vmatprep.subr.mxu0 0.0
    %3478 = vmatpush1.msra.mxu0 0.0
    %3479 = vmatprep.subr.mxu0 0.0
    %3480 = vmatpush1.msra.mxu0 0.0
    %3481 = vmatprep.subr.mxu0 0.0
    %3482 = vmatpush1.msra.mxu0 0.0
    %3483 = vmatprep.subr.mxu0 0.0
    %3484 = vmatpush1.msra.mxu0 0.0
    %3485 = vmatprep.subr.mxu0 0.0
    %3486 = vmatpush1.msra.mxu0 0.0
    %3487 = vmatprep.subr.mxu0 0.0
    %3488 = vmatpush1.msra.mxu0 0.0
    %3489 = vmatprep.subr.mxu0 0.0
    %3490 = vmatpush1.msra.mxu0 0.0
    %3491 = vmatprep.subr.mxu0 0.0
    %3492 = vmatpush1.msra.mxu0 0.0
    %3493 = vmatprep.subr.mxu0 0.0
    %3494 = vmatpush1.msra.mxu0 0.0
    %3495 = vmatprep.subr.mxu0 0.0
    %3496 = vmatpush1.msra.mxu0 0.0
    %3497 = vmatprep.subr.mxu0 0.0
    %3498 = vmatpush1.msra.mxu0 0.0
    %3499 = vmatprep.subr.mxu0 0.0
    %3500 = vmatpush1.msra.mxu0 0.0
    %3501 = vmatprep.subr.mxu0 0.0
    %3502 = vmatpush1.msra.mxu0 0.0
    %3503 = vmatprep.subr.mxu0 0.0
    %3504 = vmatpush1.msra.mxu0 0.0
    %3505 = vmatprep.subr.mxu0 0.0
    %3506 = vmatpush1.msra.mxu0 0.0
    %3507 = vmatprep.subr.mxu0 0.0
    %3508 = vmatpush1.msra.mxu0 0.0
    %3509 = vmatprep.subr.mxu0 0.0
    %3510 = vmatpush1.msra.mxu0 0.0
    %3511 = vmatprep.mubr.f32.mxu0 0.0
    %3512 = vmatmul.mubr.f32.gmra.mrb[0].mxu0 %v3442
    %v3513 = vpop.f32.mrb[0].mxu0
    %v3514 = vadd.f32 %v62, %v3513
    %v3515 = vpop.f32.mrb[0].mxu0
    %3516 = vdwg.mxu0
    %vm3517 = vcmask 58368
    %3518 = vst.msk [vmem:[#allocation2] sm:$0x3] %vm3517, %v3514
    // Predicated region
    $region54: #{tpu_custom_call.1} parent=1 // pred_check
      _
    $region55: #{tpu_custom_call.1} parent=1 // pred_check_branch
      %3520 = sbr.rel (0) target = $region57
    $region56: #{tpu_custom_call.1} parent=1 // pred_region
      %s3522 = ssub.s32 32, 32
      %3523 = vsyncadd [#allocation3], %s3522
      %s3525 = sshll.u32 [#allocation2], 4
      %s3526 = int_to_ptr.vmem [resolvable:$true] %s3525
      %3528 = dma.vmem_to_hbm [thread:$0]  %s3526, 32, %s13, [#allocation3]
    $region57: #{tpu_custom_call.1} parent=1 // pred_fallthru
      _
    // Predicated region
    $region58: #{tpu_custom_call.1} parent=1 // pred_check
      _
    $region59: #{tpu_custom_call.1} parent=1 // pred_check_branch
      %3530 = sbr.rel (0) target = $region61
    $region60: #{tpu_custom_call.1} parent=1 // pred_region
      %3531 = dma.done [#allocation3], 32
    $region61: #{tpu_custom_call.1} parent=1 // pred_fallthru
      _
    %3532 = vsyncpa [#allocation3], 1

</llo_original>
